<compile_context>
chip_gen: v5e
topology: v5e:2x2
jax: 0.10.0
libtpu: 0.0.40
codegen_flags: <defaults>
</compile_context>

<pallas_src>
import functools

import jax
import jax.numpy as jnp
from jax import lax
from jax.experimental import pallas as pl
from jax.experimental.pallas import tpu as pltpu

LANE = 128


def _sym_loss_kernel(pv_ref, pts_ref, tbl_ref, out_ref, *,
                     res, n_planes, n_lo, tn, n_valid, apply_mask):
    """One (batch, point-chunk) step: partial sum over planes & points of dist * (1 - voxel)."""
    pv = pv_ref[0]                       # [8, 8]   plane params
    pts = pts_ref[0]                     # [3, TN]  f32, lane-dense point chunk
    tbl = tbl_ref[0]                     # [CW, R]  bf16 transposed gather table

    R = tbl.shape[1]
    TN = pts.shape[1]

    nd = pv[4:4 + n_planes, 0:4]         # [P, 4]  rows (n_x, n_y, n_z, d)
    st = pv[0:3, 0:n_planes]             # [3, P]  columns 2*n/|n|^2

    # t = p.n + d for all planes at once (exact f32 on the VPU; [P, TN] lane-dense).
    t = (nd[:, 0:1] * pts[0:1, :] + nd[:, 1:2] * pts[1:2, :]
         + nd[:, 2:3] * pts[2:3, :] + nd[:, 3:4])

    iota_r = lax.broadcasted_iota(jnp.int32, (R, TN), 0)       # coarse (table-row) index
    iota_l = lax.broadcasted_iota(jnp.int32, (LANE, TN), 0)    # fine (lane) index

    eps = jnp.float32(1e-6)              # torch pairwise_distance eps (added to the diff)
    total = jnp.zeros((1, TN), jnp.float32)

    for p in range(n_planes):
        # Reflect the point chunk across plane p (lane-dense [3, TN] math).
        refl = pts - st[:, p:p + 1] * t[p:p + 1, :]
        # Voxel cell indices: trunc toward zero (== torch .long()), then clamp.
        cells = jnp.clip(((refl + 0.5) * res).astype(jnp.int32), 0, res - 1)
        g = cells[0:1, :] * (res * res) + cells[1:2, :] * res + cells[2:3, :]   # [1, TN]

        # Fused gather: one bf16 one-hot matmul pulls all channels for this plane.
        # NOTE: for very small resolutions (res <= 16, R <= 32) the matmul K dim underuses the
        # MXU; a pure-VPU gather over V columns would be competitive there (not implemented).
        onehot_r = ((g >> 7) == iota_r).astype(jnp.bfloat16)   # [R, TN]  (0/1 exact in bf16)
        onehot_l = ((g & 127) == iota_l).astype(jnp.float32)   # [128, TN] kept f32 (v5e-safe)
        rows = jnp.dot(tbl, onehot_r, preferred_element_type=jnp.float32)   # [CW, TN] f32

        def sel(c):                                            # lane-select channel c
            return jnp.sum(rows[c * LANE:(c + 1) * LANE, :] * onehot_l,
                           axis=0, keepdims=True)              # [1, TN]

        vv = sel(0)                                            # voxel occupancy (hi only)
        tx, ty, tz = sel(1), sel(2), sel(3)                    # target point hi halves
        if n_lo:                                               # add lo halves -> ~f32 accuracy
            tx = tx + sel(4)
            ty = ty + sel(5)
            tz = tz + sel(6)

        dx = refl[0:1, :] - tx + eps
        dy = refl[1:2, :] - ty + eps
        dz = refl[2:3, :] - tz + eps
        dist = jnp.sqrt(dx * dx + dy * dy + dz * dz)           # [1, TN]
        total = total + dist * (1.0 - vv)

    if apply_mask:                       # traced only when the point count was padded
        pos = lax.broadcasted_iota(jnp.int32, (1, TN), 1) + pl.program_id(1) * tn
        total = total * (pos < n_valid).astype(jnp.float32)

    # Per-chunk partial sum, broadcast into a lane-dense output block (wrapper reads [0,0]).
    out_ref[...] = jnp.zeros_like(out_ref) + jnp.sum(total)


def loss_func_forward(point_cloud, auxiliary_data, voxel_data, predicted_planes,
                      *, voxel_resolution=16, weight_regularization=25.0,
                      hi_only_gather=False):
    """Pallas implementation of LossFunc.forward."""
    B, N, _ = point_cloud.shape
    P = predicted_planes.shape[0]
    res = voxel_resolution
    V = res ** 3
    assert V % LANE == 0, "voxel_resolution**3 must be a multiple of 128"
    R = V // LANE

    n_lo = 0 if hi_only_gather else 3
    CW = (4 + n_lo) * LANE

    # Point chunking: TN is a multiple of 128; capped so per-step VMEM stays well inside the
    # 32 MiB scoped default on every generation (v7x: 64 MiB physical / 32 MiB scoped).
    tn_cap = 256 if R >= 1024 else 512
    n128 = ((N + LANE - 1) // LANE) * LANE
    TN = min(tn_cap, n128)
    N_pad = ((N + TN - 1) // TN) * TN
    NC = N_pad // TN
    apply_mask = (N_pad != N)

    pts_t = jnp.transpose(point_cloud.astype(jnp.float32), (0, 2, 1))      # [B, 3, N]
    if apply_mask:
        pts_t = jnp.pad(pts_t, ((0, 0), (0, 0), (0, N_pad - N)))

    # Transposed fused gather table [B, CW, R]: row c*128+l, col r holds channel c at flat
    # voxel index r*128+l.  Channel order: [vox | x_hi | y_hi | z_hi | x_lo | y_lo | z_lo].
    vox_f = voxel_data.astype(jnp.float32).reshape(B, R, LANE)
    aux_f = auxiliary_data.astype(jnp.float32)
    coord_f = [aux_f[:, :, c].reshape(B, R, LANE) for c in range(3)]
    hi_ch = [vox_f.astype(jnp.bfloat16)] + [c.astype(jnp.bfloat16) for c in coord_f]
    lo_ch = [(coord_f[c] - hi_ch[1 + c].astype(jnp.float32)).astype(jnp.bfloat16)
             for c in range(n_lo)]
    tbl_t = jnp.concatenate([jnp.transpose(ch, (0, 2, 1)) for ch in hi_ch + lo_ch],
                            axis=1)                                        # [B, CW, R] bf16

    # Per-(batch, plane) parameters, computed once (tiny O(B*P) work):
    #   rows 4..4+P-1, cols 0..3 : (n_x, n_y, n_z, d)
    #   rows 0..2,     cols 0..P-1: (2*n/|n|^2)^T
    planes_f = predicted_planes.astype(jnp.float32)                        # [P, B, 4]
    nvec = planes_f[:, :, 0:3]
    dval = planes_f[:, :, 3:4]
    len2 = jnp.sum(nvec * nvec, axis=-1, keepdims=True)
    svec = 2.0 * nvec / len2                                               # 2*n/|n|^2
    nd = jnp.concatenate([nvec, dval], axis=-1)                            # [P, B, 4]
    pvec = jnp.zeros((B, 8, 8), jnp.float32)
    pvec = pvec.at[:, 0:3, 0:P].set(jnp.transpose(svec, (1, 2, 0)))        # [B, 3, P]
    pvec = pvec.at[:, 4:4 + P, 0:4].set(jnp.transpose(nd, (1, 0, 2)))      # [B, P, 4]

    kernel = functools.partial(_sym_loss_kernel, res=res, n_planes=P, n_lo=n_lo,
                               tn=TN, n_valid=N, apply_mask=apply_mask)

    cost = pl.CostEstimate(
        flops=int(2 * B * NC * P * CW * R * TN),
        transcendentals=int(B * P * N_pad),
        bytes_accessed=int(B * CW * R * 2 + B * 3 * N_pad * 4
                           + B * NC * 8 * LANE * 4 + B * 8 * 8 * 4),
    )

    out = pl.pallas_call(
        kernel,
        out_shape=jax.ShapeDtypeStruct((B, NC, 8, LANE), jnp.float32),
        grid_spec=pltpu.PrefetchScalarGridSpec(
            num_scalar_prefetch=0,
            grid=(B, NC),
            in_specs=[
                pl.BlockSpec((1, 8, 8), lambda b, n: (b, 0, 0)),           # plane params
                pl.BlockSpec((1, 3, TN), lambda b, n: (b, 0, n)),          # lane-dense point chunk
                pl.BlockSpec((1, CW, R), lambda b, n: (b, 0, 0)),          # transposed gather table
            ],
            out_specs=pl.BlockSpec((1, 1, 8, LANE), lambda b, n: (b, n, 0, 0)),
        ),
        compiler_params=pltpu.CompilerParams(
            dimension_semantics=("parallel", "parallel")),
        cost_estimate=cost,
    )(pvec, pts_t, tbl_t)

    sym_loss = jnp.sum(out[:, :, 0, 0]) / B

    # Regularization: elementwise (Hadamard) nhat * nhat^T - I, Frobenius^2 / B (matches the
    # PyTorch broadcast; requires P == 3).
    nv = jnp.transpose(planes_f[:, :, 0:3], (1, 0, 2))                     # [B, P, 3]
    nhat = nv / jnp.maximum(jnp.linalg.norm(nv, axis=-1, keepdims=True), 1e-12)
    mm = nhat * jnp.transpose(nhat, (0, 2, 1)) - jnp.eye(3, dtype=jnp.float32)
    reg_loss = jnp.sum(mm * mm) / B

    return sym_loss + weight_regularization * reg_loss


def reference_loss(point_cloud, auxiliary_data, voxel_data, predicted_planes,
                   *, voxel_resolution=16, weight_regularization=25.0):
    """Pure-JAX reference mirroring the PyTorch forward."""
    B, N, _ = point_cloud.shape
    res = voxel_resolution
    sym = jnp.zeros((), jnp.float32)
    for p in range(predicted_planes.shape[0]):
        plane = predicted_planes[p]                                     # [B, 4]
        nvec = plane[:, 0:3]
        len2 = jnp.sum(nvec * nvec, axis=1)
        t = (jnp.einsum('bnc,bc->bn', point_cloud, nvec) + plane[:, 3][:, None]) / len2[:, None]
        refl = point_cloud - 2.0 * t[:, :, None] * nvec[:, None, :]
        idx = jnp.clip(((refl + 0.5) * res).astype(jnp.int32), 0, res - 1)
        g = idx[..., 0] * res * res + idx[..., 1] * res + idx[..., 2]   # [B, N]
        vv = 1.0 - jnp.take_along_axis(voxel_data, g, axis=1)           # [B, N]
        tgt = jnp.take_along_axis(auxiliary_data,
                                  jnp.broadcast_to(g[..., None], (B, N, 3)), axis=1)
        dist = jnp.sqrt(jnp.sum((refl - tgt + 1e-6) ** 2, axis=-1))
        sym = sym + jnp.sum(dist * vv) / B
    nv = jnp.transpose(predicted_planes[:, :, 0:3], (1, 0, 2))
    nhat = nv / jnp.maximum(jnp.linalg.norm(nv, axis=-1, keepdims=True), 1e-12)
    M = nhat * jnp.transpose(nhat, (0, 2, 1)) - jnp.eye(3, dtype=jnp.float32)
    reg = jnp.sum(M * M) / B
    return sym + weight_regularization * reg


if __name__ == "__main__":
    B, N, P = 2, 64, 3
    RES = 16                         # small voxel resolution for the demo (module default is 32)
    V = RES ** 3

    key = jax.random.PRNGKey(0)
    k1, k2, k3, k4 = jax.random.split(key, 4)
    point_cloud = jax.random.uniform(k1, (B, N, 3), jnp.float32, minval=-0.55, maxval=0.55)
    auxiliary_data = jax.random.uniform(k2, (B, V, 3), jnp.float32, minval=-0.5, maxval=0.5)
    # Occupancy grids are binary (0/1) — matches the module's semantics and keeps the bf16
    # hi-only occupancy channel exact.
    voxel_data = (jax.random.uniform(k3, (B, V), jnp.float32) > 0.5).astype(jnp.float32)
    predicted_planes = jax.random.normal(k4, (P, B, 4), jnp.float32)

    loss = jax.block_until_ready(
        loss_func_forward(point_cloud, auxiliary_data, voxel_data, predicted_planes,
                          voxel_resolution=RES, weight_regularization=25.0))
    ref = jax.block_until_ready(
        reference_loss(point_cloud, auxiliary_data, voxel_data, predicted_planes,
                       voxel_resolution=RES, weight_regularization=25.0))

    assert jnp.isfinite(loss), "non-finite loss"
    assert abs(float(loss) - float(ref)) <= 1e-3 * max(1.0, abs(float(ref))), \
        f"mismatch: pallas={float(loss)} ref={float(ref)}"
    print("KERNEL_OK")
</pallas_src>

<mosaic_0001>
module attributes {stable_mosaic.version = 11 : i64} {
  func.func @_sym_loss_kernel(%arg0: i32, %arg1: i32, %arg2: memref<1x8x8xf32, #tpu.memory_space<vmem>>, %arg3: memref<1x3x128xf32, #tpu.memory_space<vmem>>, %arg4: memref<1x896x32xbf16, #tpu.memory_space<vmem>>, %arg5: memref<1x1x8x128xf32, #tpu.memory_space<vmem>>) attributes {dimension_semantics = [#tpu.dimension_semantics<parallel>, #tpu.dimension_semantics<parallel>], iteration_bounds = array<i64: 2, 1>, scalar_prefetch = 0 : i64, scratch_operands = 0 : i64, tpu.core_type = #tpu.core_type<tc>, window_params = [{transform_indices = @transform_0, window_bounds = array<i64: 1, 8, 8>}, {transform_indices = @transform_1, window_bounds = array<i64: 1, 3, 128>}, {transform_indices = @transform_2, window_bounds = array<i64: 1, 896, 32>}, {transform_indices = @transform_3, window_bounds = array<i64: 1, 1, 8, 128>}]} {
    %c0 = arith.constant 0 : index
    %c0_0 = arith.constant 0 : index
    %c0_1 = arith.constant 0 : index
    %0 = vector.load %arg2[%c0, %c0_0, %c0_1] : memref<1x8x8xf32, #tpu.memory_space<vmem>>, vector<1x8x8xf32>
    %1 = vector.shape_cast %0 : vector<1x8x8xf32> to vector<8x8xf32>
    %c0_2 = arith.constant 0 : index
    %c0_3 = arith.constant 0 : index
    %c0_4 = arith.constant 0 : index
    %2 = vector.load %arg3[%c0_2, %c0_3, %c0_4] : memref<1x3x128xf32, #tpu.memory_space<vmem>>, vector<1x3x128xf32>
    %3 = vector.shape_cast %2 : vector<1x3x128xf32> to vector<3x128xf32>
    %c0_5 = arith.constant 0 : index
    %c0_6 = arith.constant 0 : index
    %c0_7 = arith.constant 0 : index
    %4 = vector.load %arg4[%c0_5, %c0_6, %c0_7] : memref<1x896x32xbf16, #tpu.memory_space<vmem>>, vector<1x896x32xbf16>
    %5 = vector.shape_cast %4 : vector<1x896x32xbf16> to vector<896x32xbf16>
    %6 = vector.extract_strided_slice %1 {offsets = [4, 0], sizes = [3, 4], strides = [1, 1]} : vector<8x8xf32> to vector<3x4xf32>
    %7 = vector.extract_strided_slice %1 {offsets = [0, 0], sizes = [3, 3], strides = [1, 1]} : vector<8x8xf32> to vector<3x3xf32>
    %8 = vector.extract_strided_slice %6 {offsets = [0, 0], sizes = [3, 1], strides = [1, 1]} : vector<3x4xf32> to vector<3x1xf32>
    %9 = vector.extract_strided_slice %3 {offsets = [0, 0], sizes = [1, 128], strides = [1, 1]} : vector<3x128xf32> to vector<1x128xf32>
    %10 = vector.broadcast %8 : vector<3x1xf32> to vector<3x128xf32>
    %11 = vector.broadcast %9 : vector<1x128xf32> to vector<3x128xf32>
    %12 = arith.mulf %10, %11 : vector<3x128xf32>
    %13 = vector.extract_strided_slice %6 {offsets = [0, 1], sizes = [3, 1], strides = [1, 1]} : vector<3x4xf32> to vector<3x1xf32>
    %14 = vector.extract_strided_slice %3 {offsets = [1, 0], sizes = [1, 128], strides = [1, 1]} : vector<3x128xf32> to vector<1x128xf32>
    %15 = vector.broadcast %13 : vector<3x1xf32> to vector<3x128xf32>
    %16 = vector.broadcast %14 : vector<1x128xf32> to vector<3x128xf32>
    %17 = arith.mulf %15, %16 : vector<3x128xf32>
    %18 = arith.addf %12, %17 : vector<3x128xf32>
    %19 = vector.extract_strided_slice %6 {offsets = [0, 2], sizes = [3, 1], strides = [1, 1]} : vector<3x4xf32> to vector<3x1xf32>
    %20 = vector.extract_strided_slice %3 {offsets = [2, 0], sizes = [1, 128], strides = [1, 1]} : vector<3x128xf32> to vector<1x128xf32>
    %21 = vector.broadcast %19 : vector<3x1xf32> to vector<3x128xf32>
    %22 = vector.broadcast %20 : vector<1x128xf32> to vector<3x128xf32>
    %23 = arith.mulf %21, %22 : vector<3x128xf32>
    %24 = arith.addf %18, %23 : vector<3x128xf32>
    %25 = vector.extract_strided_slice %6 {offsets = [0, 3], sizes = [3, 1], strides = [1, 1]} : vector<3x4xf32> to vector<3x1xf32>
    %26 = vector.broadcast %25 : vector<3x1xf32> to vector<3x128xf32>
    %27 = arith.addf %24, %26 : vector<3x128xf32>
    %28 = tpu.iota {dimensions = array<i32: 0>} : vector<32x128xi32>
    %29 = tpu.iota {dimensions = array<i32: 0>} : vector<128x128xi32>
    %cst = arith.constant 0.000000e+00 : f32
    %30 = vector.broadcast %cst : f32 to vector<1x128xf32>
    %31 = vector.extract_strided_slice %7 {offsets = [0, 0], sizes = [3, 1], strides = [1, 1]} : vector<3x3xf32> to vector<3x1xf32>
    %32 = vector.extract_strided_slice %27 {offsets = [0, 0], sizes = [1, 128], strides = [1, 1]} : vector<3x128xf32> to vector<1x128xf32>
    %33 = vector.broadcast %31 : vector<3x1xf32> to vector<3x128xf32>
    %34 = vector.broadcast %32 : vector<1x128xf32> to vector<3x128xf32>
    %35 = arith.mulf %33, %34 : vector<3x128xf32>
    %36 = arith.subf %3, %35 : vector<3x128xf32>
    %cst_8 = arith.constant 5.000000e-01 : f32
    %37 = vector.broadcast %cst_8 : f32 to vector<3x128xf32>
    %38 = arith.addf %36, %37 : vector<3x128xf32>
    %cst_9 = arith.constant 1.600000e+01 : f32
    %39 = vector.broadcast %cst_9 : f32 to vector<3x128xf32>
    %40 = arith.mulf %38, %39 : vector<3x128xf32>
    %41 = arith.fptosi %40 : vector<3x128xf32> to vector<3x128xi32>
    %c0_i32 = arith.constant 0 : i32
    %c15_i32 = arith.constant 15 : i32
    %42 = vector.broadcast %c0_i32 : i32 to vector<3x128xi32>
    %43 = arith.maxsi %42, %41 : vector<3x128xi32>
    %44 = vector.broadcast %c15_i32 : i32 to vector<3x128xi32>
    %45 = arith.minsi %44, %43 : vector<3x128xi32>
    %46 = vector.extract_strided_slice %45 {offsets = [0, 0], sizes = [1, 128], strides = [1, 1]} : vector<3x128xi32> to vector<1x128xi32>
    %c256_i32 = arith.constant 256 : i32
    %47 = vector.broadcast %c256_i32 : i32 to vector<1x128xi32>
    %48 = arith.muli %46, %47 : vector<1x128xi32>
    %49 = vector.extract_strided_slice %45 {offsets = [1, 0], sizes = [1, 128], strides = [1, 1]} : vector<3x128xi32> to vector<1x128xi32>
    %c16_i32 = arith.constant 16 : i32
    %50 = vector.broadcast %c16_i32 : i32 to vector<1x128xi32>
    %51 = arith.muli %49, %50 : vector<1x128xi32>
    %52 = arith.addi %48, %51 : vector<1x128xi32>
    %53 = vector.extract_strided_slice %45 {offsets = [2, 0], sizes = [1, 128], strides = [1, 1]} : vector<3x128xi32> to vector<1x128xi32>
    %54 = arith.addi %52, %53 : vector<1x128xi32>
    %c7_i32 = arith.constant 7 : i32
    %55 = vector.broadcast %c7_i32 : i32 to vector<1x128xi32>
    %56 = arith.shrsi %54, %55 : vector<1x128xi32>
    %57 = vector.broadcast %56 : vector<1x128xi32> to vector<32x128xi32>
    %58 = arith.cmpi eq, %57, %28 : vector<32x128xi32>
    %59 = arith.extui %58 : vector<32x128xi1> to vector<32x128xi32>
    %60 = arith.sitofp %59 : vector<32x128xi32> to vector<32x128xf32>
    %61 = arith.truncf %60 : vector<32x128xf32> to vector<32x128xbf16>
    %c127_i32 = arith.constant 127 : i32
    %62 = vector.broadcast %c127_i32 : i32 to vector<1x128xi32>
    %63 = arith.andi %54, %62 : vector<1x128xi32>
    %64 = vector.broadcast %63 : vector<1x128xi32> to vector<128x128xi32>
    %65 = arith.cmpi eq, %64, %29 : vector<128x128xi32>
    %66 = arith.extui %65 : vector<128x128xi1> to vector<128x128xi32>
    %67 = arith.sitofp %66 : vector<128x128xi32> to vector<128x128xf32>
    %cst_10 = arith.constant dense<0.000000e+00> : vector<896x128xf32>
    %68 = tpu.matmul %5, %61, %cst_10 {dimension_numbers = #tpu.dot_dimension_numbers<[1], [0], [0], [1], [0, 0, 1, 1], [], []>} : vector<896x32xbf16>, vector<32x128xbf16>, vector<896x128xf32> -> vector<896x128xf32>
    %69 = vector.extract_strided_slice %68 {offsets = [0, 0], sizes = [128, 128], strides = [1, 1]} : vector<896x128xf32> to vector<128x128xf32>
    %70 = arith.mulf %69, %67 : vector<128x128xf32>
    %cst_11 = arith.constant dense<0.000000e+00> : vector<128xf32>
    %71 = vector.multi_reduction <add>, %70, %cst_11 [0] : vector<128x128xf32> to vector<128xf32>
    %72 = vector.shape_cast %71 : vector<128xf32> to vector<1x128xf32>
    %73 = vector.extract_strided_slice %68 {offsets = [128, 0], sizes = [128, 128], strides = [1, 1]} : vector<896x128xf32> to vector<128x128xf32>
    %74 = arith.mulf %73, %67 : vector<128x128xf32>
    %cst_12 = arith.constant dense<0.000000e+00> : vector<128xf32>
    %75 = vector.multi_reduction <add>, %74, %cst_12 [0] : vector<128x128xf32> to vector<128xf32>
    %76 = vector.shape_cast %75 : vector<128xf32> to vector<1x128xf32>
    %77 = vector.extract_strided_slice %68 {offsets = [256, 0], sizes = [128, 128], strides = [1, 1]} : vector<896x128xf32> to vector<128x128xf32>
    %78 = arith.mulf %77, %67 : vector<128x128xf32>
    %cst_13 = arith.constant dense<0.000000e+00> : vector<128xf32>
    %79 = vector.multi_reduction <add>, %78, %cst_13 [0] : vector<128x128xf32> to vector<128xf32>
    %80 = vector.shape_cast %79 : vector<128xf32> to vector<1x128xf32>
    %81 = vector.extract_strided_slice %68 {offsets = [384, 0], sizes = [128, 128], strides = [1, 1]} : vector<896x128xf32> to vector<128x128xf32>
    %82 = arith.mulf %81, %67 : vector<128x128xf32>
    %cst_14 = arith.constant dense<0.000000e+00> : vector<128xf32>
    %83 = vector.multi_reduction <add>, %82, %cst_14 [0] : vector<128x128xf32> to vector<128xf32>
    %84 = vector.shape_cast %83 : vector<128xf32> to vector<1x128xf32>
    %85 = vector.extract_strided_slice %68 {offsets = [512, 0], sizes = [128, 128], strides = [1, 1]} : vector<896x128xf32> to vector<128x128xf32>
    %86 = arith.mulf %85, %67 : vector<128x128xf32>
    %cst_15 = arith.constant dense<0.000000e+00> : vector<128xf32>
    %87 = vector.multi_reduction <add>, %86, %cst_15 [0] : vector<128x128xf32> to vector<128xf32>
    %88 = vector.shape_cast %87 : vector<128xf32> to vector<1x128xf32>
    %89 = arith.addf %76, %88 : vector<1x128xf32>
    %90 = vector.extract_strided_slice %68 {offsets = [640, 0], sizes = [128, 128], strides = [1, 1]} : vector<896x128xf32> to vector<128x128xf32>
    %91 = arith.mulf %90, %67 : vector<128x128xf32>
    %cst_16 = arith.constant dense<0.000000e+00> : vector<128xf32>
    %92 = vector.multi_reduction <add>, %91, %cst_16 [0] : vector<128x128xf32> to vector<128xf32>
    %93 = vector.shape_cast %92 : vector<128xf32> to vector<1x128xf32>
    %94 = arith.addf %80, %93 : vector<1x128xf32>
    %95 = vector.extract_strided_slice %68 {offsets = [768, 0], sizes = [128, 128], strides = [1, 1]} : vector<896x128xf32> to vector<128x128xf32>
    %96 = arith.mulf %95, %67 : vector<128x128xf32>
    %cst_17 = arith.constant dense<0.000000e+00> : vector<128xf32>
    %97 = vector.multi_reduction <add>, %96, %cst_17 [0] : vector<128x128xf32> to vector<128xf32>
    %98 = vector.shape_cast %97 : vector<128xf32> to vector<1x128xf32>
    %99 = arith.addf %84, %98 : vector<1x128xf32>
    %100 = vector.extract_strided_slice %36 {offsets = [0, 0], sizes = [1, 128], strides = [1, 1]} : vector<3x128xf32> to vector<1x128xf32>
    %101 = arith.subf %100, %89 : vector<1x128xf32>
    %cst_18 = arith.constant 9.99999997E-7 : f32
    %102 = vector.broadcast %cst_18 : f32 to vector<1x128xf32>
    %103 = arith.addf %101, %102 : vector<1x128xf32>
    %104 = vector.extract_strided_slice %36 {offsets = [1, 0], sizes = [1, 128], strides = [1, 1]} : vector<3x128xf32> to vector<1x128xf32>
    %105 = arith.subf %104, %94 : vector<1x128xf32>
    %cst_19 = arith.constant 9.99999997E-7 : f32
    %106 = vector.broadcast %cst_19 : f32 to vector<1x128xf32>
    %107 = arith.addf %105, %106 : vector<1x128xf32>
    %108 = vector.extract_strided_slice %36 {offsets = [2, 0], sizes = [1, 128], strides = [1, 1]} : vector<3x128xf32> to vector<1x128xf32>
    %109 = arith.subf %108, %99 : vector<1x128xf32>
    %cst_20 = arith.constant 9.99999997E-7 : f32
    %110 = vector.broadcast %cst_20 : f32 to vector<1x128xf32>
    %111 = arith.addf %109, %110 : vector<1x128xf32>
    %112 = arith.mulf %103, %103 : vector<1x128xf32>
    %113 = arith.mulf %107, %107 : vector<1x128xf32>
    %114 = arith.addf %112, %113 : vector<1x128xf32>
    %115 = arith.mulf %111, %111 : vector<1x128xf32>
    %116 = arith.addf %114, %115 : vector<1x128xf32>
    %117 = math.sqrt %116 : vector<1x128xf32>
    %cst_21 = arith.constant 1.000000e+00 : f32
    %118 = vector.broadcast %cst_21 : f32 to vector<1x128xf32>
    %119 = arith.subf %118, %72 : vector<1x128xf32>
    %120 = arith.mulf %117, %119 : vector<1x128xf32>
    %121 = arith.addf %30, %120 : vector<1x128xf32>
    %122 = vector.extract_strided_slice %7 {offsets = [0, 1], sizes = [3, 1], strides = [1, 1]} : vector<3x3xf32> to vector<3x1xf32>
    %123 = vector.extract_strided_slice %27 {offsets = [1, 0], sizes = [1, 128], strides = [1, 1]} : vector<3x128xf32> to vector<1x128xf32>
    %124 = vector.broadcast %122 : vector<3x1xf32> to vector<3x128xf32>
    %125 = vector.broadcast %123 : vector<1x128xf32> to vector<3x128xf32>
    %126 = arith.mulf %124, %125 : vector<3x128xf32>
    %127 = arith.subf %3, %126 : vector<3x128xf32>
    %cst_22 = arith.constant 5.000000e-01 : f32
    %128 = vector.broadcast %cst_22 : f32 to vector<3x128xf32>
    %129 = arith.addf %127, %128 : vector<3x128xf32>
    %cst_23 = arith.constant 1.600000e+01 : f32
    %130 = vector.broadcast %cst_23 : f32 to vector<3x128xf32>
    %131 = arith.mulf %129, %130 : vector<3x128xf32>
    %132 = arith.fptosi %131 : vector<3x128xf32> to vector<3x128xi32>
    %c0_i32_24 = arith.constant 0 : i32
    %c15_i32_25 = arith.constant 15 : i32
    %133 = vector.broadcast %c0_i32_24 : i32 to vector<3x128xi32>
    %134 = arith.maxsi %133, %132 : vector<3x128xi32>
    %135 = vector.broadcast %c15_i32_25 : i32 to vector<3x128xi32>
    %136 = arith.minsi %135, %134 : vector<3x128xi32>
    %137 = vector.extract_strided_slice %136 {offsets = [0, 0], sizes = [1, 128], strides = [1, 1]} : vector<3x128xi32> to vector<1x128xi32>
    %c256_i32_26 = arith.constant 256 : i32
    %138 = vector.broadcast %c256_i32_26 : i32 to vector<1x128xi32>
    %139 = arith.muli %137, %138 : vector<1x128xi32>
    %140 = vector.extract_strided_slice %136 {offsets = [1, 0], sizes = [1, 128], strides = [1, 1]} : vector<3x128xi32> to vector<1x128xi32>
    %c16_i32_27 = arith.constant 16 : i32
    %141 = vector.broadcast %c16_i32_27 : i32 to vector<1x128xi32>
    %142 = arith.muli %140, %141 : vector<1x128xi32>
    %143 = arith.addi %139, %142 : vector<1x128xi32>
    %144 = vector.extract_strided_slice %136 {offsets = [2, 0], sizes = [1, 128], strides = [1, 1]} : vector<3x128xi32> to vector<1x128xi32>
    %145 = arith.addi %143, %144 : vector<1x128xi32>
    %c7_i32_28 = arith.constant 7 : i32
    %146 = vector.broadcast %c7_i32_28 : i32 to vector<1x128xi32>
    %147 = arith.shrsi %145, %146 : vector<1x128xi32>
    %148 = vector.broadcast %147 : vector<1x128xi32> to vector<32x128xi32>
    %149 = arith.cmpi eq, %148, %28 : vector<32x128xi32>
    %150 = arith.extui %149 : vector<32x128xi1> to vector<32x128xi32>
    %151 = arith.sitofp %150 : vector<32x128xi32> to vector<32x128xf32>
    %152 = arith.truncf %151 : vector<32x128xf32> to vector<32x128xbf16>
    %c127_i32_29 = arith.constant 127 : i32
    %153 = vector.broadcast %c127_i32_29 : i32 to vector<1x128xi32>
    %154 = arith.andi %145, %153 : vector<1x128xi32>
    %155 = vector.broadcast %154 : vector<1x128xi32> to vector<128x128xi32>
    %156 = arith.cmpi eq, %155, %29 : vector<128x128xi32>
    %157 = arith.extui %156 : vector<128x128xi1> to vector<128x128xi32>
    %158 = arith.sitofp %157 : vector<128x128xi32> to vector<128x128xf32>
    %cst_30 = arith.constant dense<0.000000e+00> : vector<896x128xf32>
    %159 = tpu.matmul %5, %152, %cst_30 {dimension_numbers = #tpu.dot_dimension_numbers<[1], [0], [0], [1], [0, 0, 1, 1], [], []>} : vector<896x32xbf16>, vector<32x128xbf16>, vector<896x128xf32> -> vector<896x128xf32>
    %160 = vector.extract_strided_slice %159 {offsets = [0, 0], sizes = [128, 128], strides = [1, 1]} : vector<896x128xf32> to vector<128x128xf32>
    %161 = arith.mulf %160, %158 : vector<128x128xf32>
    %cst_31 = arith.constant dense<0.000000e+00> : vector<128xf32>
    %162 = vector.multi_reduction <add>, %161, %cst_31 [0] : vector<128x128xf32> to vector<128xf32>
    %163 = vector.shape_cast %162 : vector<128xf32> to vector<1x128xf32>
    %164 = vector.extract_strided_slice %159 {offsets = [128, 0], sizes = [128, 128], strides = [1, 1]} : vector<896x128xf32> to vector<128x128xf32>
    %165 = arith.mulf %164, %158 : vector<128x128xf32>
    %cst_32 = arith.constant dense<0.000000e+00> : vector<128xf32>
    %166 = vector.multi_reduction <add>, %165, %cst_32 [0] : vector<128x128xf32> to vector<128xf32>
    %167 = vector.shape_cast %166 : vector<128xf32> to vector<1x128xf32>
    %168 = vector.extract_strided_slice %159 {offsets = [256, 0], sizes = [128, 128], strides = [1, 1]} : vector<896x128xf32> to vector<128x128xf32>
    %169 = arith.mulf %168, %158 : vector<128x128xf32>
    %cst_33 = arith.constant dense<0.000000e+00> : vector<128xf32>
    %170 = vector.multi_reduction <add>, %169, %cst_33 [0] : vector<128x128xf32> to vector<128xf32>
    %171 = vector.shape_cast %170 : vector<128xf32> to vector<1x128xf32>
    %172 = vector.extract_strided_slice %159 {offsets = [384, 0], sizes = [128, 128], strides = [1, 1]} : vector<896x128xf32> to vector<128x128xf32>
    %173 = arith.mulf %172, %158 : vector<128x128xf32>
    %cst_34 = arith.constant dense<0.000000e+00> : vector<128xf32>
    %174 = vector.multi_reduction <add>, %173, %cst_34 [0] : vector<128x128xf32> to vector<128xf32>
    %175 = vector.shape_cast %174 : vector<128xf32> to vector<1x128xf32>
    %176 = vector.extract_strided_slice %159 {offsets = [512, 0], sizes = [128, 128], strides = [1, 1]} : vector<896x128xf32> to vector<128x128xf32>
    %177 = arith.mulf %176, %158 : vector<128x128xf32>
    %cst_35 = arith.constant dense<0.000000e+00> : vector<128xf32>
    %178 = vector.multi_reduction <add>, %177, %cst_35 [0] : vector<128x128xf32> to vector<128xf32>
    %179 = vector.shape_cast %178 : vector<128xf32> to vector<1x128xf32>
    %180 = arith.addf %167, %179 : vector<1x128xf32>
    %181 = vector.extract_strided_slice %159 {offsets = [640, 0], sizes = [128, 128], strides = [1, 1]} : vector<896x128xf32> to vector<128x128xf32>
    %182 = arith.mulf %181, %158 : vector<128x128xf32>
    %cst_36 = arith.constant dense<0.000000e+00> : vector<128xf32>
    %183 = vector.multi_reduction <add>, %182, %cst_36 [0] : vector<128x128xf32> to vector<128xf32>
    %184 = vector.shape_cast %183 : vector<128xf32> to vector<1x128xf32>
    %185 = arith.addf %171, %184 : vector<1x128xf32>
    %186 = vector.extract_strided_slice %159 {offsets = [768, 0], sizes = [128, 128], strides = [1, 1]} : vector<896x128xf32> to vector<128x128xf32>
    %187 = arith.mulf %186, %158 : vector<128x128xf32>
    %cst_37 = arith.constant dense<0.000000e+00> : vector<128xf32>
    %188 = vector.multi_reduction <add>, %187, %cst_37 [0] : vector<128x128xf32> to vector<128xf32>
    %189 = vector.shape_cast %188 : vector<128xf32> to vector<1x128xf32>
    %190 = arith.addf %175, %189 : vector<1x128xf32>
    %191 = vector.extract_strided_slice %127 {offsets = [0, 0], sizes = [1, 128], strides = [1, 1]} : vector<3x128xf32> to vector<1x128xf32>
    %192 = arith.subf %191, %180 : vector<1x128xf32>
    %cst_38 = arith.constant 9.99999997E-7 : f32
    %193 = vector.broadcast %cst_38 : f32 to vector<1x128xf32>
    %194 = arith.addf %192, %193 : vector<1x128xf32>
    %195 = vector.extract_strided_slice %127 {offsets = [1, 0], sizes = [1, 128], strides = [1, 1]} : vector<3x128xf32> to vector<1x128xf32>
    %196 = arith.subf %195, %185 : vector<1x128xf32>
    %cst_39 = arith.constant 9.99999997E-7 : f32
    %197 = vector.broadcast %cst_39 : f32 to vector<1x128xf32>
    %198 = arith.addf %196, %197 : vector<1x128xf32>
    %199 = vector.extract_strided_slice %127 {offsets = [2, 0], sizes = [1, 128], strides = [1, 1]} : vector<3x128xf32> to vector<1x128xf32>
    %200 = arith.subf %199, %190 : vector<1x128xf32>
    %cst_40 = arith.constant 9.99999997E-7 : f32
    %201 = vector.broadcast %cst_40 : f32 to vector<1x128xf32>
    %202 = arith.addf %200, %201 : vector<1x128xf32>
    %203 = arith.mulf %194, %194 : vector<1x128xf32>
    %204 = arith.mulf %198, %198 : vector<1x128xf32>
    %205 = arith.addf %203, %204 : vector<1x128xf32>
    %206 = arith.mulf %202, %202 : vector<1x128xf32>
    %207 = arith.addf %205, %206 : vector<1x128xf32>
    %208 = math.sqrt %207 : vector<1x128xf32>
    %cst_41 = arith.constant 1.000000e+00 : f32
    %209 = vector.broadcast %cst_41 : f32 to vector<1x128xf32>
    %210 = arith.subf %209, %163 : vector<1x128xf32>
    %211 = arith.mulf %208, %210 : vector<1x128xf32>
    %212 = arith.addf %121, %211 : vector<1x128xf32>
    %213 = vector.extract_strided_slice %7 {offsets = [0, 2], sizes = [3, 1], strides = [1, 1]} : vector<3x3xf32> to vector<3x1xf32>
    %214 = vector.extract_strided_slice %27 {offsets = [2, 0], sizes = [1, 128], strides = [1, 1]} : vector<3x128xf32> to vector<1x128xf32>
    %215 = vector.broadcast %213 : vector<3x1xf32> to vector<3x128xf32>
    %216 = vector.broadcast %214 : vector<1x128xf32> to vector<3x128xf32>
    %217 = arith.mulf %215, %216 : vector<3x128xf32>
    %218 = arith.subf %3, %217 : vector<3x128xf32>
    %cst_42 = arith.constant 5.000000e-01 : f32
    %219 = vector.broadcast %cst_42 : f32 to vector<3x128xf32>
    %220 = arith.addf %218, %219 : vector<3x128xf32>
    %cst_43 = arith.constant 1.600000e+01 : f32
    %221 = vector.broadcast %cst_43 : f32 to vector<3x128xf32>
    %222 = arith.mulf %220, %221 : vector<3x128xf32>
    %223 = arith.fptosi %222 : vector<3x128xf32> to vector<3x128xi32>
    %c0_i32_44 = arith.constant 0 : i32
    %c15_i32_45 = arith.constant 15 : i32
    %224 = vector.broadcast %c0_i32_44 : i32 to vector<3x128xi32>
    %225 = arith.maxsi %224, %223 : vector<3x128xi32>
    %226 = vector.broadcast %c15_i32_45 : i32 to vector<3x128xi32>
    %227 = arith.minsi %226, %225 : vector<3x128xi32>
    %228 = vector.extract_strided_slice %227 {offsets = [0, 0], sizes = [1, 128], strides = [1, 1]} : vector<3x128xi32> to vector<1x128xi32>
    %c256_i32_46 = arith.constant 256 : i32
    %229 = vector.broadcast %c256_i32_46 : i32 to vector<1x128xi32>
    %230 = arith.muli %228, %229 : vector<1x128xi32>
    %231 = vector.extract_strided_slice %227 {offsets = [1, 0], sizes = [1, 128], strides = [1, 1]} : vector<3x128xi32> to vector<1x128xi32>
    %c16_i32_47 = arith.constant 16 : i32
    %232 = vector.broadcast %c16_i32_47 : i32 to vector<1x128xi32>
    %233 = arith.muli %231, %232 : vector<1x128xi32>
    %234 = arith.addi %230, %233 : vector<1x128xi32>
    %235 = vector.extract_strided_slice %227 {offsets = [2, 0], sizes = [1, 128], strides = [1, 1]} : vector<3x128xi32> to vector<1x128xi32>
    %236 = arith.addi %234, %235 : vector<1x128xi32>
    %c7_i32_48 = arith.constant 7 : i32
    %237 = vector.broadcast %c7_i32_48 : i32 to vector<1x128xi32>
    %238 = arith.shrsi %236, %237 : vector<1x128xi32>
    %239 = vector.broadcast %238 : vector<1x128xi32> to vector<32x128xi32>
    %240 = arith.cmpi eq, %239, %28 : vector<32x128xi32>
    %241 = arith.extui %240 : vector<32x128xi1> to vector<32x128xi32>
    %242 = arith.sitofp %241 : vector<32x128xi32> to vector<32x128xf32>
    %243 = arith.truncf %242 : vector<32x128xf32> to vector<32x128xbf16>
    %c127_i32_49 = arith.constant 127 : i32
    %244 = vector.broadcast %c127_i32_49 : i32 to vector<1x128xi32>
    %245 = arith.andi %236, %244 : vector<1x128xi32>
    %246 = vector.broadcast %245 : vector<1x128xi32> to vector<128x128xi32>
    %247 = arith.cmpi eq, %246, %29 : vector<128x128xi32>
    %248 = arith.extui %247 : vector<128x128xi1> to vector<128x128xi32>
    %249 = arith.sitofp %248 : vector<128x128xi32> to vector<128x128xf32>
    %cst_50 = arith.constant dense<0.000000e+00> : vector<896x128xf32>
    %250 = tpu.matmul %5, %243, %cst_50 {dimension_numbers = #tpu.dot_dimension_numbers<[1], [0], [0], [1], [0, 0, 1, 1], [], []>} : vector<896x32xbf16>, vector<32x128xbf16>, vector<896x128xf32> -> vector<896x128xf32>
    %251 = vector.extract_strided_slice %250 {offsets = [0, 0], sizes = [128, 128], strides = [1, 1]} : vector<896x128xf32> to vector<128x128xf32>
    %252 = arith.mulf %251, %249 : vector<128x128xf32>
    %cst_51 = arith.constant dense<0.000000e+00> : vector<128xf32>
    %253 = vector.multi_reduction <add>, %252, %cst_51 [0] : vector<128x128xf32> to vector<128xf32>
    %254 = vector.shape_cast %253 : vector<128xf32> to vector<1x128xf32>
    %255 = vector.extract_strided_slice %250 {offsets = [128, 0], sizes = [128, 128], strides = [1, 1]} : vector<896x128xf32> to vector<128x128xf32>
    %256 = arith.mulf %255, %249 : vector<128x128xf32>
    %cst_52 = arith.constant dense<0.000000e+00> : vector<128xf32>
    %257 = vector.multi_reduction <add>, %256, %cst_52 [0] : vector<128x128xf32> to vector<128xf32>
    %258 = vector.shape_cast %257 : vector<128xf32> to vector<1x128xf32>
    %259 = vector.extract_strided_slice %250 {offsets = [256, 0], sizes = [128, 128], strides = [1, 1]} : vector<896x128xf32> to vector<128x128xf32>
    %260 = arith.mulf %259, %249 : vector<128x128xf32>
    %cst_53 = arith.constant dense<0.000000e+00> : vector<128xf32>
    %261 = vector.multi_reduction <add>, %260, %cst_53 [0] : vector<128x128xf32> to vector<128xf32>
    %262 = vector.shape_cast %261 : vector<128xf32> to vector<1x128xf32>
    %263 = vector.extract_strided_slice %250 {offsets = [384, 0], sizes = [128, 128], strides = [1, 1]} : vector<896x128xf32> to vector<128x128xf32>
    %264 = arith.mulf %263, %249 : vector<128x128xf32>
    %cst_54 = arith.constant dense<0.000000e+00> : vector<128xf32>
    %265 = vector.multi_reduction <add>, %264, %cst_54 [0] : vector<128x128xf32> to vector<128xf32>
    %266 = vector.shape_cast %265 : vector<128xf32> to vector<1x128xf32>
    %267 = vector.extract_strided_slice %250 {offsets = [512, 0], sizes = [128, 128], strides = [1, 1]} : vector<896x128xf32> to vector<128x128xf32>
    %268 = arith.mulf %267, %249 : vector<128x128xf32>
    %cst_55 = arith.constant dense<0.000000e+00> : vector<128xf32>
    %269 = vector.multi_reduction <add>, %268, %cst_55 [0] : vector<128x128xf32> to vector<128xf32>
    %270 = vector.shape_cast %269 : vector<128xf32> to vector<1x128xf32>
    %271 = arith.addf %258, %270 : vector<1x128xf32>
    %272 = vector.extract_strided_slice %250 {offsets = [640, 0], sizes = [128, 128], strides = [1, 1]} : vector<896x128xf32> to vector<128x128xf32>
    %273 = arith.mulf %272, %249 : vector<128x128xf32>
    %cst_56 = arith.constant dense<0.000000e+00> : vector<128xf32>
    %274 = vector.multi_reduction <add>, %273, %cst_56 [0] : vector<128x128xf32> to vector<128xf32>
    %275 = vector.shape_cast %274 : vector<128xf32> to vector<1x128xf32>
    %276 = arith.addf %262, %275 : vector<1x128xf32>
    %277 = vector.extract_strided_slice %250 {offsets = [768, 0], sizes = [128, 128], strides = [1, 1]} : vector<896x128xf32> to vector<128x128xf32>
    %278 = arith.mulf %277, %249 : vector<128x128xf32>
    %cst_57 = arith.constant dense<0.000000e+00> : vector<128xf32>
    %279 = vector.multi_reduction <add>, %278, %cst_57 [0] : vector<128x128xf32> to vector<128xf32>
    %280 = vector.shape_cast %279 : vector<128xf32> to vector<1x128xf32>
    %281 = arith.addf %266, %280 : vector<1x128xf32>
    %282 = vector.extract_strided_slice %218 {offsets = [0, 0], sizes = [1, 128], strides = [1, 1]} : vector<3x128xf32> to vector<1x128xf32>
    %283 = arith.subf %282, %271 : vector<1x128xf32>
    %cst_58 = arith.constant 9.99999997E-7 : f32
    %284 = vector.broadcast %cst_58 : f32 to vector<1x128xf32>
    %285 = arith.addf %283, %284 : vector<1x128xf32>
    %286 = vector.extract_strided_slice %218 {offsets = [1, 0], sizes = [1, 128], strides = [1, 1]} : vector<3x128xf32> to vector<1x128xf32>
    %287 = arith.subf %286, %276 : vector<1x128xf32>
    %cst_59 = arith.constant 9.99999997E-7 : f32
    %288 = vector.broadcast %cst_59 : f32 to vector<1x128xf32>
    %289 = arith.addf %287, %288 : vector<1x128xf32>
    %290 = vector.extract_strided_slice %218 {offsets = [2, 0], sizes = [1, 128], strides = [1, 1]} : vector<3x128xf32> to vector<1x128xf32>
    %291 = arith.subf %290, %281 : vector<1x128xf32>
    %cst_60 = arith.constant 9.99999997E-7 : f32
    %292 = vector.broadcast %cst_60 : f32 to vector<1x128xf32>
    %293 = arith.addf %291, %292 : vector<1x128xf32>
    %294 = arith.mulf %285, %285 : vector<1x128xf32>
    %295 = arith.mulf %289, %289 : vector<1x128xf32>
    %296 = arith.addf %294, %295 : vector<1x128xf32>
    %297 = arith.mulf %293, %293 : vector<1x128xf32>
    %298 = arith.addf %296, %297 : vector<1x128xf32>
    %299 = math.sqrt %298 : vector<1x128xf32>
    %cst_61 = arith.constant 1.000000e+00 : f32
    %300 = vector.broadcast %cst_61 : f32 to vector<1x128xf32>
    %301 = arith.subf %300, %254 : vector<1x128xf32>
    %302 = arith.mulf %299, %301 : vector<1x128xf32>
    %303 = arith.addf %212, %302 : vector<1x128xf32>
    %304 = tpu.iota {dimensions = array<i32: 1>} : vector<1x128xi32>
    %c128_i32 = arith.constant 128 : i32
    %305 = arith.muli %arg1, %c128_i32 : i32
    %306 = vector.broadcast %305 : i32 to vector<1x128xi32>
    %307 = arith.addi %304, %306 : vector<1x128xi32>
    %c64_i32 = arith.constant 64 : i32
    %308 = vector.broadcast %c64_i32 : i32 to vector<1x128xi32>
    %309 = arith.cmpi slt, %307, %308 : vector<1x128xi32>
    %310 = arith.extui %309 : vector<1x128xi1> to vector<1x128xi32>
    %311 = arith.sitofp %310 : vector<1x128xi32> to vector<1x128xf32>
    %312 = arith.mulf %303, %311 : vector<1x128xf32>
    %cst_62 = arith.constant 0.000000e+00 : f32
    %313 = vector.broadcast %cst_62 : f32 to vector<1x1x8x128xf32>
    %314 = vector.shape_cast %312 : vector<1x128xf32> to vector<1x1x128xf32>
    %cst_63 = arith.constant dense<0.000000e+00> : vector<1xf32>
    %315 = vector.multi_reduction <add>, %314, %cst_63 [1, 2] : vector<1x1x128xf32> to vector<1xf32>
    %316 = vector.shape_cast %315 : vector<1xf32> to vector<1x1x1xf32>
    %317 = vector.extract %316[0, 0, 0] : f32 from vector<1x1x1xf32>
    %318 = vector.broadcast %317 : f32 to vector<1x1x8x128xf32>
    %319 = arith.addf %313, %318 : vector<1x1x8x128xf32>
    %c0_64 = arith.constant 0 : index
    %c0_65 = arith.constant 0 : index
    %c0_66 = arith.constant 0 : index
    %c0_67 = arith.constant 0 : index
    %320 = vector.load %arg5[%c0_64, %c0_65, %c0_66, %c0_67] : memref<1x1x8x128xf32, #tpu.memory_space<vmem>>, vector<1x1x8x128xf32>
    tpu.vector_store %arg5[%c0_64, %c0_65, %c0_66, %c0_67], %319 {strides = array<i32>} : memref<1x1x8x128xf32, #tpu.memory_space<vmem>>, vector<1x1x8x128xf32>,
    return
  }
  func.func @transform_0(%arg0: i32, %arg1: i32) -> (i32, i32, i32) {
    %c0_i32 = arith.constant 0 : i32
    %c0_i32_0 = arith.constant 0 : i32
    %c0_i32_1 = arith.constant 0 : i32
    return %arg0, %c0_i32, %c0_i32_0 : i32, i32, i32
  }
  func.func @transform_1(%arg0: i32, %arg1: i32) -> (i32, i32, i32) {
    %c0_i32 = arith.constant 0 : i32
    %c0_i32_0 = arith.constant 0 : i32
    return %arg0, %c0_i32, %arg1 : i32, i32, i32
  }
  func.func @transform_2(%arg0: i32, %arg1: i32) -> (i32, i32, i32) {
    %c0_i32 = arith.constant 0 : i32
    %c0_i32_0 = arith.constant 0 : i32
    %c0_i32_1 = arith.constant 0 : i32
    return %arg0, %c0_i32, %c0_i32_0 : i32, i32, i32
  }
  func.func @transform_3(%arg0: i32, %arg1: i32) -> (i32, i32, i32, i32) {
    %c0_i32 = arith.constant 0 : i32
    %c0_i32_0 = arith.constant 0 : i32
    %c0_i32_1 = arith.constant 0 : i32
    return %arg0, %arg1, %c0_i32, %c0_i32_0 : i32, i32, i32, i32
  }
}

</mosaic_0001>

<llo_original>
// kernel: tpu_custom_call.1
$region0: #{tpu_custom_call.1}
  #allocation0 [shape = 'u32[]', space=smem, size = 0x4, offset = 0x4, fixed_abs, tag = 'smem constant byte address 0x4 - core index']
  #allocation1 [shape = 'u32[72,128]{1,0:T(1,128)}', space=vmem, size = 0x9000, scoped, tag = 'internal scratch']
  %s0 = inlined_call_operand.vmem [shape: f32[2,8,8], index: 0, kind: input, shape index: {}]
  %s1 = inlined_call_operand.vmem [shape: f32[2,3,128], index: 1, kind: input, shape index: {}]
  %s2 = inlined_call_operand.vmem [shape: bf16[2,896,32], index: 2, kind: input, shape index: {}]
  %s3 = inlined_call_operand.hbm [shape: f32[2,1,8,128], index: 3, kind: output, shape index: {}]
  %s4 = sld [smem:[#allocation0]]
  $region45: #{tpu_custom_call.1} parent=0
    _
  %s6 = ssub.s32 1, %s4
  %s7 = scalar_select 0, %s6, %s4
  $region1: #{tpu_custom_call.1} parent=0
    #allocation2 [shape = 'u8[8192]{0}', space=vmem, size = 0x2000, scoped, tag = 'output window, operand 0']
    #allocation3 [shape = 's32[2]{0}', space=sflag, size = 0x8, scoped, tag = 'scoped memory for tpu_custom_call.1']
    %8 = vsyncpa [#allocation3], 0
    %s9 = scalar_lea.sflag [#allocation3], 1
    %10 = vsyncpa %s9, 0
    loop: start=0, step=1, limit=4
    $region2: #{tpu_custom_call.1} parent=1 // loop_pre_header
      _
    $region3: #{tpu_custom_call.1} parent=1 // loop_header
      %s12 = sphi 0, %s16
      %p13 = scmp.ge.s32.totalorder %s12, 4
      %s19 = sphi 0, %s31
      %s20 = sphi 0, %s27
      %s21 = sphi 0, %s19
      %s22 = sphi 0, %s20
      %s23 = sphi 0, %s21
      %s24 = sphi 0, %s22
      %s34 = sphi 0, %s36
      %s37 = sphi 0, %s34
      %s38 = sphi 0, %s37
      %s54 = sphi 0, %s38
      %s62 = sphi 0, %s64
      %s65 = sphi 0, %s62
      %s66 = sphi 0, %s65
      %s82 = sphi 0, %s66
      %s88 = sphi 0, %s90
      %s91 = sphi 0, %s88
      %s92 = sphi 0, %s91
      %s108 = sphi 0, %s92
      %s116 = sphi 0, %s118
      %s119 = sphi 0, %s116
      %s120 = sphi 0, %s119
      %s136 = sphi 0, %s120
    $region4: #{tpu_custom_call.1} parent=1 // loop_header_branch
      %15 = sbr.rel (%p13) target = $region8
    $region5: #{tpu_custom_call.1} parent=1 // loop_body
      %s17 = ssub.s32 %s12, 1
      %s18 = ssub.s32 %s12, 2
      %s25 = sadd.s32 1, %s20
      %p26 = scmp.ge.s32.totalorder %s25, 1
      %s27 = scalar_select %p26, 0, %s25
      %s28 = sadd.s32 1, %s19
      %s29 = scalar_select %p26, %s28, %s19
      %p30 = scmp.ge.s32.totalorder %s29, 2
      %s31 = scalar_select %p30, 0, %s29
      %s32 = ssub.s32 %s19, %s31
      %p33 = scmp.eq.s32.totalorder %s32, 0
      %s35 = sadd.s32 %s34, 1
      %s36 = scalar_select %p33, %s34, %s35
      %p39 = pneg %p33
      %p40 = scmp.eq.s32.totalorder %s12, 1
      %p41 = por %p39, %p40
      %p42 = scmp.ne.s32.totalorder %s34, %s37
      %p43 = scmp.eq.s32.totalorder %s12, 0
      %p44 = por %p42, %p43
      %p45 = scmp.ne.s32.totalorder %s34, %s37
      %p46 = scmp.eq.s32.totalorder %s17, 1
      %p47 = por %p45, %p46
      %p48 = scmp.ne.s32.totalorder %s37, %s38
      %p49 = scmp.eq.s32.totalorder %s17, 0
      %p50 = por %p48, %p49
      %p51 = scmp.ne.s32.totalorder %s37, %s38
      %p52 = scmp.eq.s32.totalorder %s18, 1
      %p53 = por %p51, %p52
      %p55 = scmp.ne.s32.totalorder %s38, %s54
      %p56 = scmp.eq.s32.totalorder %s18, 0
      %p57 = por %p55, %p56
      %s58 = ssub.s32 %s19, %s31
      %s59 = ssub.s32 %s20, %s27
      %s60 = sor.u32 %s58, %s59
      %p61 = scmp.eq.s32.totalorder %s60, 0
      %s63 = sadd.s32 %s62, 1
      %s64 = scalar_select %p61, %s62, %s63
      %p67 = pneg %p61
      %p68 = scmp.eq.s32.totalorder %s12, 1
      %p69 = por %p67, %p68
      %p70 = scmp.ne.s32.totalorder %s62, %s65
      %p71 = scmp.eq.s32.totalorder %s12, 0
      %p72 = por %p70, %p71
      %p73 = scmp.ne.s32.totalorder %s62, %s65
      %p74 = scmp.eq.s32.totalorder %s17, 1
      %p75 = por %p73, %p74
      %p76 = scmp.ne.s32.totalorder %s65, %s66
      %p77 = scmp.eq.s32.totalorder %s17, 0
      %p78 = por %p76, %p77
      %p79 = scmp.ne.s32.totalorder %s65, %s66
      %p80 = scmp.eq.s32.totalorder %s18, 1
      %p81 = por %p79, %p80
      %p83 = scmp.ne.s32.totalorder %s66, %s82
      %p84 = scmp.eq.s32.totalorder %s18, 0
      %p85 = por %p83, %p84
      %s86 = ssub.s32 %s19, %s31
      %p87 = scmp.eq.s32.totalorder %s86, 0
      %s89 = sadd.s32 %s88, 1
      %s90 = scalar_select %p87, %s88, %s89
      %p93 = pneg %p87
      %p94 = scmp.eq.s32.totalorder %s12, 1
      %p95 = por %p93, %p94
      %p96 = scmp.ne.s32.totalorder %s88, %s91
      %p97 = scmp.eq.s32.totalorder %s12, 0
      %p98 = por %p96, %p97
      %p99 = scmp.ne.s32.totalorder %s88, %s91
      %p100 = scmp.eq.s32.totalorder %s17, 1
      %p101 = por %p99, %p100
      %p102 = scmp.ne.s32.totalorder %s91, %s92
      %p103 = scmp.eq.s32.totalorder %s17, 0
      %p104 = por %p102, %p103
      %p105 = scmp.ne.s32.totalorder %s91, %s92
      %p106 = scmp.eq.s32.totalorder %s18, 1
      %p107 = por %p105, %p106
      %p109 = scmp.ne.s32.totalorder %s92, %s108
      %p110 = scmp.eq.s32.totalorder %s18, 0
      %p111 = por %p109, %p110
      %s112 = ssub.s32 %s19, %s31
      %s113 = ssub.s32 %s20, %s27
      %s114 = sor.u32 %s112, %s113
      %p115 = scmp.eq.s32.totalorder %s114, 0
      %s117 = sadd.s32 %s116, 1
      %s118 = scalar_select %p115, %s116, %s117
      %p121 = pneg %p115
      %p122 = scmp.eq.s32.totalorder %s12, 1
      %p123 = por %p121, %p122
      %p124 = scmp.ne.s32.totalorder %s116, %s119
      %p125 = scmp.eq.s32.totalorder %s12, 0
      %p126 = por %p124, %p125
      %p127 = scmp.ne.s32.totalorder %s116, %s119
      %p128 = scmp.eq.s32.totalorder %s17, 1
      %p129 = por %p127, %p128
      %p130 = scmp.ne.s32.totalorder %s119, %s120
      %p131 = scmp.eq.s32.totalorder %s17, 0
      %p132 = por %p130, %p131
      %p133 = scmp.ne.s32.totalorder %s119, %s120
      %p134 = scmp.eq.s32.totalorder %s18, 1
      %p135 = por %p133, %p134
      %p137 = scmp.ne.s32.totalorder %s120, %s136
      %p138 = scmp.eq.s32.totalorder %s18, 0
      %p139 = por %p137, %p138
      %p140 = scmp.le.s32.totalorder 1, %s12
      %p141 = scmp.lt.s32.totalorder %s12, 3
      %p142 = pnand %p140, %p141
      %p143 = pneg %p142
      // Predicated region
      $region9: #{tpu_custom_call.1} parent=5 // pred_check
        _
      $region10: #{tpu_custom_call.1} parent=5 // pred_check_branch
        %145 = sbr.rel (%p142) target = $region12
      $region11: #{tpu_custom_call.1} parent=5 // pred_region
        %s146 = ssub.s32 %s12, 1
      $region12: #{tpu_custom_call.1} parent=5 // pred_fallthru
        _
      %p147 = scmp.lt.s32.totalorder %s12, 2
      // Predicated region
      $region13: #{tpu_custom_call.1} parent=5 // pred_check
        %p148 = pneg %p147
      $region14: #{tpu_custom_call.1} parent=5 // pred_check_branch
        %150 = sbr.rel (%p148) target = $region16
      $region15: #{tpu_custom_call.1} parent=5 // pred_region
        // Predicated region
        $region17: #{tpu_custom_call.1} parent=15 // pred_check
          %p151 = pneg %p44
        $region18: #{tpu_custom_call.1} parent=15 // pred_check_branch
          %153 = sbr.rel (%p151) target = $region20
        $region19: #{tpu_custom_call.1} parent=15 // pred_region
          %p154 = scmp.lt.s32.totalorder %s19, 1
          %s155 = scalar_select %p154, %s19, 1
          %s156 = smul.addr %s155, 8
          %s157 = scalar_lea.vmem %s0, %s156
        $region20: #{tpu_custom_call.1} parent=15 // pred_fallthru
          _
        // Predicated region
        $region21: #{tpu_custom_call.1} parent=15 // pred_check
          %p158 = pneg %p72
        $region22: #{tpu_custom_call.1} parent=15 // pred_check_branch
          %160 = sbr.rel (%p158) target = $region24
        $region23: #{tpu_custom_call.1} parent=15 // pred_region
          %p161 = scmp.lt.s32.totalorder %s19, 1
          %s162 = scalar_select %p161, %s19, 1
          %p163 = scmp.lt.s32.totalorder %s20, 0
          %s164 = scalar_select %p163, %s20, 0
          %s165 = sadd.s32 %s164, %s162
          %s166 = smul.addr %s165, 4
          %s167 = scalar_lea.vmem %s1, %s166
        $region24: #{tpu_custom_call.1} parent=15 // pred_fallthru
          _
        // Predicated region
        $region25: #{tpu_custom_call.1} parent=15 // pred_check
          %p168 = pneg %p98
        $region26: #{tpu_custom_call.1} parent=15 // pred_check_branch
          %170 = sbr.rel (%p168) target = $region28
        $region27: #{tpu_custom_call.1} parent=15 // pred_region
          %p171 = scmp.lt.s32.totalorder %s19, 1
          %s172 = scalar_select %p171, %s19, 1
          %s173 = smul.addr %s172, 112
          %s174 = smul.addr %s173, 4
          %s175 = scalar_lea.vmem %s2, %s174
        $region28: #{tpu_custom_call.1} parent=15 // pred_fallthru
          _
      $region16: #{tpu_custom_call.1} parent=5 // pred_fallthru
        _
      %p176 = scmp.le.s32.totalorder 1, %s12
      %p177 = scmp.lt.s32.totalorder %s12, 3
      %p178 = pnand %p176, %p177
      %p179 = pneg %p178
      // Predicated region
      $region29: #{tpu_custom_call.1} parent=5 // pred_check
        _
      $region30: #{tpu_custom_call.1} parent=5 // pred_check_branch
        %181 = sbr.rel (%p178) target = $region32
      $region31: #{tpu_custom_call.1} parent=5 // pred_region
        %s182 = ssub.s32 %s12, 1
        %p183 = scmp.lt.s32.totalorder %s21, 1
        %s184 = scalar_select %p183, %s21, 1
        %s185 = smul.addr %s184, 8
        %s186 = scalar_lea.vmem %s0, %s185
        %p187 = pneg %p50
        %p188 = pneg %p47
        %p189 = scmp.lt.s32.totalorder %s21, 1
        %s190 = scalar_select %p189, %s21, 1
        %p191 = scmp.lt.s32.totalorder %s22, 0
        %s192 = scalar_select %p191, %s22, 0
        %s193 = sadd.s32 %s192, %s190
        %s194 = smul.addr %s193, 4
        %s195 = scalar_lea.vmem %s1, %s194
        %p196 = pneg %p78
        %p197 = pneg %p75
        %p198 = scmp.lt.s32.totalorder %s21, 1
        %s199 = scalar_select %p198, %s21, 1
        %s200 = smul.addr %s199, 112
        %s201 = smul.addr %s200, 4
        %s202 = scalar_lea.vmem %s2, %s201
        %p203 = pneg %p104
        %p204 = pneg %p101
        %p205 = pneg %p132
        %p206 = pneg %p129
        %s207 = sand.u32 %s119, 1
        %s208 = scalar_lea.sflag [#allocation3], %s207
        %s209 = sand.u32 %s119, 1
        %s210 = smul.addr %s209, 8
        %s211 = scalar_lea.vmem [#allocation2], %s210
        %p212 = scmp.lt.s32.totalorder %s21, 1
        %s213 = scalar_select %p212, %s21, 1
        %s214 = smul.addr %s213, 8
        %s215 = scalar_lea.vmem %s0, %s214
        %p216 = scmp.lt.s32.totalorder %s21, 1
        %s217 = scalar_select %p216, %s21, 1
        %p218 = scmp.lt.s32.totalorder %s22, 0
        %s219 = scalar_select %p218, %s22, 0
        %s220 = sadd.s32 %s219, %s217
        %s221 = smul.addr %s220, 4
        %s222 = scalar_lea.vmem %s1, %s221
        %p223 = scmp.lt.s32.totalorder %s21, 1
        %s224 = scalar_select %p223, %s21, 1
        %s225 = smul.addr %s224, 112
        %s226 = smul.addr %s225, 4
        %s227 = scalar_lea.vmem %s2, %s226
        %v229 = vld [vmem:[%s215] sm:$0xff]
        %v230 = vld [vmem:[%s222] sm:$0x7]
        %v231 = vld [vmem:[%s227] sm:$0xf]
        %v232 = vld [vmem:[%s227 + $0x4] sm:$0xf]
        %v233 = vld [vmem:[%s227 + $0x8] sm:$0xf]
        %v234 = vld [vmem:[%s227 + $0xc] sm:$0xf]
        %v235 = vld [vmem:[%s227 + $0x10] sm:$0xf]
        %v236 = vld [vmem:[%s227 + $0x14] sm:$0xf]
        %v237 = vld [vmem:[%s227 + $0x18] sm:$0xf]
        %v238 = vld [vmem:[%s227 + $0x1c] sm:$0xf]
        %v239 = vld [vmem:[%s227 + $0x20] sm:$0xf]
        %v240 = vld [vmem:[%s227 + $0x24] sm:$0xf]
        %v241 = vld [vmem:[%s227 + $0x28] sm:$0xf]
        %v242 = vld [vmem:[%s227 + $0x2c] sm:$0xf]
        %v243 = vld [vmem:[%s227 + $0x30] sm:$0xf]
        %v244 = vld [vmem:[%s227 + $0x34] sm:$0xf]
        %v245 = vld [vmem:[%s227 + $0x38] sm:$0xf]
        %v246 = vld [vmem:[%s227 + $0x3c] sm:$0xf]
        %v247 = vld [vmem:[%s227 + $0x40] sm:$0xf]
        %v248 = vld [vmem:[%s227 + $0x44] sm:$0xf]
        %v249 = vld [vmem:[%s227 + $0x48] sm:$0xf]
        %v250 = vld [vmem:[%s227 + $0x4c] sm:$0xf]
        %v251 = vld [vmem:[%s227 + $0x50] sm:$0xf]
        %v252 = vld [vmem:[%s227 + $0x54] sm:$0xf]
        %v253 = vld [vmem:[%s227 + $0x58] sm:$0xf]
        %v254 = vld [vmem:[%s227 + $0x5c] sm:$0xf]
        %v255 = vld [vmem:[%s227 + $0x60] sm:$0xf]
        %v256 = vld [vmem:[%s227 + $0x64] sm:$0xf]
        %v257 = vld [vmem:[%s227 + $0x68] sm:$0xf]
        %v258 = vld [vmem:[%s227 + $0x6c] sm:$0xf]
        %v259 = vld [vmem:[%s227 + $0x70] sm:$0xf]
        %v260 = vld [vmem:[%s227 + $0x74] sm:$0xf]
        %v261 = vld [vmem:[%s227 + $0x78] sm:$0xf]
        %v262 = vld [vmem:[%s227 + $0x7c] sm:$0xf]
        %v263 = vld [vmem:[%s227 + $0x80] sm:$0xf]
        %v264 = vld [vmem:[%s227 + $0x84] sm:$0xf]
        %v265 = vld [vmem:[%s227 + $0x88] sm:$0xf]
        %v266 = vld [vmem:[%s227 + $0x8c] sm:$0xf]
        %v267 = vld [vmem:[%s227 + $0x90] sm:$0xf]
        %v268 = vld [vmem:[%s227 + $0x94] sm:$0xf]
        %v269 = vld [vmem:[%s227 + $0x98] sm:$0xf]
        %v270 = vld [vmem:[%s227 + $0x9c] sm:$0xf]
        %v271 = vld [vmem:[%s227 + $0xa0] sm:$0xf]
        %v272 = vld [vmem:[%s227 + $0xa4] sm:$0xf]
        %v273 = vld [vmem:[%s227 + $0xa8] sm:$0xf]
        %v274 = vld [vmem:[%s227 + $0xac] sm:$0xf]
        %v275 = vld [vmem:[%s227 + $0xb0] sm:$0xf]
        %v276 = vld [vmem:[%s227 + $0xb4] sm:$0xf]
        %v277 = vld [vmem:[%s227 + $0xb8] sm:$0xf]
        %v278 = vld [vmem:[%s227 + $0xbc] sm:$0xf]
        %v279 = vld [vmem:[%s227 + $0xc0] sm:$0xf]
        %v280 = vld [vmem:[%s227 + $0xc4] sm:$0xf]
        %v281 = vld [vmem:[%s227 + $0xc8] sm:$0xf]
        %v282 = vld [vmem:[%s227 + $0xcc] sm:$0xf]
        %v283 = vld [vmem:[%s227 + $0xd0] sm:$0xf]
        %v284 = vld [vmem:[%s227 + $0xd4] sm:$0xf]
        %v285 = vld [vmem:[%s227 + $0xd8] sm:$0xf]
        %v286 = vld [vmem:[%s227 + $0xdc] sm:$0xf]
        %v287 = vld [vmem:[%s227 + $0xe0] sm:$0xf]
        %v288 = vld [vmem:[%s227 + $0xe4] sm:$0xf]
        %v289 = vld [vmem:[%s227 + $0xe8] sm:$0xf]
        %v290 = vld [vmem:[%s227 + $0xec] sm:$0xf]
        %v291 = vld [vmem:[%s227 + $0xf0] sm:$0xf]
        %v292 = vld [vmem:[%s227 + $0xf4] sm:$0xf]
        %v293 = vld [vmem:[%s227 + $0xf8] sm:$0xf]
        %v294 = vld [vmem:[%s227 + $0xfc] sm:$0xf]
        %v295 = vld [vmem:[%s227 + $0x100] sm:$0xf]
        %v296 = vld [vmem:[%s227 + $0x104] sm:$0xf]
        %v297 = vld [vmem:[%s227 + $0x108] sm:$0xf]
        %v298 = vld [vmem:[%s227 + $0x10c] sm:$0xf]
        %v299 = vld [vmem:[%s227 + $0x110] sm:$0xf]
        %v300 = vld [vmem:[%s227 + $0x114] sm:$0xf]
        %v301 = vld [vmem:[%s227 + $0x118] sm:$0xf]
        %v302 = vld [vmem:[%s227 + $0x11c] sm:$0xf]
        %v303 = vld [vmem:[%s227 + $0x120] sm:$0xf]
        %v304 = vld [vmem:[%s227 + $0x124] sm:$0xf]
        %v305 = vld [vmem:[%s227 + $0x128] sm:$0xf]
        %v306 = vld [vmem:[%s227 + $0x12c] sm:$0xf]
        %v307 = vld [vmem:[%s227 + $0x130] sm:$0xf]
        %v308 = vld [vmem:[%s227 + $0x134] sm:$0xf]
        %v309 = vld [vmem:[%s227 + $0x138] sm:$0xf]
        %v310 = vld [vmem:[%s227 + $0x13c] sm:$0xf]
        %v311 = vld [vmem:[%s227 + $0x140] sm:$0xf]
        %v312 = vld [vmem:[%s227 + $0x144] sm:$0xf]
        %v313 = vld [vmem:[%s227 + $0x148] sm:$0xf]
        %v314 = vld [vmem:[%s227 + $0x14c] sm:$0xf]
        %v315 = vld [vmem:[%s227 + $0x150] sm:$0xf]
        %v316 = vld [vmem:[%s227 + $0x154] sm:$0xf]
        %v317 = vld [vmem:[%s227 + $0x158] sm:$0xf]
        %v318 = vld [vmem:[%s227 + $0x15c] sm:$0xf]
        %v319 = vld [vmem:[%s227 + $0x160] sm:$0xf]
        %v320 = vld [vmem:[%s227 + $0x164] sm:$0xf]
        %v321 = vld [vmem:[%s227 + $0x168] sm:$0xf]
        %v322 = vld [vmem:[%s227 + $0x16c] sm:$0xf]
        %v323 = vld [vmem:[%s227 + $0x170] sm:$0xf]
        %v324 = vld [vmem:[%s227 + $0x174] sm:$0xf]
        %v325 = vld [vmem:[%s227 + $0x178] sm:$0xf]
        %v326 = vld [vmem:[%s227 + $0x17c] sm:$0xf]
        %v327 = vld [vmem:[%s227 + $0x180] sm:$0xf]
        %v328 = vld [vmem:[%s227 + $0x184] sm:$0xf]
        %v329 = vld [vmem:[%s227 + $0x188] sm:$0xf]
        %v330 = vld [vmem:[%s227 + $0x18c] sm:$0xf]
        %v331 = vld [vmem:[%s227 + $0x190] sm:$0xf]
        %v332 = vld [vmem:[%s227 + $0x194] sm:$0xf]
        %v333 = vld [vmem:[%s227 + $0x198] sm:$0xf]
        %v334 = vld [vmem:[%s227 + $0x19c] sm:$0xf]
        %v335 = vld [vmem:[%s227 + $0x1a0] sm:$0xf]
        %v336 = vld [vmem:[%s227 + $0x1a4] sm:$0xf]
        %v337 = vld [vmem:[%s227 + $0x1a8] sm:$0xf]
        %v338 = vld [vmem:[%s227 + $0x1ac] sm:$0xf]
        %v339 = vld [vmem:[%s227 + $0x1b0] sm:$0xf]
        %v340 = vld [vmem:[%s227 + $0x1b4] sm:$0xf]
        %v341 = vld [vmem:[%s227 + $0x1b8] sm:$0xf]
        %v342 = vld [vmem:[%s227 + $0x1bc] sm:$0xf]
        %344 = vset.pattern.permute.xlu0 0
        %345 = vperm.xlu0 %344, %v229
        %v346 = vpop.permute.xlu0 %345
        %v348 = vperm.slane %v230, 0
        %v349 = vmul.f32 %v346, %v348
        %350 = vset.pattern.permute.xlu0 1
        %351 = vperm.xlu0 %350, %v229
        %v352 = vpop.permute.xlu0 %351
        %v354 = vperm.slane %v230, 1
        %v355 = vmul.f32 %v352, %v354
        %v356 = vadd.f32 %v349, %v355
        %357 = vset.pattern.permute.xlu0 2
        %358 = vperm.xlu0 %357, %v229
        %v359 = vpop.permute.xlu0 %358
        %v361 = vperm.slane %v230, 2
        %v362 = vmul.f32 %v359, %v361
        %v363 = vadd.f32 %v356, %v362
        %364 = vset.pattern.permute.xlu0 3
        %365 = vperm.xlu0 %364, %v229
        %v366 = vpop.permute.xlu0 %365
        %v368 = vadd.f32 %v363, %v366
        %v369 = vlaneseq
        %v370 = vshrl.u32 %v369, 7
        %v371 = vadd.s32 %v370, 8
        %v372 = vadd.s32 %v370, 16
        %v373 = vadd.s32 %v370, 24
        %v374 = vadd.s32 %v370, 32
        %v375 = vadd.s32 %v370, 40
        %v376 = vadd.s32 %v370, 48
        %v377 = vadd.s32 %v370, 56
        %v378 = vadd.s32 %v370, 64
        %v379 = vadd.s32 %v370, 72
        %v380 = vadd.s32 %v370, 80
        %v381 = vadd.s32 %v370, 88
        %v382 = vadd.s32 %v370, 96
        %v383 = vadd.s32 %v370, 104
        %v384 = vadd.s32 %v370, 112
        %v385 = vadd.s32 %v370, 120
        %v386 = vperm.slane %v368, 4
        %v387 = vmul.f32 %v346, %v386
        %v388 = vsub.f32 %v230, %v387
        %v389 = vadd.f32 %v388, 0.5
        %v390 = vmul.f32 %v389, 16.0
        %v391 = vcvt.f32.s32.to.zero.pseudo %v390
        %vm392 = vcmp.gt.s32.totalorder %v391, 0
        %v393 = vsel %vm392, %v391, 0
        %vm394 = vcmp.lt.s32.totalorder %v393, 15
        %v395 = vsel %vm394, %v393, 15
        %v396 = vmul.u32 %v395, 256
        %v397 = vmul.u32 %v395, 16
        %v398 = vrot.slane %v397, 1
        %v399 = vadd.s32 %v396, %v398
        %v400 = vrot.slane %v395, 2
        %v401 = vadd.s32 %v399, %v400
        %v402 = vshra.s32 %v401, 7
        %v403 = vperm.slane %v402, 0
        %vm404 = vcmp.eq.s32.totalorder %v403, %v370
        %vm405 = vcmp.eq.s32.totalorder %v403, %v371
        %vm406 = vcmp.eq.s32.totalorder %v403, %v372
        %vm407 = vcmp.eq.s32.totalorder %v403, %v373
        %v408 = vsel %vm404, 1, 0
        %v409 = vsel %vm405, 1, 0
        %v410 = vsel %vm406, 1, 0
        %v411 = vsel %vm407, 1, 0
        %v412 = vcvt.s32.f32 %v408
        %v413 = vcvt.s32.f32 %v409
        %v414 = vcvt.s32.f32 %v410
        %v415 = vcvt.s32.f32 %v411
        %v416 = vpack.c.bf16 %v413, %v412
        %v417 = vpack.c.bf16 %v415, %v414
        %v418 = vand.u32 %v401, 127
        %v419 = vperm.slane %v418, 0
        %vm420 = vcmp.eq.s32.totalorder %v419, %v370
        %vm421 = vcmp.eq.s32.totalorder %v419, %v371
        %vm422 = vcmp.eq.s32.totalorder %v419, %v372
        %vm423 = vcmp.eq.s32.totalorder %v419, %v373
        %vm424 = vcmp.eq.s32.totalorder %v419, %v374
        %vm425 = vcmp.eq.s32.totalorder %v419, %v375
        %vm426 = vcmp.eq.s32.totalorder %v419, %v376
        %vm427 = vcmp.eq.s32.totalorder %v419, %v377
        %vm428 = vcmp.eq.s32.totalorder %v419, %v378
        %vm429 = vcmp.eq.s32.totalorder %v419, %v379
        %vm430 = vcmp.eq.s32.totalorder %v419, %v380
        %vm431 = vcmp.eq.s32.totalorder %v419, %v381
        %vm432 = vcmp.eq.s32.totalorder %v419, %v382
        %vm433 = vcmp.eq.s32.totalorder %v419, %v383
        %vm434 = vcmp.eq.s32.totalorder %v419, %v384
        %vm435 = vcmp.eq.s32.totalorder %v419, %v385
        %v436 = vsel %vm420, 1, 0
        %v437 = vsel %vm421, 1, 0
        %v438 = vsel %vm422, 1, 0
        %v439 = vsel %vm423, 1, 0
        %v440 = vsel %vm424, 1, 0
        %v441 = vsel %vm425, 1, 0
        %v442 = vsel %vm426, 1, 0
        %v443 = vsel %vm427, 1, 0
        %v444 = vsel %vm428, 1, 0
        %v445 = vsel %vm429, 1, 0
        %v446 = vsel %vm430, 1, 0
        %v447 = vsel %vm431, 1, 0
        %v448 = vsel %vm432, 1, 0
        %v449 = vsel %vm433, 1, 0
        %v450 = vsel %vm434, 1, 0
        %v451 = vsel %vm435, 1, 0
        %v452 = vcvt.s32.f32 %v436
        %v453 = vcvt.s32.f32 %v437
        %v454 = vcvt.s32.f32 %v438
        %v455 = vcvt.s32.f32 %v439
        %v456 = vcvt.s32.f32 %v440
        %v457 = vcvt.s32.f32 %v441
        %v458 = vcvt.s32.f32 %v442
        %v459 = vcvt.s32.f32 %v443
        %v460 = vcvt.s32.f32 %v444
        %v461 = vcvt.s32.f32 %v445
        %v462 = vcvt.s32.f32 %v446
        %v463 = vcvt.s32.f32 %v447
        %v464 = vcvt.s32.f32 %v448
        %v465 = vcvt.s32.f32 %v449
        %v466 = vcvt.s32.f32 %v450
        %v467 = vcvt.s32.f32 %v451
        %v580 = vunpack.c.l.b16 %v231
        %v581 = vunpack.c.l.b16 %v232
        %v582 = vunpack.c.l.b16 %v233
        %v583 = vunpack.c.l.b16 %v234
        %v584 = vunpack.c.l.b16 %v235
        %v585 = vunpack.c.l.b16 %v236
        %v586 = vunpack.c.l.b16 %v237
        %v587 = vunpack.c.l.b16 %v238
        %v588 = vunpack.c.l.b16 %v239
        %v589 = vunpack.c.l.b16 %v240
        %v590 = vunpack.c.l.b16 %v241
        %v591 = vunpack.c.l.b16 %v242
        %v592 = vunpack.c.l.b16 %v243
        %v593 = vunpack.c.l.b16 %v244
        %v594 = vunpack.c.l.b16 %v245
        %v595 = vunpack.c.l.b16 %v246
        %v596 = vunpack.c.l.b16 %v247
        %v597 = vunpack.c.l.b16 %v248
        %v598 = vunpack.c.l.b16 %v249
        %v599 = vunpack.c.l.b16 %v250
        %v600 = vunpack.c.l.b16 %v251
        %v601 = vunpack.c.l.b16 %v252
        %v602 = vunpack.c.l.b16 %v253
        %v603 = vunpack.c.l.b16 %v254
        %v604 = vunpack.c.l.b16 %v255
        %v605 = vunpack.c.l.b16 %v256
        %v606 = vunpack.c.l.b16 %v257
        %v607 = vunpack.c.l.b16 %v258
        %v608 = vunpack.c.l.b16 %v259
        %v609 = vunpack.c.l.b16 %v260
        %v610 = vunpack.c.l.b16 %v261
        %v611 = vunpack.c.l.b16 %v262
        %v612 = vunpack.c.l.b16 %v263
        %v613 = vunpack.c.l.b16 %v264
        %v614 = vunpack.c.l.b16 %v265
        %v615 = vunpack.c.l.b16 %v266
        %v616 = vunpack.c.l.b16 %v267
        %v617 = vunpack.c.l.b16 %v268
        %v618 = vunpack.c.l.b16 %v269
        %v619 = vunpack.c.l.b16 %v270
        %v620 = vunpack.c.l.b16 %v271
        %v621 = vunpack.c.l.b16 %v272
        %v622 = vunpack.c.l.b16 %v273
        %v623 = vunpack.c.l.b16 %v274
        %v624 = vunpack.c.l.b16 %v275
        %v625 = vunpack.c.l.b16 %v276
        %v626 = vunpack.c.l.b16 %v277
        %v627 = vunpack.c.l.b16 %v278
        %v628 = vunpack.c.l.b16 %v279
        %v629 = vunpack.c.l.b16 %v280
        %v630 = vunpack.c.l.b16 %v281
        %v631 = vunpack.c.l.b16 %v282
        %v632 = vunpack.c.l.b16 %v283
        %v633 = vunpack.c.l.b16 %v284
        %v634 = vunpack.c.l.b16 %v285
        %v635 = vunpack.c.l.b16 %v286
        %v636 = vunpack.c.l.b16 %v287
        %v637 = vunpack.c.l.b16 %v288
        %v638 = vunpack.c.l.b16 %v289
        %v639 = vunpack.c.l.b16 %v290
        %v640 = vunpack.c.l.b16 %v291
        %v641 = vunpack.c.l.b16 %v292
        %v642 = vunpack.c.l.b16 %v293
        %v643 = vunpack.c.l.b16 %v294
        %v644 = vunpack.c.l.b16 %v295
        %v645 = vunpack.c.l.b16 %v296
        %v646 = vunpack.c.l.b16 %v297
        %v647 = vunpack.c.l.b16 %v298
        %v648 = vunpack.c.l.b16 %v299
        %v649 = vunpack.c.l.b16 %v300
        %v650 = vunpack.c.l.b16 %v301
        %v651 = vunpack.c.l.b16 %v302
        %v652 = vunpack.c.l.b16 %v303
        %v653 = vunpack.c.l.b16 %v304
        %v654 = vunpack.c.l.b16 %v305
        %v655 = vunpack.c.l.b16 %v306
        %v656 = vunpack.c.l.b16 %v307
        %v657 = vunpack.c.l.b16 %v308
        %v658 = vunpack.c.l.b16 %v309
        %v659 = vunpack.c.l.b16 %v310
        %v660 = vunpack.c.l.b16 %v311
        %v661 = vunpack.c.l.b16 %v312
        %v662 = vunpack.c.l.b16 %v313
        %v663 = vunpack.c.l.b16 %v314
        %v664 = vunpack.c.l.b16 %v315
        %v665 = vunpack.c.l.b16 %v316
        %v666 = vunpack.c.l.b16 %v317
        %v667 = vunpack.c.l.b16 %v318
        %v668 = vunpack.c.l.b16 %v319
        %v669 = vunpack.c.l.b16 %v320
        %v670 = vunpack.c.l.b16 %v321
        %v671 = vunpack.c.l.b16 %v322
        %v672 = vunpack.c.l.b16 %v323
        %v673 = vunpack.c.l.b16 %v324
        %v674 = vunpack.c.l.b16 %v325
        %v675 = vunpack.c.l.b16 %v326
        %v676 = vunpack.c.l.b16 %v327
        %v677 = vunpack.c.l.b16 %v328
        %v678 = vunpack.c.l.b16 %v329
        %v679 = vunpack.c.l.b16 %v330
        %v680 = vunpack.c.l.b16 %v331
        %v681 = vunpack.c.l.b16 %v332
        %v682 = vunpack.c.l.b16 %v333
        %v683 = vunpack.c.l.b16 %v334
        %v684 = vunpack.c.l.b16 %v335
        %v685 = vunpack.c.l.b16 %v336
        %v686 = vunpack.c.l.b16 %v337
        %v687 = vunpack.c.l.b16 %v338
        %v688 = vunpack.c.l.b16 %v339
        %v689 = vunpack.c.l.b16 %v340
        %v690 = vunpack.c.l.b16 %v341
        %v691 = vunpack.c.l.b16 %v342
        %v692 = vpack.c.b16 %v581, %v580
        %v693 = vpack.c.b16 %v583, %v582
        %v694 = vpack.c.b16 %v585, %v584
        %v695 = vpack.c.b16 %v587, %v586
        %v696 = vpack.c.b16 %v589, %v588
        %v697 = vpack.c.b16 %v591, %v590
        %v698 = vpack.c.b16 %v593, %v592
        %v699 = vpack.c.b16 %v595, %v594
        %v700 = vpack.c.b16 %v597, %v596
        %v701 = vpack.c.b16 %v599, %v598
        %v702 = vpack.c.b16 %v601, %v600
        %v703 = vpack.c.b16 %v603, %v602
        %v704 = vpack.c.b16 %v605, %v604
        %v705 = vpack.c.b16 %v607, %v606
        %v706 = vpack.c.b16 %v609, %v608
        %v707 = vpack.c.b16 %v611, %v610
        %v708 = vpack.c.b16 %v613, %v612
        %v709 = vpack.c.b16 %v615, %v614
        %v710 = vpack.c.b16 %v617, %v616
        %v711 = vpack.c.b16 %v619, %v618
        %v712 = vpack.c.b16 %v621, %v620
        %v713 = vpack.c.b16 %v623, %v622
        %v714 = vpack.c.b16 %v625, %v624
        %v715 = vpack.c.b16 %v627, %v626
        %v716 = vpack.c.b16 %v629, %v628
        %v717 = vpack.c.b16 %v631, %v630
        %v718 = vpack.c.b16 %v633, %v632
        %v719 = vpack.c.b16 %v635, %v634
        %v720 = vpack.c.b16 %v637, %v636
        %v721 = vpack.c.b16 %v639, %v638
        %v722 = vpack.c.b16 %v641, %v640
        %v723 = vpack.c.b16 %v643, %v642
        %v724 = vpack.c.b16 %v645, %v644
        %v725 = vpack.c.b16 %v647, %v646
        %v726 = vpack.c.b16 %v649, %v648
        %v727 = vpack.c.b16 %v651, %v650
        %v728 = vpack.c.b16 %v653, %v652
        %v729 = vpack.c.b16 %v655, %v654
        %v730 = vpack.c.b16 %v657, %v656
        %v731 = vpack.c.b16 %v659, %v658
        %v732 = vpack.c.b16 %v661, %v660
        %v733 = vpack.c.b16 %v663, %v662
        %v734 = vpack.c.b16 %v665, %v664
        %v735 = vpack.c.b16 %v667, %v666
        %v736 = vpack.c.b16 %v669, %v668
        %v737 = vpack.c.b16 %v671, %v670
        %v738 = vpack.c.b16 %v673, %v672
        %v739 = vpack.c.b16 %v675, %v674
        %v740 = vpack.c.b16 %v677, %v676
        %v741 = vpack.c.b16 %v679, %v678
        %v742 = vpack.c.b16 %v681, %v680
        %v743 = vpack.c.b16 %v683, %v682
        %v744 = vpack.c.b16 %v685, %v684
        %v745 = vpack.c.b16 %v687, %v686
        %v746 = vpack.c.b16 %v689, %v688
        %v747 = vpack.c.b16 %v691, %v690
        %vm748 = vcmask 261120
        %v750 = vsel %vm748, %v692, 0
        %v753 = vsel %vm748, %v693, 0
        %v756 = vsel %vm748, %v694, 0
        %v759 = vsel %vm748, %v695, 0
        %v762 = vsel %vm748, %v696, 0
        %v765 = vsel %vm748, %v697, 0
        %v768 = vsel %vm748, %v698, 0
        %v771 = vsel %vm748, %v699, 0
        %v774 = vsel %vm748, %v700, 0
        %v777 = vsel %vm748, %v701, 0
        %v780 = vsel %vm748, %v702, 0
        %v783 = vsel %vm748, %v703, 0
        %v786 = vsel %vm748, %v704, 0
        %v789 = vsel %vm748, %v705, 0
        %v792 = vsel %vm748, %v706, 0
        %v795 = vsel %vm748, %v707, 0
        %v798 = vsel %vm748, %v708, 0
        %v801 = vsel %vm748, %v709, 0
        %v804 = vsel %vm748, %v710, 0
        %v807 = vsel %vm748, %v711, 0
        %v810 = vsel %vm748, %v712, 0
        %v813 = vsel %vm748, %v713, 0
        %v816 = vsel %vm748, %v714, 0
        %v819 = vsel %vm748, %v715, 0
        %v822 = vsel %vm748, %v716, 0
        %v825 = vsel %vm748, %v717, 0
        %v828 = vsel %vm748, %v718, 0
        %v831 = vsel %vm748, %v719, 0
        %v834 = vsel %vm748, %v720, 0
        %v837 = vsel %vm748, %v721, 0
        %v840 = vsel %vm748, %v722, 0
        %v843 = vsel %vm748, %v723, 0
        %v846 = vsel %vm748, %v724, 0
        %v849 = vsel %vm748, %v725, 0
        %v852 = vsel %vm748, %v726, 0
        %v855 = vsel %vm748, %v727, 0
        %v858 = vsel %vm748, %v728, 0
        %v861 = vsel %vm748, %v729, 0
        %v864 = vsel %vm748, %v730, 0
        %v867 = vsel %vm748, %v731, 0
        %v870 = vsel %vm748, %v732, 0
        %v873 = vsel %vm748, %v733, 0
        %v876 = vsel %vm748, %v734, 0
        %v879 = vsel %vm748, %v735, 0
        %v882 = vsel %vm748, %v736, 0
        %v885 = vsel %vm748, %v737, 0
        %v888 = vsel %vm748, %v738, 0
        %v891 = vsel %vm748, %v739, 0
        %v894 = vsel %vm748, %v740, 0
        %v897 = vsel %vm748, %v741, 0
        %v900 = vsel %vm748, %v742, 0
        %v903 = vsel %vm748, %v743, 0
        %v906 = vsel %vm748, %v744, 0
        %v909 = vsel %vm748, %v745, 0
        %v912 = vsel %vm748, %v746, 0
        %v915 = vsel %vm748, %v747, 0
        %917 = vmatpush.bf16.msra.mxu0 0
        %918 = vmatpush.bf16.msra.mxu0 0
        %919 = vmatpush.bf16.msra.mxu0 0
        %920 = vmatpush.bf16.msra.mxu0 0
        %921 = vmatpush.bf16.msra.mxu0 0
        %922 = vmatpush.bf16.msra.mxu0 0
        %923 = vmatpush.bf16.msra.mxu0 %v417
        %924 = vmatpush.bf16.msra.mxu0 %v416
        %925 = vmatmul.bf16.gmra.mxu0 %v750
        %v926 = vpop.f32.mrf.mxu0
        %v927 = vadd.f32 0.0, %v926
        %v928 = vpop.f32.mrf.mxu0
        %v929 = vadd.f32 0.0, %v928
        %930 = vmatmul.bf16.gmra.mxu0 %v753
        %v931 = vpop.f32.mrf.mxu0
        %v932 = vadd.f32 0.0, %v931
        %v933 = vpop.f32.mrf.mxu0
        %v934 = vadd.f32 0.0, %v933
        %935 = vmatmul.bf16.gmra.mxu0 %v756
        %v936 = vpop.f32.mrf.mxu0
        %v937 = vadd.f32 0.0, %v936
        %v938 = vpop.f32.mrf.mxu0
        %v939 = vadd.f32 0.0, %v938
        %940 = vmatmul.bf16.gmra.mxu0 %v759
        %v941 = vpop.f32.mrf.mxu0
        %v942 = vadd.f32 0.0, %v941
        %v943 = vpop.f32.mrf.mxu0
        %v944 = vadd.f32 0.0, %v943
        %945 = vmatmul.bf16.gmra.mxu0 %v762
        %v946 = vpop.f32.mrf.mxu0
        %v947 = vadd.f32 0.0, %v946
        %v948 = vpop.f32.mrf.mxu0
        %v949 = vadd.f32 0.0, %v948
        %950 = vmatmul.bf16.gmra.mxu0 %v765
        %v951 = vpop.f32.mrf.mxu0
        %v952 = vadd.f32 0.0, %v951
        %v953 = vpop.f32.mrf.mxu0
        %v954 = vadd.f32 0.0, %v953
        %955 = vmatmul.bf16.gmra.mxu0 %v768
        %v956 = vpop.f32.mrf.mxu0
        %v957 = vadd.f32 0.0, %v956
        %v958 = vpop.f32.mrf.mxu0
        %v959 = vadd.f32 0.0, %v958
        %960 = vmatmul.bf16.gmra.mxu0 %v771
        %v961 = vpop.f32.mrf.mxu0
        %v962 = vadd.f32 0.0, %v961
        %v963 = vpop.f32.mrf.mxu0
        %v964 = vadd.f32 0.0, %v963
        %965 = vmatmul.bf16.gmra.mxu0 %v774
        %v966 = vpop.f32.mrf.mxu0
        %v967 = vadd.f32 0.0, %v966
        %v968 = vpop.f32.mrf.mxu0
        %v969 = vadd.f32 0.0, %v968
        %970 = vmatmul.bf16.gmra.mxu0 %v777
        %v971 = vpop.f32.mrf.mxu0
        %v972 = vadd.f32 0.0, %v971
        %v973 = vpop.f32.mrf.mxu0
        %v974 = vadd.f32 0.0, %v973
        %975 = vmatmul.bf16.gmra.mxu0 %v780
        %v976 = vpop.f32.mrf.mxu0
        %v977 = vadd.f32 0.0, %v976
        %v978 = vpop.f32.mrf.mxu0
        %v979 = vadd.f32 0.0, %v978
        %980 = vmatmul.bf16.gmra.mxu0 %v783
        %v981 = vpop.f32.mrf.mxu0
        %v982 = vadd.f32 0.0, %v981
        %v983 = vpop.f32.mrf.mxu0
        %v984 = vadd.f32 0.0, %v983
        %985 = vmatmul.bf16.gmra.mxu0 %v786
        %v986 = vpop.f32.mrf.mxu0
        %v987 = vadd.f32 0.0, %v986
        %v988 = vpop.f32.mrf.mxu0
        %v989 = vadd.f32 0.0, %v988
        %990 = vmatmul.bf16.gmra.mxu0 %v789
        %v991 = vpop.f32.mrf.mxu0
        %v992 = vadd.f32 0.0, %v991
        %v993 = vpop.f32.mrf.mxu0
        %v994 = vadd.f32 0.0, %v993
        %995 = vmatmul.bf16.gmra.mxu0 %v792
        %v996 = vpop.f32.mrf.mxu0
        %v997 = vadd.f32 0.0, %v996
        %v998 = vpop.f32.mrf.mxu0
        %v999 = vadd.f32 0.0, %v998
        %1000 = vmatmul.bf16.gmra.mxu0 %v795
        %v1001 = vpop.f32.mrf.mxu0
        %v1002 = vadd.f32 0.0, %v1001
        %v1003 = vpop.f32.mrf.mxu0
        %v1004 = vadd.f32 0.0, %v1003
        %1005 = vmatmul.bf16.gmra.mxu0 %v798
        %v1006 = vpop.f32.mrf.mxu0
        %v1007 = vadd.f32 0.0, %v1006
        %v1008 = vpop.f32.mrf.mxu0
        %v1009 = vadd.f32 0.0, %v1008
        %1010 = vmatmul.bf16.gmra.mxu0 %v801
        %v1011 = vpop.f32.mrf.mxu0
        %v1012 = vadd.f32 0.0, %v1011
        %v1013 = vpop.f32.mrf.mxu0
        %v1014 = vadd.f32 0.0, %v1013
        %1015 = vmatmul.bf16.gmra.mxu0 %v804
        %v1016 = vpop.f32.mrf.mxu0
        %v1017 = vadd.f32 0.0, %v1016
        %v1018 = vpop.f32.mrf.mxu0
        %v1019 = vadd.f32 0.0, %v1018
        %1020 = vmatmul.bf16.gmra.mxu0 %v807
        %v1021 = vpop.f32.mrf.mxu0
        %v1022 = vadd.f32 0.0, %v1021
        %v1023 = vpop.f32.mrf.mxu0
        %v1024 = vadd.f32 0.0, %v1023
        %1025 = vmatmul.bf16.gmra.mxu0 %v810
        %v1026 = vpop.f32.mrf.mxu0
        %v1027 = vadd.f32 0.0, %v1026
        %v1028 = vpop.f32.mrf.mxu0
        %v1029 = vadd.f32 0.0, %v1028
        %1030 = vmatmul.bf16.gmra.mxu0 %v813
        %v1031 = vpop.f32.mrf.mxu0
        %v1032 = vadd.f32 0.0, %v1031
        %v1033 = vpop.f32.mrf.mxu0
        %v1034 = vadd.f32 0.0, %v1033
        %1035 = vmatmul.bf16.gmra.mxu0 %v816
        %v1036 = vpop.f32.mrf.mxu0
        %v1037 = vadd.f32 0.0, %v1036
        %v1038 = vpop.f32.mrf.mxu0
        %v1039 = vadd.f32 0.0, %v1038
        %1040 = vmatmul.bf16.gmra.mxu0 %v819
        %v1041 = vpop.f32.mrf.mxu0
        %v1042 = vadd.f32 0.0, %v1041
        %v1043 = vpop.f32.mrf.mxu0
        %v1044 = vadd.f32 0.0, %v1043
        %1045 = vmatmul.bf16.gmra.mxu0 %v822
        %v1046 = vpop.f32.mrf.mxu0
        %v1047 = vadd.f32 0.0, %v1046
        %v1048 = vpop.f32.mrf.mxu0
        %v1049 = vadd.f32 0.0, %v1048
        %1050 = vmatmul.bf16.gmra.mxu0 %v825
        %v1051 = vpop.f32.mrf.mxu0
        %v1052 = vadd.f32 0.0, %v1051
        %v1053 = vpop.f32.mrf.mxu0
        %v1054 = vadd.f32 0.0, %v1053
        %1055 = vmatmul.bf16.gmra.mxu0 %v828
        %v1056 = vpop.f32.mrf.mxu0
        %v1057 = vadd.f32 0.0, %v1056
        %v1058 = vpop.f32.mrf.mxu0
        %v1059 = vadd.f32 0.0, %v1058
        %1060 = vmatmul.bf16.gmra.mxu0 %v831
        %v1061 = vpop.f32.mrf.mxu0
        %v1062 = vadd.f32 0.0, %v1061
        %v1063 = vpop.f32.mrf.mxu0
        %v1064 = vadd.f32 0.0, %v1063
        %1065 = vmatmul.bf16.gmra.mxu0 %v834
        %v1066 = vpop.f32.mrf.mxu0
        %v1067 = vadd.f32 0.0, %v1066
        %v1068 = vpop.f32.mrf.mxu0
        %v1069 = vadd.f32 0.0, %v1068
        %1070 = vmatmul.bf16.gmra.mxu0 %v837
        %v1071 = vpop.f32.mrf.mxu0
        %v1072 = vadd.f32 0.0, %v1071
        %v1073 = vpop.f32.mrf.mxu0
        %v1074 = vadd.f32 0.0, %v1073
        %1075 = vmatmul.bf16.gmra.mxu0 %v840
        %v1076 = vpop.f32.mrf.mxu0
        %v1077 = vadd.f32 0.0, %v1076
        %v1078 = vpop.f32.mrf.mxu0
        %v1079 = vadd.f32 0.0, %v1078
        %1080 = vmatmul.bf16.gmra.mxu0 %v843
        %v1081 = vpop.f32.mrf.mxu0
        %v1082 = vadd.f32 0.0, %v1081
        %v1083 = vpop.f32.mrf.mxu0
        %v1084 = vadd.f32 0.0, %v1083
        %1085 = vmatmul.bf16.gmra.mxu0 %v846
        %v1086 = vpop.f32.mrf.mxu0
        %v1087 = vadd.f32 0.0, %v1086
        %v1088 = vpop.f32.mrf.mxu0
        %v1089 = vadd.f32 0.0, %v1088
        %1090 = vmatmul.bf16.gmra.mxu0 %v849
        %v1091 = vpop.f32.mrf.mxu0
        %v1092 = vadd.f32 0.0, %v1091
        %v1093 = vpop.f32.mrf.mxu0
        %v1094 = vadd.f32 0.0, %v1093
        %1095 = vmatmul.bf16.gmra.mxu0 %v852
        %v1096 = vpop.f32.mrf.mxu0
        %v1097 = vadd.f32 0.0, %v1096
        %v1098 = vpop.f32.mrf.mxu0
        %v1099 = vadd.f32 0.0, %v1098
        %1100 = vmatmul.bf16.gmra.mxu0 %v855
        %v1101 = vpop.f32.mrf.mxu0
        %v1102 = vadd.f32 0.0, %v1101
        %v1103 = vpop.f32.mrf.mxu0
        %v1104 = vadd.f32 0.0, %v1103
        %1105 = vmatmul.bf16.gmra.mxu0 %v858
        %v1106 = vpop.f32.mrf.mxu0
        %v1107 = vadd.f32 0.0, %v1106
        %v1108 = vpop.f32.mrf.mxu0
        %v1109 = vadd.f32 0.0, %v1108
        %1110 = vmatmul.bf16.gmra.mxu0 %v861
        %v1111 = vpop.f32.mrf.mxu0
        %v1112 = vadd.f32 0.0, %v1111
        %v1113 = vpop.f32.mrf.mxu0
        %v1114 = vadd.f32 0.0, %v1113
        %1115 = vmatmul.bf16.gmra.mxu0 %v864
        %v1116 = vpop.f32.mrf.mxu0
        %v1117 = vadd.f32 0.0, %v1116
        %v1118 = vpop.f32.mrf.mxu0
        %v1119 = vadd.f32 0.0, %v1118
        %1120 = vmatmul.bf16.gmra.mxu0 %v867
        %v1121 = vpop.f32.mrf.mxu0
        %v1122 = vadd.f32 0.0, %v1121
        %v1123 = vpop.f32.mrf.mxu0
        %v1124 = vadd.f32 0.0, %v1123
        %1125 = vmatmul.bf16.gmra.mxu0 %v870
        %v1126 = vpop.f32.mrf.mxu0
        %v1127 = vadd.f32 0.0, %v1126
        %v1128 = vpop.f32.mrf.mxu0
        %v1129 = vadd.f32 0.0, %v1128
        %1130 = vmatmul.bf16.gmra.mxu0 %v873
        %v1131 = vpop.f32.mrf.mxu0
        %v1132 = vadd.f32 0.0, %v1131
        %v1133 = vpop.f32.mrf.mxu0
        %v1134 = vadd.f32 0.0, %v1133
        %1135 = vmatmul.bf16.gmra.mxu0 %v876
        %v1136 = vpop.f32.mrf.mxu0
        %v1137 = vadd.f32 0.0, %v1136
        %v1138 = vpop.f32.mrf.mxu0
        %v1139 = vadd.f32 0.0, %v1138
        %1140 = vmatmul.bf16.gmra.mxu0 %v879
        %v1141 = vpop.f32.mrf.mxu0
        %v1142 = vadd.f32 0.0, %v1141
        %v1143 = vpop.f32.mrf.mxu0
        %v1144 = vadd.f32 0.0, %v1143
        %1145 = vmatmul.bf16.gmra.mxu0 %v882
        %v1146 = vpop.f32.mrf.mxu0
        %v1147 = vadd.f32 0.0, %v1146
        %v1148 = vpop.f32.mrf.mxu0
        %v1149 = vadd.f32 0.0, %v1148
        %1150 = vmatmul.bf16.gmra.mxu0 %v885
        %v1151 = vpop.f32.mrf.mxu0
        %v1152 = vadd.f32 0.0, %v1151
        %v1153 = vpop.f32.mrf.mxu0
        %v1154 = vadd.f32 0.0, %v1153
        %1155 = vmatmul.bf16.gmra.mxu0 %v888
        %v1156 = vpop.f32.mrf.mxu0
        %v1157 = vadd.f32 0.0, %v1156
        %v1158 = vpop.f32.mrf.mxu0
        %v1159 = vadd.f32 0.0, %v1158
        %1160 = vmatmul.bf16.gmra.mxu0 %v891
        %v1161 = vpop.f32.mrf.mxu0
        %v1162 = vadd.f32 0.0, %v1161
        %v1163 = vpop.f32.mrf.mxu0
        %v1164 = vadd.f32 0.0, %v1163
        %1165 = vmatmul.bf16.gmra.mxu0 %v894
        %v1166 = vpop.f32.mrf.mxu0
        %v1167 = vadd.f32 0.0, %v1166
        %v1168 = vpop.f32.mrf.mxu0
        %v1169 = vadd.f32 0.0, %v1168
        %1170 = vmatmul.bf16.gmra.mxu0 %v897
        %v1171 = vpop.f32.mrf.mxu0
        %v1172 = vadd.f32 0.0, %v1171
        %v1173 = vpop.f32.mrf.mxu0
        %v1174 = vadd.f32 0.0, %v1173
        %1175 = vmatmul.bf16.gmra.mxu0 %v900
        %v1176 = vpop.f32.mrf.mxu0
        %v1177 = vadd.f32 0.0, %v1176
        %v1178 = vpop.f32.mrf.mxu0
        %v1179 = vadd.f32 0.0, %v1178
        %1180 = vmatmul.bf16.gmra.mxu0 %v903
        %v1181 = vpop.f32.mrf.mxu0
        %v1182 = vadd.f32 0.0, %v1181
        %v1183 = vpop.f32.mrf.mxu0
        %v1184 = vadd.f32 0.0, %v1183
        %1185 = vmatmul.bf16.gmra.mxu0 %v906
        %v1186 = vpop.f32.mrf.mxu0
        %v1187 = vadd.f32 0.0, %v1186
        %v1188 = vpop.f32.mrf.mxu0
        %v1189 = vadd.f32 0.0, %v1188
        %1190 = vmatmul.bf16.gmra.mxu0 %v909
        %v1191 = vpop.f32.mrf.mxu0
        %v1192 = vadd.f32 0.0, %v1191
        %v1193 = vpop.f32.mrf.mxu0
        %v1194 = vadd.f32 0.0, %v1193
        %1195 = vmatmul.bf16.gmra.mxu0 %v912
        %v1196 = vpop.f32.mrf.mxu0
        %v1197 = vadd.f32 0.0, %v1196
        %v1198 = vpop.f32.mrf.mxu0
        %v1199 = vadd.f32 0.0, %v1198
        %1200 = vmatmul.bf16.gmra.mxu0 %v915
        %v1201 = vpop.f32.mrf.mxu0
        %v1202 = vadd.f32 0.0, %v1201
        %v1203 = vpop.f32.mrf.mxu0
        %v1204 = vadd.f32 0.0, %v1203
        %1205 = vdwg.mxu0
        %v1206 = vmul.f32 %v927, %v452
        %v1207 = vmul.f32 %v929, %v453
        %v1208 = vmul.f32 %v932, %v454
        %v1209 = vmul.f32 %v934, %v455
        %v1210 = vmul.f32 %v937, %v456
        %v1211 = vmul.f32 %v939, %v457
        %v1212 = vmul.f32 %v942, %v458
        %v1213 = vmul.f32 %v944, %v459
        %v1214 = vmul.f32 %v947, %v460
        %v1215 = vmul.f32 %v949, %v461
        %v1216 = vmul.f32 %v952, %v462
        %v1217 = vmul.f32 %v954, %v463
        %v1218 = vmul.f32 %v957, %v464
        %v1219 = vmul.f32 %v959, %v465
        %v1220 = vmul.f32 %v962, %v466
        %v1221 = vmul.f32 %v964, %v467
        %v1222 = vadd.f32 %v1206, %v1207
        %v1223 = vadd.f32 %v1222, %v1208
        %v1224 = vadd.f32 %v1223, %v1209
        %v1225 = vadd.f32 %v1224, %v1210
        %v1226 = vadd.f32 %v1225, %v1211
        %v1227 = vadd.f32 %v1226, %v1212
        %v1228 = vadd.f32 %v1227, %v1213
        %v1229 = vadd.f32 %v1228, %v1214
        %v1230 = vadd.f32 %v1229, %v1215
        %v1231 = vadd.f32 %v1230, %v1216
        %v1232 = vadd.f32 %v1231, %v1217
        %v1233 = vadd.f32 %v1232, %v1218
        %v1234 = vadd.f32 %v1233, %v1219
        %v1235 = vadd.f32 %v1234, %v1220
        %v1236 = vadd.f32 %v1235, %v1221
        %v1237 = vrot.slane %v1236, 4
        %v1238 = vadd.f32 %v1236, %v1237
        %v1239 = vrot.slane %v1238, 2
        %v1240 = vadd.f32 %v1238, %v1239
        %v1241 = vrot.slane %v1240, 1
        %v1242 = vadd.f32 %v1240, %v1241
        %v1243 = vmul.f32 %v967, %v452
        %v1244 = vmul.f32 %v969, %v453
        %v1245 = vmul.f32 %v972, %v454
        %v1246 = vmul.f32 %v974, %v455
        %v1247 = vmul.f32 %v977, %v456
        %v1248 = vmul.f32 %v979, %v457
        %v1249 = vmul.f32 %v982, %v458
        %v1250 = vmul.f32 %v984, %v459
        %v1251 = vmul.f32 %v987, %v460
        %v1252 = vmul.f32 %v989, %v461
        %v1253 = vmul.f32 %v992, %v462
        %v1254 = vmul.f32 %v994, %v463
        %v1255 = vmul.f32 %v997, %v464
        %v1256 = vmul.f32 %v999, %v465
        %v1257 = vmul.f32 %v1002, %v466
        %v1258 = vmul.f32 %v1004, %v467
        %v1259 = vadd.f32 %v1243, %v1244
        %v1260 = vadd.f32 %v1259, %v1245
        %v1261 = vadd.f32 %v1260, %v1246
        %v1262 = vadd.f32 %v1261, %v1247
        %v1263 = vadd.f32 %v1262, %v1248
        %v1264 = vadd.f32 %v1263, %v1249
        %v1265 = vadd.f32 %v1264, %v1250
        %v1266 = vadd.f32 %v1265, %v1251
        %v1267 = vadd.f32 %v1266, %v1252
        %v1268 = vadd.f32 %v1267, %v1253
        %v1269 = vadd.f32 %v1268, %v1254
        %v1270 = vadd.f32 %v1269, %v1255
        %v1271 = vadd.f32 %v1270, %v1256
        %v1272 = vadd.f32 %v1271, %v1257
        %v1273 = vadd.f32 %v1272, %v1258
        %v1274 = vrot.slane %v1273, 4
        %v1275 = vadd.f32 %v1273, %v1274
        %v1276 = vrot.slane %v1275, 2
        %v1277 = vadd.f32 %v1275, %v1276
        %v1278 = vrot.slane %v1277, 1
        %v1279 = vadd.f32 %v1277, %v1278
        %v1280 = vmul.f32 %v1007, %v452
        %v1281 = vmul.f32 %v1009, %v453
        %v1282 = vmul.f32 %v1012, %v454
        %v1283 = vmul.f32 %v1014, %v455
        %v1284 = vmul.f32 %v1017, %v456
        %v1285 = vmul.f32 %v1019, %v457
        %v1286 = vmul.f32 %v1022, %v458
        %v1287 = vmul.f32 %v1024, %v459
        %v1288 = vmul.f32 %v1027, %v460
        %v1289 = vmul.f32 %v1029, %v461
        %v1290 = vmul.f32 %v1032, %v462
        %v1291 = vmul.f32 %v1034, %v463
        %v1292 = vmul.f32 %v1037, %v464
        %v1293 = vmul.f32 %v1039, %v465
        %v1294 = vmul.f32 %v1042, %v466
        %v1295 = vmul.f32 %v1044, %v467
        %v1296 = vadd.f32 %v1280, %v1281
        %v1297 = vadd.f32 %v1296, %v1282
        %v1298 = vadd.f32 %v1297, %v1283
        %v1299 = vadd.f32 %v1298, %v1284
        %v1300 = vadd.f32 %v1299, %v1285
        %v1301 = vadd.f32 %v1300, %v1286
        %v1302 = vadd.f32 %v1301, %v1287
        %v1303 = vadd.f32 %v1302, %v1288
        %v1304 = vadd.f32 %v1303, %v1289
        %v1305 = vadd.f32 %v1304, %v1290
        %v1306 = vadd.f32 %v1305, %v1291
        %v1307 = vadd.f32 %v1306, %v1292
        %v1308 = vadd.f32 %v1307, %v1293
        %v1309 = vadd.f32 %v1308, %v1294
        %v1310 = vadd.f32 %v1309, %v1295
        %v1311 = vrot.slane %v1310, 4
        %v1312 = vadd.f32 %v1310, %v1311
        %v1313 = vrot.slane %v1312, 2
        %v1314 = vadd.f32 %v1312, %v1313
        %v1315 = vrot.slane %v1314, 1
        %v1316 = vadd.f32 %v1314, %v1315
        %v1317 = vmul.f32 %v1047, %v452
        %v1318 = vmul.f32 %v1049, %v453
        %v1319 = vmul.f32 %v1052, %v454
        %v1320 = vmul.f32 %v1054, %v455
        %v1321 = vmul.f32 %v1057, %v456
        %v1322 = vmul.f32 %v1059, %v457
        %v1323 = vmul.f32 %v1062, %v458
        %v1324 = vmul.f32 %v1064, %v459
        %v1325 = vmul.f32 %v1067, %v460
        %v1326 = vmul.f32 %v1069, %v461
        %v1327 = vmul.f32 %v1072, %v462
        %v1328 = vmul.f32 %v1074, %v463
        %v1329 = vmul.f32 %v1077, %v464
        %v1330 = vmul.f32 %v1079, %v465
        %v1331 = vmul.f32 %v1082, %v466
        %v1332 = vmul.f32 %v1084, %v467
        %v1333 = vadd.f32 %v1317, %v1318
        %v1334 = vadd.f32 %v1333, %v1319
        %v1335 = vadd.f32 %v1334, %v1320
        %v1336 = vadd.f32 %v1335, %v1321
        %v1337 = vadd.f32 %v1336, %v1322
        %v1338 = vadd.f32 %v1337, %v1323
        %v1339 = vadd.f32 %v1338, %v1324
        %v1340 = vadd.f32 %v1339, %v1325
        %v1341 = vadd.f32 %v1340, %v1326
        %v1342 = vadd.f32 %v1341, %v1327
        %v1343 = vadd.f32 %v1342, %v1328
        %v1344 = vadd.f32 %v1343, %v1329
        %v1345 = vadd.f32 %v1344, %v1330
        %v1346 = vadd.f32 %v1345, %v1331
        %v1347 = vadd.f32 %v1346, %v1332
        %v1348 = vrot.slane %v1347, 4
        %v1349 = vadd.f32 %v1347, %v1348
        %v1350 = vrot.slane %v1349, 2
        %v1351 = vadd.f32 %v1349, %v1350
        %v1352 = vrot.slane %v1351, 1
        %v1353 = vadd.f32 %v1351, %v1352
        %v1354 = vmul.f32 %v1087, %v452
        %v1355 = vmul.f32 %v1089, %v453
        %v1356 = vmul.f32 %v1092, %v454
        %v1357 = vmul.f32 %v1094, %v455
        %v1358 = vmul.f32 %v1097, %v456
        %v1359 = vmul.f32 %v1099, %v457
        %v1360 = vmul.f32 %v1102, %v458
        %v1361 = vmul.f32 %v1104, %v459
        %v1362 = vmul.f32 %v1107, %v460
        %v1363 = vmul.f32 %v1109, %v461
        %v1364 = vmul.f32 %v1112, %v462
        %v1365 = vmul.f32 %v1114, %v463
        %v1366 = vmul.f32 %v1117, %v464
        %v1367 = vmul.f32 %v1119, %v465
        %v1368 = vmul.f32 %v1122, %v466
        %v1369 = vmul.f32 %v1124, %v467
        %v1370 = vadd.f32 %v1354, %v1355
        %v1371 = vadd.f32 %v1370, %v1356
        %v1372 = vadd.f32 %v1371, %v1357
        %v1373 = vadd.f32 %v1372, %v1358
        %v1374 = vadd.f32 %v1373, %v1359
        %v1375 = vadd.f32 %v1374, %v1360
        %v1376 = vadd.f32 %v1375, %v1361
        %v1377 = vadd.f32 %v1376, %v1362
        %v1378 = vadd.f32 %v1377, %v1363
        %v1379 = vadd.f32 %v1378, %v1364
        %v1380 = vadd.f32 %v1379, %v1365
        %v1381 = vadd.f32 %v1380, %v1366
        %v1382 = vadd.f32 %v1381, %v1367
        %v1383 = vadd.f32 %v1382, %v1368
        %v1384 = vadd.f32 %v1383, %v1369
        %v1385 = vrot.slane %v1384, 4
        %v1386 = vadd.f32 %v1384, %v1385
        %v1387 = vrot.slane %v1386, 2
        %v1388 = vadd.f32 %v1386, %v1387
        %v1389 = vrot.slane %v1388, 1
        %v1390 = vadd.f32 %v1388, %v1389
        %v1391 = vadd.f32 %v1279, %v1390
        %v1392 = vmul.f32 %v1127, %v452
        %v1393 = vmul.f32 %v1129, %v453
        %v1394 = vmul.f32 %v1132, %v454
        %v1395 = vmul.f32 %v1134, %v455
        %v1396 = vmul.f32 %v1137, %v456
        %v1397 = vmul.f32 %v1139, %v457
        %v1398 = vmul.f32 %v1142, %v458
        %v1399 = vmul.f32 %v1144, %v459
        %v1400 = vmul.f32 %v1147, %v460
        %v1401 = vmul.f32 %v1149, %v461
        %v1402 = vmul.f32 %v1152, %v462
        %v1403 = vmul.f32 %v1154, %v463
        %v1404 = vmul.f32 %v1157, %v464
        %v1405 = vmul.f32 %v1159, %v465
        %v1406 = vmul.f32 %v1162, %v466
        %v1407 = vmul.f32 %v1164, %v467
        %v1408 = vadd.f32 %v1392, %v1393
        %v1409 = vadd.f32 %v1408, %v1394
        %v1410 = vadd.f32 %v1409, %v1395
        %v1411 = vadd.f32 %v1410, %v1396
        %v1412 = vadd.f32 %v1411, %v1397
        %v1413 = vadd.f32 %v1412, %v1398
        %v1414 = vadd.f32 %v1413, %v1399
        %v1415 = vadd.f32 %v1414, %v1400
        %v1416 = vadd.f32 %v1415, %v1401
        %v1417 = vadd.f32 %v1416, %v1402
        %v1418 = vadd.f32 %v1417, %v1403
        %v1419 = vadd.f32 %v1418, %v1404
        %v1420 = vadd.f32 %v1419, %v1405
        %v1421 = vadd.f32 %v1420, %v1406
        %v1422 = vadd.f32 %v1421, %v1407
        %v1423 = vrot.slane %v1422, 4
        %v1424 = vadd.f32 %v1422, %v1423
        %v1425 = vrot.slane %v1424, 2
        %v1426 = vadd.f32 %v1424, %v1425
        %v1427 = vrot.slane %v1426, 1
        %v1428 = vadd.f32 %v1426, %v1427
        %v1429 = vadd.f32 %v1316, %v1428
        %v1430 = vmul.f32 %v1167, %v452
        %v1431 = vmul.f32 %v1169, %v453
        %v1432 = vmul.f32 %v1172, %v454
        %v1433 = vmul.f32 %v1174, %v455
        %v1434 = vmul.f32 %v1177, %v456
        %v1435 = vmul.f32 %v1179, %v457
        %v1436 = vmul.f32 %v1182, %v458
        %v1437 = vmul.f32 %v1184, %v459
        %v1438 = vmul.f32 %v1187, %v460
        %v1439 = vmul.f32 %v1189, %v461
        %v1440 = vmul.f32 %v1192, %v462
        %v1441 = vmul.f32 %v1194, %v463
        %v1442 = vmul.f32 %v1197, %v464
        %v1443 = vmul.f32 %v1199, %v465
        %v1444 = vmul.f32 %v1202, %v466
        %v1445 = vmul.f32 %v1204, %v467
        %v1446 = vadd.f32 %v1430, %v1431
        %v1447 = vadd.f32 %v1446, %v1432
        %v1448 = vadd.f32 %v1447, %v1433
        %v1449 = vadd.f32 %v1448, %v1434
        %v1450 = vadd.f32 %v1449, %v1435
        %v1451 = vadd.f32 %v1450, %v1436
        %v1452 = vadd.f32 %v1451, %v1437
        %v1453 = vadd.f32 %v1452, %v1438
        %v1454 = vadd.f32 %v1453, %v1439
        %v1455 = vadd.f32 %v1454, %v1440
        %v1456 = vadd.f32 %v1455, %v1441
        %v1457 = vadd.f32 %v1456, %v1442
        %v1458 = vadd.f32 %v1457, %v1443
        %v1459 = vadd.f32 %v1458, %v1444
        %v1460 = vadd.f32 %v1459, %v1445
        %v1461 = vrot.slane %v1460, 4
        %v1462 = vadd.f32 %v1460, %v1461
        %v1463 = vrot.slane %v1462, 2
        %v1464 = vadd.f32 %v1462, %v1463
        %v1465 = vrot.slane %v1464, 1
        %v1466 = vadd.f32 %v1464, %v1465
        %v1467 = vadd.f32 %v1353, %v1466
        %v1468 = vsub.f32 %v388, %v1391
        %v1469 = vadd.f32 %v1468, 1e-06
        %v1470 = vsub.f32 %v388, %v1429
        %v1471 = vadd.f32 %v1470, 1e-06
        %v1472 = vsub.f32 %v388, %v1467
        %v1473 = vadd.f32 %v1472, 1e-06
        %v1474 = vmul.f32 %v1469, %v1469
        %v1475 = vmul.f32 %v1471, %v1471
        %v1477 = vrot.slane %v1475, 1
        %v1479 = vadd.f32 %v1474, %v1477
        %v1480 = vmul.f32 %v1473, %v1473
        %v1482 = vrot.slane %v1480, 2
        %v1484 = vadd.f32 %v1479, %v1482
        %v1485 = vrsqrt.pop %v1484
        %v1486 = vmul.f32 %v1485, %v1484
        %v1487 = vmul.f32 %v1486, %v1485
        %v1488 = vmul.f32 0.5, %v1487
        %v1489 = vsub.f32 1.5, %v1488
        %v1490 = vmul.f32 %v1485, %v1489
        %v1491 = vmul.f32 %v1484, %v1490
        %vm1492 = vcmp.eq.f32.partialorder %v1484, inf
        %v1493 = vsel %vm1492, %v1484, %v1491
        %vm1494 = vcmp.eq.f32.partialorder %v1484, 0.0
        %v1495 = vand.u32 %v1484, 2147483648
        %v1496 = vsel %vm1494, %v1495, %v1493
        %v1497 = vsub.f32 1.0, %v1242
        %v1498 = vmul.f32 %v1496, %v1497
        %v1499 = vadd.f32 %v1498, 0.0
        %v1500 = vperm.slane %v368, 5
        %v1501 = vmul.f32 %v352, %v1500
        %v1502 = vsub.f32 %v230, %v1501
        %v1503 = vadd.f32 %v1502, 0.5
        %v1504 = vmul.f32 %v1503, 16.0
        %v1505 = vcvt.f32.s32.to.zero.pseudo %v1504
        %vm1506 = vcmp.gt.s32.totalorder %v1505, 0
        %v1507 = vsel %vm1506, %v1505, 0
        %vm1508 = vcmp.lt.s32.totalorder %v1507, 15
        %v1509 = vsel %vm1508, %v1507, 15
        %v1510 = vmul.u32 %v1509, 256
        %v1511 = vmul.u32 %v1509, 16
        %v1512 = vrot.slane %v1511, 1
        %v1513 = vadd.s32 %v1510, %v1512
        %v1514 = vrot.slane %v1509, 2
        %v1515 = vadd.s32 %v1513, %v1514
        %v1516 = vshra.s32 %v1515, 7
        %v1517 = vperm.slane %v1516, 0
        %vm1518 = vcmp.eq.s32.totalorder %v1517, %v370
        %vm1519 = vcmp.eq.s32.totalorder %v1517, %v371
        %vm1520 = vcmp.eq.s32.totalorder %v1517, %v372
        %vm1521 = vcmp.eq.s32.totalorder %v1517, %v373
        %v1522 = vsel %vm1518, 1, 0
        %v1523 = vsel %vm1519, 1, 0
        %v1524 = vsel %vm1520, 1, 0
        %v1525 = vsel %vm1521, 1, 0
        %v1526 = vcvt.s32.f32 %v1522
        %v1527 = vcvt.s32.f32 %v1523
        %v1528 = vcvt.s32.f32 %v1524
        %v1529 = vcvt.s32.f32 %v1525
        %v1530 = vpack.c.bf16 %v1527, %v1526
        %v1531 = vpack.c.bf16 %v1529, %v1528
        %v1532 = vand.u32 %v1515, 127
        %v1533 = vperm.slane %v1532, 0
        %vm1534 = vcmp.eq.s32.totalorder %v1533, %v370
        %vm1535 = vcmp.eq.s32.totalorder %v1533, %v371
        %vm1536 = vcmp.eq.s32.totalorder %v1533, %v372
        %vm1537 = vcmp.eq.s32.totalorder %v1533, %v373
        %vm1538 = vcmp.eq.s32.totalorder %v1533, %v374
        %vm1539 = vcmp.eq.s32.totalorder %v1533, %v375
        %vm1540 = vcmp.eq.s32.totalorder %v1533, %v376
        %vm1541 = vcmp.eq.s32.totalorder %v1533, %v377
        %vm1542 = vcmp.eq.s32.totalorder %v1533, %v378
        %vm1543 = vcmp.eq.s32.totalorder %v1533, %v379
        %vm1544 = vcmp.eq.s32.totalorder %v1533, %v380
        %vm1545 = vcmp.eq.s32.totalorder %v1533, %v381
        %vm1546 = vcmp.eq.s32.totalorder %v1533, %v382
        %vm1547 = vcmp.eq.s32.totalorder %v1533, %v383
        %vm1548 = vcmp.eq.s32.totalorder %v1533, %v384
        %vm1549 = vcmp.eq.s32.totalorder %v1533, %v385
        %v1550 = vsel %vm1534, 1, 0
        %v1551 = vsel %vm1535, 1, 0
        %v1552 = vsel %vm1536, 1, 0
        %v1553 = vsel %vm1537, 1, 0
        %v1554 = vsel %vm1538, 1, 0
        %v1555 = vsel %vm1539, 1, 0
        %v1556 = vsel %vm1540, 1, 0
        %v1557 = vsel %vm1541, 1, 0
        %v1558 = vsel %vm1542, 1, 0
        %v1559 = vsel %vm1543, 1, 0
        %v1560 = vsel %vm1544, 1, 0
        %v1561 = vsel %vm1545, 1, 0
        %v1562 = vsel %vm1546, 1, 0
        %v1563 = vsel %vm1547, 1, 0
        %v1564 = vsel %vm1548, 1, 0
        %v1565 = vsel %vm1549, 1, 0
        %v1566 = vcvt.s32.f32 %v1550
        %v1567 = vcvt.s32.f32 %v1551
        %v1568 = vcvt.s32.f32 %v1552
        %v1569 = vcvt.s32.f32 %v1553
        %v1570 = vcvt.s32.f32 %v1554
        %v1571 = vcvt.s32.f32 %v1555
        %v1572 = vcvt.s32.f32 %v1556
        %v1573 = vcvt.s32.f32 %v1557
        %v1574 = vcvt.s32.f32 %v1558
        %v1575 = vcvt.s32.f32 %v1559
        %v1576 = vcvt.s32.f32 %v1560
        %v1577 = vcvt.s32.f32 %v1561
        %v1578 = vcvt.s32.f32 %v1562
        %v1579 = vcvt.s32.f32 %v1563
        %v1580 = vcvt.s32.f32 %v1564
        %v1581 = vcvt.s32.f32 %v1565
        %1582 = vmatpush.bf16.msra.mxu0 0
        %1583 = vmatpush.bf16.msra.mxu0 0
        %1584 = vmatpush.bf16.msra.mxu0 0
        %1585 = vmatpush.bf16.msra.mxu0 0
        %1586 = vmatpush.bf16.msra.mxu0 0
        %1587 = vmatpush.bf16.msra.mxu0 0
        %1588 = vmatpush.bf16.msra.mxu0 %v1531
        %1589 = vmatpush.bf16.msra.mxu0 %v1530
        %1590 = vmatmul.bf16.gmra.mxu0 %v750
        %v1591 = vpop.f32.mrf.mxu0
        %v1592 = vadd.f32 0.0, %v1591
        %v1593 = vpop.f32.mrf.mxu0
        %v1594 = vadd.f32 0.0, %v1593
        %1595 = vmatmul.bf16.gmra.mxu0 %v753
        %v1596 = vpop.f32.mrf.mxu0
        %v1597 = vadd.f32 0.0, %v1596
        %v1598 = vpop.f32.mrf.mxu0
        %v1599 = vadd.f32 0.0, %v1598
        %1600 = vmatmul.bf16.gmra.mxu0 %v756
        %v1601 = vpop.f32.mrf.mxu0
        %v1602 = vadd.f32 0.0, %v1601
        %v1603 = vpop.f32.mrf.mxu0
        %v1604 = vadd.f32 0.0, %v1603
        %1605 = vmatmul.bf16.gmra.mxu0 %v759
        %v1606 = vpop.f32.mrf.mxu0
        %v1607 = vadd.f32 0.0, %v1606
        %v1608 = vpop.f32.mrf.mxu0
        %v1609 = vadd.f32 0.0, %v1608
        %1610 = vmatmul.bf16.gmra.mxu0 %v762
        %v1611 = vpop.f32.mrf.mxu0
        %v1612 = vadd.f32 0.0, %v1611
        %v1613 = vpop.f32.mrf.mxu0
        %v1614 = vadd.f32 0.0, %v1613
        %1615 = vmatmul.bf16.gmra.mxu0 %v765
        %v1616 = vpop.f32.mrf.mxu0
        %v1617 = vadd.f32 0.0, %v1616
        %v1618 = vpop.f32.mrf.mxu0
        %v1619 = vadd.f32 0.0, %v1618
        %1620 = vmatmul.bf16.gmra.mxu0 %v768
        %v1621 = vpop.f32.mrf.mxu0
        %v1622 = vadd.f32 0.0, %v1621
        %v1623 = vpop.f32.mrf.mxu0
        %v1624 = vadd.f32 0.0, %v1623
        %1625 = vmatmul.bf16.gmra.mxu0 %v771
        %v1626 = vpop.f32.mrf.mxu0
        %v1627 = vadd.f32 0.0, %v1626
        %v1628 = vpop.f32.mrf.mxu0
        %v1629 = vadd.f32 0.0, %v1628
        %1630 = vmatmul.bf16.gmra.mxu0 %v774
        %v1631 = vpop.f32.mrf.mxu0
        %v1632 = vadd.f32 0.0, %v1631
        %v1633 = vpop.f32.mrf.mxu0
        %v1634 = vadd.f32 0.0, %v1633
        %1635 = vmatmul.bf16.gmra.mxu0 %v777
        %v1636 = vpop.f32.mrf.mxu0
        %v1637 = vadd.f32 0.0, %v1636
        %v1638 = vpop.f32.mrf.mxu0
        %v1639 = vadd.f32 0.0, %v1638
        %1640 = vmatmul.bf16.gmra.mxu0 %v780
        %v1641 = vpop.f32.mrf.mxu0
        %v1642 = vadd.f32 0.0, %v1641
        %v1643 = vpop.f32.mrf.mxu0
        %v1644 = vadd.f32 0.0, %v1643
        %1645 = vmatmul.bf16.gmra.mxu0 %v783
        %v1646 = vpop.f32.mrf.mxu0
        %v1647 = vadd.f32 0.0, %v1646
        %v1648 = vpop.f32.mrf.mxu0
        %v1649 = vadd.f32 0.0, %v1648
        %1650 = vmatmul.bf16.gmra.mxu0 %v786
        %v1651 = vpop.f32.mrf.mxu0
        %v1652 = vadd.f32 0.0, %v1651
        %v1653 = vpop.f32.mrf.mxu0
        %v1654 = vadd.f32 0.0, %v1653
        %1655 = vmatmul.bf16.gmra.mxu0 %v789
        %v1656 = vpop.f32.mrf.mxu0
        %v1657 = vadd.f32 0.0, %v1656
        %v1658 = vpop.f32.mrf.mxu0
        %v1659 = vadd.f32 0.0, %v1658
        %1660 = vmatmul.bf16.gmra.mxu0 %v792
        %v1661 = vpop.f32.mrf.mxu0
        %v1662 = vadd.f32 0.0, %v1661
        %v1663 = vpop.f32.mrf.mxu0
        %v1664 = vadd.f32 0.0, %v1663
        %1665 = vmatmul.bf16.gmra.mxu0 %v795
        %v1666 = vpop.f32.mrf.mxu0
        %v1667 = vadd.f32 0.0, %v1666
        %v1668 = vpop.f32.mrf.mxu0
        %v1669 = vadd.f32 0.0, %v1668
        %1670 = vmatmul.bf16.gmra.mxu0 %v798
        %v1671 = vpop.f32.mrf.mxu0
        %v1672 = vadd.f32 0.0, %v1671
        %v1673 = vpop.f32.mrf.mxu0
        %v1674 = vadd.f32 0.0, %v1673
        %1675 = vmatmul.bf16.gmra.mxu0 %v801
        %v1676 = vpop.f32.mrf.mxu0
        %v1677 = vadd.f32 0.0, %v1676
        %v1678 = vpop.f32.mrf.mxu0
        %v1679 = vadd.f32 0.0, %v1678
        %1680 = vmatmul.bf16.gmra.mxu0 %v804
        %v1681 = vpop.f32.mrf.mxu0
        %v1682 = vadd.f32 0.0, %v1681
        %v1683 = vpop.f32.mrf.mxu0
        %v1684 = vadd.f32 0.0, %v1683
        %1685 = vmatmul.bf16.gmra.mxu0 %v807
        %v1686 = vpop.f32.mrf.mxu0
        %v1687 = vadd.f32 0.0, %v1686
        %v1688 = vpop.f32.mrf.mxu0
        %v1689 = vadd.f32 0.0, %v1688
        %1690 = vmatmul.bf16.gmra.mxu0 %v810
        %v1691 = vpop.f32.mrf.mxu0
        %v1692 = vadd.f32 0.0, %v1691
        %v1693 = vpop.f32.mrf.mxu0
        %v1694 = vadd.f32 0.0, %v1693
        %1695 = vmatmul.bf16.gmra.mxu0 %v813
        %v1696 = vpop.f32.mrf.mxu0
        %v1697 = vadd.f32 0.0, %v1696
        %v1698 = vpop.f32.mrf.mxu0
        %v1699 = vadd.f32 0.0, %v1698
        %1700 = vmatmul.bf16.gmra.mxu0 %v816
        %v1701 = vpop.f32.mrf.mxu0
        %v1702 = vadd.f32 0.0, %v1701
        %v1703 = vpop.f32.mrf.mxu0
        %v1704 = vadd.f32 0.0, %v1703
        %1705 = vmatmul.bf16.gmra.mxu0 %v819
        %v1706 = vpop.f32.mrf.mxu0
        %v1707 = vadd.f32 0.0, %v1706
        %v1708 = vpop.f32.mrf.mxu0
        %v1709 = vadd.f32 0.0, %v1708
        %1710 = vmatmul.bf16.gmra.mxu0 %v822
        %v1711 = vpop.f32.mrf.mxu0
        %v1712 = vadd.f32 0.0, %v1711
        %v1713 = vpop.f32.mrf.mxu0
        %v1714 = vadd.f32 0.0, %v1713
        %1715 = vmatmul.bf16.gmra.mxu0 %v825
        %v1716 = vpop.f32.mrf.mxu0
        %v1717 = vadd.f32 0.0, %v1716
        %v1718 = vpop.f32.mrf.mxu0
        %v1719 = vadd.f32 0.0, %v1718
        %1720 = vmatmul.bf16.gmra.mxu0 %v828
        %v1721 = vpop.f32.mrf.mxu0
        %v1722 = vadd.f32 0.0, %v1721
        %v1723 = vpop.f32.mrf.mxu0
        %v1724 = vadd.f32 0.0, %v1723
        %1725 = vmatmul.bf16.gmra.mxu0 %v831
        %v1726 = vpop.f32.mrf.mxu0
        %v1727 = vadd.f32 0.0, %v1726
        %v1728 = vpop.f32.mrf.mxu0
        %v1729 = vadd.f32 0.0, %v1728
        %1730 = vmatmul.bf16.gmra.mxu0 %v834
        %v1731 = vpop.f32.mrf.mxu0
        %v1732 = vadd.f32 0.0, %v1731
        %v1733 = vpop.f32.mrf.mxu0
        %v1734 = vadd.f32 0.0, %v1733
        %1735 = vmatmul.bf16.gmra.mxu0 %v837
        %v1736 = vpop.f32.mrf.mxu0
        %v1737 = vadd.f32 0.0, %v1736
        %v1738 = vpop.f32.mrf.mxu0
        %v1739 = vadd.f32 0.0, %v1738
        %1740 = vmatmul.bf16.gmra.mxu0 %v840
        %v1741 = vpop.f32.mrf.mxu0
        %v1742 = vadd.f32 0.0, %v1741
        %v1743 = vpop.f32.mrf.mxu0
        %v1744 = vadd.f32 0.0, %v1743
        %1745 = vmatmul.bf16.gmra.mxu0 %v843
        %v1746 = vpop.f32.mrf.mxu0
        %v1747 = vadd.f32 0.0, %v1746
        %v1748 = vpop.f32.mrf.mxu0
        %v1749 = vadd.f32 0.0, %v1748
        %1750 = vmatmul.bf16.gmra.mxu0 %v846
        %v1751 = vpop.f32.mrf.mxu0
        %v1752 = vadd.f32 0.0, %v1751
        %v1753 = vpop.f32.mrf.mxu0
        %v1754 = vadd.f32 0.0, %v1753
        %1755 = vmatmul.bf16.gmra.mxu0 %v849
        %v1756 = vpop.f32.mrf.mxu0
        %v1757 = vadd.f32 0.0, %v1756
        %v1758 = vpop.f32.mrf.mxu0
        %v1759 = vadd.f32 0.0, %v1758
        %1760 = vmatmul.bf16.gmra.mxu0 %v852
        %v1761 = vpop.f32.mrf.mxu0
        %v1762 = vadd.f32 0.0, %v1761
        %v1763 = vpop.f32.mrf.mxu0
        %v1764 = vadd.f32 0.0, %v1763
        %1765 = vmatmul.bf16.gmra.mxu0 %v855
        %v1766 = vpop.f32.mrf.mxu0
        %v1767 = vadd.f32 0.0, %v1766
        %v1768 = vpop.f32.mrf.mxu0
        %v1769 = vadd.f32 0.0, %v1768
        %1770 = vmatmul.bf16.gmra.mxu0 %v858
        %v1771 = vpop.f32.mrf.mxu0
        %v1772 = vadd.f32 0.0, %v1771
        %v1773 = vpop.f32.mrf.mxu0
        %v1774 = vadd.f32 0.0, %v1773
        %1775 = vmatmul.bf16.gmra.mxu0 %v861
        %v1776 = vpop.f32.mrf.mxu0
        %v1777 = vadd.f32 0.0, %v1776
        %v1778 = vpop.f32.mrf.mxu0
        %v1779 = vadd.f32 0.0, %v1778
        %1780 = vmatmul.bf16.gmra.mxu0 %v864
        %v1781 = vpop.f32.mrf.mxu0
        %v1782 = vadd.f32 0.0, %v1781
        %v1783 = vpop.f32.mrf.mxu0
        %v1784 = vadd.f32 0.0, %v1783
        %1785 = vmatmul.bf16.gmra.mxu0 %v867
        %v1786 = vpop.f32.mrf.mxu0
        %v1787 = vadd.f32 0.0, %v1786
        %v1788 = vpop.f32.mrf.mxu0
        %v1789 = vadd.f32 0.0, %v1788
        %1790 = vmatmul.bf16.gmra.mxu0 %v870
        %v1791 = vpop.f32.mrf.mxu0
        %v1792 = vadd.f32 0.0, %v1791
        %v1793 = vpop.f32.mrf.mxu0
        %v1794 = vadd.f32 0.0, %v1793
        %1795 = vmatmul.bf16.gmra.mxu0 %v873
        %v1796 = vpop.f32.mrf.mxu0
        %v1797 = vadd.f32 0.0, %v1796
        %v1798 = vpop.f32.mrf.mxu0
        %v1799 = vadd.f32 0.0, %v1798
        %1800 = vmatmul.bf16.gmra.mxu0 %v876
        %v1801 = vpop.f32.mrf.mxu0
        %v1802 = vadd.f32 0.0, %v1801
        %v1803 = vpop.f32.mrf.mxu0
        %v1804 = vadd.f32 0.0, %v1803
        %1805 = vmatmul.bf16.gmra.mxu0 %v879
        %v1806 = vpop.f32.mrf.mxu0
        %v1807 = vadd.f32 0.0, %v1806
        %v1808 = vpop.f32.mrf.mxu0
        %v1809 = vadd.f32 0.0, %v1808
        %1810 = vmatmul.bf16.gmra.mxu0 %v882
        %v1811 = vpop.f32.mrf.mxu0
        %v1812 = vadd.f32 0.0, %v1811
        %v1813 = vpop.f32.mrf.mxu0
        %v1814 = vadd.f32 0.0, %v1813
        %1815 = vmatmul.bf16.gmra.mxu0 %v885
        %v1816 = vpop.f32.mrf.mxu0
        %v1817 = vadd.f32 0.0, %v1816
        %v1818 = vpop.f32.mrf.mxu0
        %v1819 = vadd.f32 0.0, %v1818
        %1820 = vmatmul.bf16.gmra.mxu0 %v888
        %v1821 = vpop.f32.mrf.mxu0
        %v1822 = vadd.f32 0.0, %v1821
        %v1823 = vpop.f32.mrf.mxu0
        %v1824 = vadd.f32 0.0, %v1823
        %1825 = vmatmul.bf16.gmra.mxu0 %v891
        %v1826 = vpop.f32.mrf.mxu0
        %v1827 = vadd.f32 0.0, %v1826
        %v1828 = vpop.f32.mrf.mxu0
        %v1829 = vadd.f32 0.0, %v1828
        %1830 = vmatmul.bf16.gmra.mxu0 %v894
        %v1831 = vpop.f32.mrf.mxu0
        %v1832 = vadd.f32 0.0, %v1831
        %v1833 = vpop.f32.mrf.mxu0
        %v1834 = vadd.f32 0.0, %v1833
        %1835 = vmatmul.bf16.gmra.mxu0 %v897
        %v1836 = vpop.f32.mrf.mxu0
        %v1837 = vadd.f32 0.0, %v1836
        %v1838 = vpop.f32.mrf.mxu0
        %v1839 = vadd.f32 0.0, %v1838
        %1840 = vmatmul.bf16.gmra.mxu0 %v900
        %v1841 = vpop.f32.mrf.mxu0
        %v1842 = vadd.f32 0.0, %v1841
        %v1843 = vpop.f32.mrf.mxu0
        %v1844 = vadd.f32 0.0, %v1843
        %1845 = vmatmul.bf16.gmra.mxu0 %v903
        %v1846 = vpop.f32.mrf.mxu0
        %v1847 = vadd.f32 0.0, %v1846
        %v1848 = vpop.f32.mrf.mxu0
        %v1849 = vadd.f32 0.0, %v1848
        %1850 = vmatmul.bf16.gmra.mxu0 %v906
        %v1851 = vpop.f32.mrf.mxu0
        %v1852 = vadd.f32 0.0, %v1851
        %v1853 = vpop.f32.mrf.mxu0
        %v1854 = vadd.f32 0.0, %v1853
        %1855 = vmatmul.bf16.gmra.mxu0 %v909
        %v1856 = vpop.f32.mrf.mxu0
        %v1857 = vadd.f32 0.0, %v1856
        %v1858 = vpop.f32.mrf.mxu0
        %v1859 = vadd.f32 0.0, %v1858
        %1860 = vmatmul.bf16.gmra.mxu0 %v912
        %v1861 = vpop.f32.mrf.mxu0
        %v1862 = vadd.f32 0.0, %v1861
        %v1863 = vpop.f32.mrf.mxu0
        %v1864 = vadd.f32 0.0, %v1863
        %1865 = vmatmul.bf16.gmra.mxu0 %v915
        %v1866 = vpop.f32.mrf.mxu0
        %v1867 = vadd.f32 0.0, %v1866
        %v1868 = vpop.f32.mrf.mxu0
        %v1869 = vadd.f32 0.0, %v1868
        %1870 = vdwg.mxu0
        %v1871 = vmul.f32 %v1592, %v1566
        %v1872 = vmul.f32 %v1594, %v1567
        %v1873 = vmul.f32 %v1597, %v1568
        %v1874 = vmul.f32 %v1599, %v1569
        %v1875 = vmul.f32 %v1602, %v1570
        %v1876 = vmul.f32 %v1604, %v1571
        %v1877 = vmul.f32 %v1607, %v1572
        %v1878 = vmul.f32 %v1609, %v1573
        %v1879 = vmul.f32 %v1612, %v1574
        %v1880 = vmul.f32 %v1614, %v1575
        %v1881 = vmul.f32 %v1617, %v1576
        %v1882 = vmul.f32 %v1619, %v1577
        %v1883 = vmul.f32 %v1622, %v1578
        %v1884 = vmul.f32 %v1624, %v1579
        %v1885 = vmul.f32 %v1627, %v1580
        %v1886 = vmul.f32 %v1629, %v1581
        %v1887 = vadd.f32 %v1871, %v1872
        %v1888 = vadd.f32 %v1887, %v1873
        %v1889 = vadd.f32 %v1888, %v1874
        %v1890 = vadd.f32 %v1889, %v1875
        %v1891 = vadd.f32 %v1890, %v1876
        %v1892 = vadd.f32 %v1891, %v1877
        %v1893 = vadd.f32 %v1892, %v1878
        %v1894 = vadd.f32 %v1893, %v1879
        %v1895 = vadd.f32 %v1894, %v1880
        %v1896 = vadd.f32 %v1895, %v1881
        %v1897 = vadd.f32 %v1896, %v1882
        %v1898 = vadd.f32 %v1897, %v1883
        %v1899 = vadd.f32 %v1898, %v1884
        %v1900 = vadd.f32 %v1899, %v1885
        %v1901 = vadd.f32 %v1900, %v1886
        %v1902 = vrot.slane %v1901, 4
        %v1903 = vadd.f32 %v1901, %v1902
        %v1904 = vrot.slane %v1903, 2
        %v1905 = vadd.f32 %v1903, %v1904
        %v1906 = vrot.slane %v1905, 1
        %v1907 = vadd.f32 %v1905, %v1906
        %v1908 = vmul.f32 %v1632, %v1566
        %v1909 = vmul.f32 %v1634, %v1567
        %v1910 = vmul.f32 %v1637, %v1568
        %v1911 = vmul.f32 %v1639, %v1569
        %v1912 = vmul.f32 %v1642, %v1570
        %v1913 = vmul.f32 %v1644, %v1571
        %v1914 = vmul.f32 %v1647, %v1572
        %v1915 = vmul.f32 %v1649, %v1573
        %v1916 = vmul.f32 %v1652, %v1574
        %v1917 = vmul.f32 %v1654, %v1575
        %v1918 = vmul.f32 %v1657, %v1576
        %v1919 = vmul.f32 %v1659, %v1577
        %v1920 = vmul.f32 %v1662, %v1578
        %v1921 = vmul.f32 %v1664, %v1579
        %v1922 = vmul.f32 %v1667, %v1580
        %v1923 = vmul.f32 %v1669, %v1581
        %v1924 = vadd.f32 %v1908, %v1909
        %v1925 = vadd.f32 %v1924, %v1910
        %v1926 = vadd.f32 %v1925, %v1911
        %v1927 = vadd.f32 %v1926, %v1912
        %v1928 = vadd.f32 %v1927, %v1913
        %v1929 = vadd.f32 %v1928, %v1914
        %v1930 = vadd.f32 %v1929, %v1915
        %v1931 = vadd.f32 %v1930, %v1916
        %v1932 = vadd.f32 %v1931, %v1917
        %v1933 = vadd.f32 %v1932, %v1918
        %v1934 = vadd.f32 %v1933, %v1919
        %v1935 = vadd.f32 %v1934, %v1920
        %v1936 = vadd.f32 %v1935, %v1921
        %v1937 = vadd.f32 %v1936, %v1922
        %v1938 = vadd.f32 %v1937, %v1923
        %v1939 = vrot.slane %v1938, 4
        %v1940 = vadd.f32 %v1938, %v1939
        %v1941 = vrot.slane %v1940, 2
        %v1942 = vadd.f32 %v1940, %v1941
        %v1943 = vrot.slane %v1942, 1
        %v1944 = vadd.f32 %v1942, %v1943
        %v1945 = vmul.f32 %v1672, %v1566
        %v1946 = vmul.f32 %v1674, %v1567
        %v1947 = vmul.f32 %v1677, %v1568
        %v1948 = vmul.f32 %v1679, %v1569
        %v1949 = vmul.f32 %v1682, %v1570
        %v1950 = vmul.f32 %v1684, %v1571
        %v1951 = vmul.f32 %v1687, %v1572
        %v1952 = vmul.f32 %v1689, %v1573
        %v1953 = vmul.f32 %v1692, %v1574
        %v1954 = vmul.f32 %v1694, %v1575
        %v1955 = vmul.f32 %v1697, %v1576
        %v1956 = vmul.f32 %v1699, %v1577
        %v1957 = vmul.f32 %v1702, %v1578
        %v1958 = vmul.f32 %v1704, %v1579
        %v1959 = vmul.f32 %v1707, %v1580
        %v1960 = vmul.f32 %v1709, %v1581
        %v1961 = vadd.f32 %v1945, %v1946
        %v1962 = vadd.f32 %v1961, %v1947
        %v1963 = vadd.f32 %v1962, %v1948
        %v1964 = vadd.f32 %v1963, %v1949
        %v1965 = vadd.f32 %v1964, %v1950
        %v1966 = vadd.f32 %v1965, %v1951
        %v1967 = vadd.f32 %v1966, %v1952
        %v1968 = vadd.f32 %v1967, %v1953
        %v1969 = vadd.f32 %v1968, %v1954
        %v1970 = vadd.f32 %v1969, %v1955
        %v1971 = vadd.f32 %v1970, %v1956
        %v1972 = vadd.f32 %v1971, %v1957
        %v1973 = vadd.f32 %v1972, %v1958
        %v1974 = vadd.f32 %v1973, %v1959
        %v1975 = vadd.f32 %v1974, %v1960
        %v1976 = vrot.slane %v1975, 4
        %v1977 = vadd.f32 %v1975, %v1976
        %v1978 = vrot.slane %v1977, 2
        %v1979 = vadd.f32 %v1977, %v1978
        %v1980 = vrot.slane %v1979, 1
        %v1981 = vadd.f32 %v1979, %v1980
        %v1982 = vmul.f32 %v1712, %v1566
        %v1983 = vmul.f32 %v1714, %v1567
        %v1984 = vmul.f32 %v1717, %v1568
        %v1985 = vmul.f32 %v1719, %v1569
        %v1986 = vmul.f32 %v1722, %v1570
        %v1987 = vmul.f32 %v1724, %v1571
        %v1988 = vmul.f32 %v1727, %v1572
        %v1989 = vmul.f32 %v1729, %v1573
        %v1990 = vmul.f32 %v1732, %v1574
        %v1991 = vmul.f32 %v1734, %v1575
        %v1992 = vmul.f32 %v1737, %v1576
        %v1993 = vmul.f32 %v1739, %v1577
        %v1994 = vmul.f32 %v1742, %v1578
        %v1995 = vmul.f32 %v1744, %v1579
        %v1996 = vmul.f32 %v1747, %v1580
        %v1997 = vmul.f32 %v1749, %v1581
        %v1998 = vadd.f32 %v1982, %v1983
        %v1999 = vadd.f32 %v1998, %v1984
        %v2000 = vadd.f32 %v1999, %v1985
        %v2001 = vadd.f32 %v2000, %v1986
        %v2002 = vadd.f32 %v2001, %v1987
        %v2003 = vadd.f32 %v2002, %v1988
        %v2004 = vadd.f32 %v2003, %v1989
        %v2005 = vadd.f32 %v2004, %v1990
        %v2006 = vadd.f32 %v2005, %v1991
        %v2007 = vadd.f32 %v2006, %v1992
        %v2008 = vadd.f32 %v2007, %v1993
        %v2009 = vadd.f32 %v2008, %v1994
        %v2010 = vadd.f32 %v2009, %v1995
        %v2011 = vadd.f32 %v2010, %v1996
        %v2012 = vadd.f32 %v2011, %v1997
        %v2013 = vrot.slane %v2012, 4
        %v2014 = vadd.f32 %v2012, %v2013
        %v2015 = vrot.slane %v2014, 2
        %v2016 = vadd.f32 %v2014, %v2015
        %v2017 = vrot.slane %v2016, 1
        %v2018 = vadd.f32 %v2016, %v2017
        %v2019 = vmul.f32 %v1752, %v1566
        %v2020 = vmul.f32 %v1754, %v1567
        %v2021 = vmul.f32 %v1757, %v1568
        %v2022 = vmul.f32 %v1759, %v1569
        %v2023 = vmul.f32 %v1762, %v1570
        %v2024 = vmul.f32 %v1764, %v1571
        %v2025 = vmul.f32 %v1767, %v1572
        %v2026 = vmul.f32 %v1769, %v1573
        %v2027 = vmul.f32 %v1772, %v1574
        %v2028 = vmul.f32 %v1774, %v1575
        %v2029 = vmul.f32 %v1777, %v1576
        %v2030 = vmul.f32 %v1779, %v1577
        %v2031 = vmul.f32 %v1782, %v1578
        %v2032 = vmul.f32 %v1784, %v1579
        %v2033 = vmul.f32 %v1787, %v1580
        %v2034 = vmul.f32 %v1789, %v1581
        %v2035 = vadd.f32 %v2019, %v2020
        %v2036 = vadd.f32 %v2035, %v2021
        %v2037 = vadd.f32 %v2036, %v2022
        %v2038 = vadd.f32 %v2037, %v2023
        %v2039 = vadd.f32 %v2038, %v2024
        %v2040 = vadd.f32 %v2039, %v2025
        %v2041 = vadd.f32 %v2040, %v2026
        %v2042 = vadd.f32 %v2041, %v2027
        %v2043 = vadd.f32 %v2042, %v2028
        %v2044 = vadd.f32 %v2043, %v2029
        %v2045 = vadd.f32 %v2044, %v2030
        %v2046 = vadd.f32 %v2045, %v2031
        %v2047 = vadd.f32 %v2046, %v2032
        %v2048 = vadd.f32 %v2047, %v2033
        %v2049 = vadd.f32 %v2048, %v2034
        %v2050 = vrot.slane %v2049, 4
        %v2051 = vadd.f32 %v2049, %v2050
        %v2052 = vrot.slane %v2051, 2
        %v2053 = vadd.f32 %v2051, %v2052
        %v2054 = vrot.slane %v2053, 1
        %v2055 = vadd.f32 %v2053, %v2054
        %v2056 = vadd.f32 %v1944, %v2055
        %v2057 = vmul.f32 %v1792, %v1566
        %v2058 = vmul.f32 %v1794, %v1567
        %v2059 = vmul.f32 %v1797, %v1568
        %v2060 = vmul.f32 %v1799, %v1569
        %v2061 = vmul.f32 %v1802, %v1570
        %v2062 = vmul.f32 %v1804, %v1571
        %v2063 = vmul.f32 %v1807, %v1572
        %v2064 = vmul.f32 %v1809, %v1573
        %v2065 = vmul.f32 %v1812, %v1574
        %v2066 = vmul.f32 %v1814, %v1575
        %v2067 = vmul.f32 %v1817, %v1576
        %v2068 = vmul.f32 %v1819, %v1577
        %v2069 = vmul.f32 %v1822, %v1578
        %v2070 = vmul.f32 %v1824, %v1579
        %v2071 = vmul.f32 %v1827, %v1580
        %v2072 = vmul.f32 %v1829, %v1581
        %v2073 = vadd.f32 %v2057, %v2058
        %v2074 = vadd.f32 %v2073, %v2059
        %v2075 = vadd.f32 %v2074, %v2060
        %v2076 = vadd.f32 %v2075, %v2061
        %v2077 = vadd.f32 %v2076, %v2062
        %v2078 = vadd.f32 %v2077, %v2063
        %v2079 = vadd.f32 %v2078, %v2064
        %v2080 = vadd.f32 %v2079, %v2065
        %v2081 = vadd.f32 %v2080, %v2066
        %v2082 = vadd.f32 %v2081, %v2067
        %v2083 = vadd.f32 %v2082, %v2068
        %v2084 = vadd.f32 %v2083, %v2069
        %v2085 = vadd.f32 %v2084, %v2070
        %v2086 = vadd.f32 %v2085, %v2071
        %v2087 = vadd.f32 %v2086, %v2072
        %v2088 = vrot.slane %v2087, 4
        %v2089 = vadd.f32 %v2087, %v2088
        %v2090 = vrot.slane %v2089, 2
        %v2091 = vadd.f32 %v2089, %v2090
        %v2092 = vrot.slane %v2091, 1
        %v2093 = vadd.f32 %v2091, %v2092
        %v2094 = vadd.f32 %v1981, %v2093
        %v2095 = vmul.f32 %v1832, %v1566
        %v2096 = vmul.f32 %v1834, %v1567
        %v2097 = vmul.f32 %v1837, %v1568
        %v2098 = vmul.f32 %v1839, %v1569
        %v2099 = vmul.f32 %v1842, %v1570
        %v2100 = vmul.f32 %v1844, %v1571
        %v2101 = vmul.f32 %v1847, %v1572
        %v2102 = vmul.f32 %v1849, %v1573
        %v2103 = vmul.f32 %v1852, %v1574
        %v2104 = vmul.f32 %v1854, %v1575
        %v2105 = vmul.f32 %v1857, %v1576
        %v2106 = vmul.f32 %v1859, %v1577
        %v2107 = vmul.f32 %v1862, %v1578
        %v2108 = vmul.f32 %v1864, %v1579
        %v2109 = vmul.f32 %v1867, %v1580
        %v2110 = vmul.f32 %v1869, %v1581
        %v2111 = vadd.f32 %v2095, %v2096
        %v2112 = vadd.f32 %v2111, %v2097
        %v2113 = vadd.f32 %v2112, %v2098
        %v2114 = vadd.f32 %v2113, %v2099
        %v2115 = vadd.f32 %v2114, %v2100
        %v2116 = vadd.f32 %v2115, %v2101
        %v2117 = vadd.f32 %v2116, %v2102
        %v2118 = vadd.f32 %v2117, %v2103
        %v2119 = vadd.f32 %v2118, %v2104
        %v2120 = vadd.f32 %v2119, %v2105
        %v2121 = vadd.f32 %v2120, %v2106
        %v2122 = vadd.f32 %v2121, %v2107
        %v2123 = vadd.f32 %v2122, %v2108
        %v2124 = vadd.f32 %v2123, %v2109
        %v2125 = vadd.f32 %v2124, %v2110
        %v2126 = vrot.slane %v2125, 4
        %v2127 = vadd.f32 %v2125, %v2126
        %v2128 = vrot.slane %v2127, 2
        %v2129 = vadd.f32 %v2127, %v2128
        %v2130 = vrot.slane %v2129, 1
        %v2131 = vadd.f32 %v2129, %v2130
        %v2132 = vadd.f32 %v2018, %v2131
        %v2133 = vsub.f32 %v1502, %v2056
        %v2134 = vadd.f32 %v2133, 1e-06
        %v2135 = vsub.f32 %v1502, %v2094
        %v2136 = vadd.f32 %v2135, 1e-06
        %v2137 = vsub.f32 %v1502, %v2132
        %v2138 = vadd.f32 %v2137, 1e-06
        %v2139 = vmul.f32 %v2134, %v2134
        %v2140 = vmul.f32 %v2136, %v2136
        %v2142 = vrot.slane %v2140, 1
        %v2144 = vadd.f32 %v2139, %v2142
        %v2145 = vmul.f32 %v2138, %v2138
        %v2147 = vrot.slane %v2145, 2
        %v2149 = vadd.f32 %v2144, %v2147
        %v2150 = vrsqrt.pop %v2149
        %v2151 = vmul.f32 %v2150, %v2149
        %v2152 = vmul.f32 %v2151, %v2150
        %v2153 = vmul.f32 0.5, %v2152
        %v2154 = vsub.f32 1.5, %v2153
        %v2155 = vmul.f32 %v2150, %v2154
        %v2156 = vmul.f32 %v2149, %v2155
        %vm2157 = vcmp.eq.f32.partialorder %v2149, inf
        %v2158 = vsel %vm2157, %v2149, %v2156
        %vm2159 = vcmp.eq.f32.partialorder %v2149, 0.0
        %v2160 = vand.u32 %v2149, 2147483648
        %v2161 = vsel %vm2159, %v2160, %v2158
        %v2162 = vsub.f32 1.0, %v1907
        %v2163 = vmul.f32 %v2161, %v2162
        %v2164 = vadd.f32 %v1499, %v2163
        %v2165 = vperm.slane %v368, 6
        %v2166 = vmul.f32 %v359, %v2165
        %v2167 = vsub.f32 %v230, %v2166
        %v2168 = vadd.f32 %v2167, 0.5
        %v2169 = vmul.f32 %v2168, 16.0
        %v2170 = vcvt.f32.s32.to.zero.pseudo %v2169
        %vm2171 = vcmp.gt.s32.totalorder %v2170, 0
        %v2172 = vsel %vm2171, %v2170, 0
        %vm2173 = vcmp.lt.s32.totalorder %v2172, 15
        %v2174 = vsel %vm2173, %v2172, 15
        %v2175 = vmul.u32 %v2174, 256
        %v2176 = vmul.u32 %v2174, 16
        %v2177 = vrot.slane %v2176, 1
        %v2178 = vadd.s32 %v2175, %v2177
        %v2179 = vrot.slane %v2174, 2
        %v2180 = vadd.s32 %v2178, %v2179
        %v2181 = vshra.s32 %v2180, 7
        %v2182 = vperm.slane %v2181, 0
        %vm2183 = vcmp.eq.s32.totalorder %v2182, %v370
        %vm2184 = vcmp.eq.s32.totalorder %v2182, %v371
        %vm2185 = vcmp.eq.s32.totalorder %v2182, %v372
        %vm2186 = vcmp.eq.s32.totalorder %v2182, %v373
        %v2187 = vsel %vm2183, 1, 0
        %v2188 = vsel %vm2184, 1, 0
        %v2189 = vsel %vm2185, 1, 0
        %v2190 = vsel %vm2186, 1, 0
        %v2191 = vcvt.s32.f32 %v2187
        %v2192 = vcvt.s32.f32 %v2188
        %v2193 = vcvt.s32.f32 %v2189
        %v2194 = vcvt.s32.f32 %v2190
        %v2195 = vpack.c.bf16 %v2192, %v2191
        %v2196 = vpack.c.bf16 %v2194, %v2193
        %v2197 = vand.u32 %v2180, 127
        %v2198 = vperm.slane %v2197, 0
        %vm2199 = vcmp.eq.s32.totalorder %v2198, %v370
        %vm2200 = vcmp.eq.s32.totalorder %v2198, %v371
        %vm2201 = vcmp.eq.s32.totalorder %v2198, %v372
        %vm2202 = vcmp.eq.s32.totalorder %v2198, %v373
        %vm2203 = vcmp.eq.s32.totalorder %v2198, %v374
        %vm2204 = vcmp.eq.s32.totalorder %v2198, %v375
        %vm2205 = vcmp.eq.s32.totalorder %v2198, %v376
        %vm2206 = vcmp.eq.s32.totalorder %v2198, %v377
        %vm2207 = vcmp.eq.s32.totalorder %v2198, %v378
        %vm2208 = vcmp.eq.s32.totalorder %v2198, %v379
        %vm2209 = vcmp.eq.s32.totalorder %v2198, %v380
        %vm2210 = vcmp.eq.s32.totalorder %v2198, %v381
        %vm2211 = vcmp.eq.s32.totalorder %v2198, %v382
        %vm2212 = vcmp.eq.s32.totalorder %v2198, %v383
        %vm2213 = vcmp.eq.s32.totalorder %v2198, %v384
        %vm2214 = vcmp.eq.s32.totalorder %v2198, %v385
        %v2215 = vsel %vm2199, 1, 0
        %v2216 = vsel %vm2200, 1, 0
        %v2217 = vsel %vm2201, 1, 0
        %v2218 = vsel %vm2202, 1, 0
        %v2219 = vsel %vm2203, 1, 0
        %v2220 = vsel %vm2204, 1, 0
        %v2221 = vsel %vm2205, 1, 0
        %v2222 = vsel %vm2206, 1, 0
        %v2223 = vsel %vm2207, 1, 0
        %v2224 = vsel %vm2208, 1, 0
        %v2225 = vsel %vm2209, 1, 0
        %v2226 = vsel %vm2210, 1, 0
        %v2227 = vsel %vm2211, 1, 0
        %v2228 = vsel %vm2212, 1, 0
        %v2229 = vsel %vm2213, 1, 0
        %v2230 = vsel %vm2214, 1, 0
        %v2231 = vcvt.s32.f32 %v2215
        %v2232 = vcvt.s32.f32 %v2216
        %v2233 = vcvt.s32.f32 %v2217
        %v2234 = vcvt.s32.f32 %v2218
        %v2235 = vcvt.s32.f32 %v2219
        %v2236 = vcvt.s32.f32 %v2220
        %v2237 = vcvt.s32.f32 %v2221
        %v2238 = vcvt.s32.f32 %v2222
        %v2239 = vcvt.s32.f32 %v2223
        %v2240 = vcvt.s32.f32 %v2224
        %v2241 = vcvt.s32.f32 %v2225
        %v2242 = vcvt.s32.f32 %v2226
        %v2243 = vcvt.s32.f32 %v2227
        %v2244 = vcvt.s32.f32 %v2228
        %v2245 = vcvt.s32.f32 %v2229
        %v2246 = vcvt.s32.f32 %v2230
        %2247 = vmatpush.bf16.msra.mxu0 0
        %2248 = vmatpush.bf16.msra.mxu0 0
        %2249 = vmatpush.bf16.msra.mxu0 0
        %2250 = vmatpush.bf16.msra.mxu0 0
        %2251 = vmatpush.bf16.msra.mxu0 0
        %2252 = vmatpush.bf16.msra.mxu0 0
        %2253 = vmatpush.bf16.msra.mxu0 %v2196
        %2254 = vmatpush.bf16.msra.mxu0 %v2195
        %2255 = vmatmul.bf16.gmra.mxu0 %v750
        %v2256 = vpop.f32.mrf.mxu0
        %v2257 = vadd.f32 0.0, %v2256
        %v2258 = vpop.f32.mrf.mxu0
        %v2259 = vadd.f32 0.0, %v2258
        %2260 = vmatmul.bf16.gmra.mxu0 %v753
        %v2261 = vpop.f32.mrf.mxu0
        %v2262 = vadd.f32 0.0, %v2261
        %v2263 = vpop.f32.mrf.mxu0
        %v2264 = vadd.f32 0.0, %v2263
        %2265 = vmatmul.bf16.gmra.mxu0 %v756
        %v2266 = vpop.f32.mrf.mxu0
        %v2267 = vadd.f32 0.0, %v2266
        %v2268 = vpop.f32.mrf.mxu0
        %v2269 = vadd.f32 0.0, %v2268
        %2270 = vmatmul.bf16.gmra.mxu0 %v759
        %v2271 = vpop.f32.mrf.mxu0
        %v2272 = vadd.f32 0.0, %v2271
        %v2273 = vpop.f32.mrf.mxu0
        %v2274 = vadd.f32 0.0, %v2273
        %2275 = vmatmul.bf16.gmra.mxu0 %v762
        %v2276 = vpop.f32.mrf.mxu0
        %v2277 = vadd.f32 0.0, %v2276
        %v2278 = vpop.f32.mrf.mxu0
        %v2279 = vadd.f32 0.0, %v2278
        %2280 = vmatmul.bf16.gmra.mxu0 %v765
        %v2281 = vpop.f32.mrf.mxu0
        %v2282 = vadd.f32 0.0, %v2281
        %v2283 = vpop.f32.mrf.mxu0
        %v2284 = vadd.f32 0.0, %v2283
        %2285 = vmatmul.bf16.gmra.mxu0 %v768
        %v2286 = vpop.f32.mrf.mxu0
        %v2287 = vadd.f32 0.0, %v2286
        %v2288 = vpop.f32.mrf.mxu0
        %v2289 = vadd.f32 0.0, %v2288
        %2290 = vmatmul.bf16.gmra.mxu0 %v771
        %v2291 = vpop.f32.mrf.mxu0
        %v2292 = vadd.f32 0.0, %v2291
        %v2293 = vpop.f32.mrf.mxu0
        %v2294 = vadd.f32 0.0, %v2293
        %2295 = vmatmul.bf16.gmra.mxu0 %v774
        %v2296 = vpop.f32.mrf.mxu0
        %v2297 = vadd.f32 0.0, %v2296
        %v2298 = vpop.f32.mrf.mxu0
        %v2299 = vadd.f32 0.0, %v2298
        %2300 = vmatmul.bf16.gmra.mxu0 %v777
        %v2301 = vpop.f32.mrf.mxu0
        %v2302 = vadd.f32 0.0, %v2301
        %v2303 = vpop.f32.mrf.mxu0
        %v2304 = vadd.f32 0.0, %v2303
        %2305 = vmatmul.bf16.gmra.mxu0 %v780
        %v2306 = vpop.f32.mrf.mxu0
        %v2307 = vadd.f32 0.0, %v2306
        %v2308 = vpop.f32.mrf.mxu0
        %v2309 = vadd.f32 0.0, %v2308
        %2310 = vmatmul.bf16.gmra.mxu0 %v783
        %v2311 = vpop.f32.mrf.mxu0
        %v2312 = vadd.f32 0.0, %v2311
        %v2313 = vpop.f32.mrf.mxu0
        %v2314 = vadd.f32 0.0, %v2313
        %2315 = vmatmul.bf16.gmra.mxu0 %v786
        %v2316 = vpop.f32.mrf.mxu0
        %v2317 = vadd.f32 0.0, %v2316
        %v2318 = vpop.f32.mrf.mxu0
        %v2319 = vadd.f32 0.0, %v2318
        %2320 = vmatmul.bf16.gmra.mxu0 %v789
        %v2321 = vpop.f32.mrf.mxu0
        %v2322 = vadd.f32 0.0, %v2321
        %v2323 = vpop.f32.mrf.mxu0
        %v2324 = vadd.f32 0.0, %v2323
        %2325 = vmatmul.bf16.gmra.mxu0 %v792
        %v2326 = vpop.f32.mrf.mxu0
        %v2327 = vadd.f32 0.0, %v2326
        %v2328 = vpop.f32.mrf.mxu0
        %v2329 = vadd.f32 0.0, %v2328
        %2330 = vmatmul.bf16.gmra.mxu0 %v795
        %v2331 = vpop.f32.mrf.mxu0
        %v2332 = vadd.f32 0.0, %v2331
        %v2333 = vpop.f32.mrf.mxu0
        %v2334 = vadd.f32 0.0, %v2333
        %2335 = vmatmul.bf16.gmra.mxu0 %v798
        %v2336 = vpop.f32.mrf.mxu0
        %v2337 = vadd.f32 0.0, %v2336
        %v2338 = vpop.f32.mrf.mxu0
        %v2339 = vadd.f32 0.0, %v2338
        %2340 = vmatmul.bf16.gmra.mxu0 %v801
        %v2341 = vpop.f32.mrf.mxu0
        %v2342 = vadd.f32 0.0, %v2341
        %v2343 = vpop.f32.mrf.mxu0
        %v2344 = vadd.f32 0.0, %v2343
        %2345 = vmatmul.bf16.gmra.mxu0 %v804
        %v2346 = vpop.f32.mrf.mxu0
        %v2347 = vadd.f32 0.0, %v2346
        %v2348 = vpop.f32.mrf.mxu0
        %v2349 = vadd.f32 0.0, %v2348
        %2350 = vmatmul.bf16.gmra.mxu0 %v807
        %v2351 = vpop.f32.mrf.mxu0
        %v2352 = vadd.f32 0.0, %v2351
        %v2353 = vpop.f32.mrf.mxu0
        %v2354 = vadd.f32 0.0, %v2353
        %2355 = vmatmul.bf16.gmra.mxu0 %v810
        %v2356 = vpop.f32.mrf.mxu0
        %v2357 = vadd.f32 0.0, %v2356
        %v2358 = vpop.f32.mrf.mxu0
        %v2359 = vadd.f32 0.0, %v2358
        %2360 = vmatmul.bf16.gmra.mxu0 %v813
        %v2361 = vpop.f32.mrf.mxu0
        %v2362 = vadd.f32 0.0, %v2361
        %v2363 = vpop.f32.mrf.mxu0
        %v2364 = vadd.f32 0.0, %v2363
        %2365 = vmatmul.bf16.gmra.mxu0 %v816
        %v2366 = vpop.f32.mrf.mxu0
        %v2367 = vadd.f32 0.0, %v2366
        %v2368 = vpop.f32.mrf.mxu0
        %v2369 = vadd.f32 0.0, %v2368
        %2370 = vmatmul.bf16.gmra.mxu0 %v819
        %v2371 = vpop.f32.mrf.mxu0
        %v2372 = vadd.f32 0.0, %v2371
        %v2373 = vpop.f32.mrf.mxu0
        %v2374 = vadd.f32 0.0, %v2373
        %2375 = vmatmul.bf16.gmra.mxu0 %v822
        %v2376 = vpop.f32.mrf.mxu0
        %v2377 = vadd.f32 0.0, %v2376
        %v2378 = vpop.f32.mrf.mxu0
        %v2379 = vadd.f32 0.0, %v2378
        %2380 = vmatmul.bf16.gmra.mxu0 %v825
        %v2381 = vpop.f32.mrf.mxu0
        %v2382 = vadd.f32 0.0, %v2381
        %v2383 = vpop.f32.mrf.mxu0
        %v2384 = vadd.f32 0.0, %v2383
        %2385 = vmatmul.bf16.gmra.mxu0 %v828
        %v2386 = vpop.f32.mrf.mxu0
        %v2387 = vadd.f32 0.0, %v2386
        %v2388 = vpop.f32.mrf.mxu0
        %v2389 = vadd.f32 0.0, %v2388
        %2390 = vmatmul.bf16.gmra.mxu0 %v831
        %v2391 = vpop.f32.mrf.mxu0
        %v2392 = vadd.f32 0.0, %v2391
        %v2393 = vpop.f32.mrf.mxu0
        %v2394 = vadd.f32 0.0, %v2393
        %2395 = vmatmul.bf16.gmra.mxu0 %v834
        %v2396 = vpop.f32.mrf.mxu0
        %v2397 = vadd.f32 0.0, %v2396
        %v2398 = vpop.f32.mrf.mxu0
        %v2399 = vadd.f32 0.0, %v2398
        %2400 = vmatmul.bf16.gmra.mxu0 %v837
        %v2401 = vpop.f32.mrf.mxu0
        %v2402 = vadd.f32 0.0, %v2401
        %v2403 = vpop.f32.mrf.mxu0
        %v2404 = vadd.f32 0.0, %v2403
        %2405 = vmatmul.bf16.gmra.mxu0 %v840
        %v2406 = vpop.f32.mrf.mxu0
        %v2407 = vadd.f32 0.0, %v2406
        %v2408 = vpop.f32.mrf.mxu0
        %v2409 = vadd.f32 0.0, %v2408
        %2410 = vmatmul.bf16.gmra.mxu0 %v843
        %v2411 = vpop.f32.mrf.mxu0
        %v2412 = vadd.f32 0.0, %v2411
        %v2413 = vpop.f32.mrf.mxu0
        %v2414 = vadd.f32 0.0, %v2413
        %2415 = vmatmul.bf16.gmra.mxu0 %v846
        %v2416 = vpop.f32.mrf.mxu0
        %v2417 = vadd.f32 0.0, %v2416
        %v2418 = vpop.f32.mrf.mxu0
        %v2419 = vadd.f32 0.0, %v2418
        %2420 = vmatmul.bf16.gmra.mxu0 %v849
        %v2421 = vpop.f32.mrf.mxu0
        %v2422 = vadd.f32 0.0, %v2421
        %v2423 = vpop.f32.mrf.mxu0
        %v2424 = vadd.f32 0.0, %v2423
        %2425 = vmatmul.bf16.gmra.mxu0 %v852
        %v2426 = vpop.f32.mrf.mxu0
        %v2427 = vadd.f32 0.0, %v2426
        %v2428 = vpop.f32.mrf.mxu0
        %v2429 = vadd.f32 0.0, %v2428
        %2430 = vmatmul.bf16.gmra.mxu0 %v855
        %v2431 = vpop.f32.mrf.mxu0
        %v2432 = vadd.f32 0.0, %v2431
        %v2433 = vpop.f32.mrf.mxu0
        %v2434 = vadd.f32 0.0, %v2433
        %2435 = vmatmul.bf16.gmra.mxu0 %v858
        %v2436 = vpop.f32.mrf.mxu0
        %v2437 = vadd.f32 0.0, %v2436
        %v2438 = vpop.f32.mrf.mxu0
        %v2439 = vadd.f32 0.0, %v2438
        %2440 = vmatmul.bf16.gmra.mxu0 %v861
        %v2441 = vpop.f32.mrf.mxu0
        %v2442 = vadd.f32 0.0, %v2441
        %v2443 = vpop.f32.mrf.mxu0
        %v2444 = vadd.f32 0.0, %v2443
        %2445 = vmatmul.bf16.gmra.mxu0 %v864
        %v2446 = vpop.f32.mrf.mxu0
        %v2447 = vadd.f32 0.0, %v2446
        %v2448 = vpop.f32.mrf.mxu0
        %v2449 = vadd.f32 0.0, %v2448
        %2450 = vmatmul.bf16.gmra.mxu0 %v867
        %v2451 = vpop.f32.mrf.mxu0
        %v2452 = vadd.f32 0.0, %v2451
        %v2453 = vpop.f32.mrf.mxu0
        %v2454 = vadd.f32 0.0, %v2453
        %2455 = vmatmul.bf16.gmra.mxu0 %v870
        %v2456 = vpop.f32.mrf.mxu0
        %v2457 = vadd.f32 0.0, %v2456
        %v2458 = vpop.f32.mrf.mxu0
        %v2459 = vadd.f32 0.0, %v2458
        %2460 = vmatmul.bf16.gmra.mxu0 %v873
        %v2461 = vpop.f32.mrf.mxu0
        %v2462 = vadd.f32 0.0, %v2461
        %v2463 = vpop.f32.mrf.mxu0
        %v2464 = vadd.f32 0.0, %v2463
        %2465 = vmatmul.bf16.gmra.mxu0 %v876
        %v2466 = vpop.f32.mrf.mxu0
        %v2467 = vadd.f32 0.0, %v2466
        %v2468 = vpop.f32.mrf.mxu0
        %v2469 = vadd.f32 0.0, %v2468
        %2470 = vmatmul.bf16.gmra.mxu0 %v879
        %v2471 = vpop.f32.mrf.mxu0
        %v2472 = vadd.f32 0.0, %v2471
        %v2473 = vpop.f32.mrf.mxu0
        %v2474 = vadd.f32 0.0, %v2473
        %2475 = vmatmul.bf16.gmra.mxu0 %v882
        %v2476 = vpop.f32.mrf.mxu0
        %v2477 = vadd.f32 0.0, %v2476
        %v2478 = vpop.f32.mrf.mxu0
        %v2479 = vadd.f32 0.0, %v2478
        %2480 = vmatmul.bf16.gmra.mxu0 %v885
        %v2481 = vpop.f32.mrf.mxu0
        %v2482 = vadd.f32 0.0, %v2481
        %v2483 = vpop.f32.mrf.mxu0
        %v2484 = vadd.f32 0.0, %v2483
        %2485 = vmatmul.bf16.gmra.mxu0 %v888
        %v2486 = vpop.f32.mrf.mxu0
        %v2487 = vadd.f32 0.0, %v2486
        %v2488 = vpop.f32.mrf.mxu0
        %v2489 = vadd.f32 0.0, %v2488
        %2490 = vmatmul.bf16.gmra.mxu0 %v891
        %v2491 = vpop.f32.mrf.mxu0
        %v2492 = vadd.f32 0.0, %v2491
        %v2493 = vpop.f32.mrf.mxu0
        %v2494 = vadd.f32 0.0, %v2493
        %2495 = vmatmul.bf16.gmra.mxu0 %v894
        %v2496 = vpop.f32.mrf.mxu0
        %v2497 = vadd.f32 0.0, %v2496
        %v2498 = vpop.f32.mrf.mxu0
        %v2499 = vadd.f32 0.0, %v2498
        %2500 = vmatmul.bf16.gmra.mxu0 %v897
        %v2501 = vpop.f32.mrf.mxu0
        %v2502 = vadd.f32 0.0, %v2501
        %v2503 = vpop.f32.mrf.mxu0
        %v2504 = vadd.f32 0.0, %v2503
        %2505 = vmatmul.bf16.gmra.mxu0 %v900
        %v2506 = vpop.f32.mrf.mxu0
        %v2507 = vadd.f32 0.0, %v2506
        %v2508 = vpop.f32.mrf.mxu0
        %v2509 = vadd.f32 0.0, %v2508
        %2510 = vmatmul.bf16.gmra.mxu0 %v903
        %v2511 = vpop.f32.mrf.mxu0
        %v2512 = vadd.f32 0.0, %v2511
        %v2513 = vpop.f32.mrf.mxu0
        %v2514 = vadd.f32 0.0, %v2513
        %2515 = vmatmul.bf16.gmra.mxu0 %v906
        %v2516 = vpop.f32.mrf.mxu0
        %v2517 = vadd.f32 0.0, %v2516
        %v2518 = vpop.f32.mrf.mxu0
        %v2519 = vadd.f32 0.0, %v2518
        %2520 = vmatmul.bf16.gmra.mxu0 %v909
        %v2521 = vpop.f32.mrf.mxu0
        %v2522 = vadd.f32 0.0, %v2521
        %v2523 = vpop.f32.mrf.mxu0
        %v2524 = vadd.f32 0.0, %v2523
        %2525 = vmatmul.bf16.gmra.mxu0 %v912
        %v2526 = vpop.f32.mrf.mxu0
        %v2527 = vadd.f32 0.0, %v2526
        %v2528 = vpop.f32.mrf.mxu0
        %v2529 = vadd.f32 0.0, %v2528
        %2530 = vmatmul.bf16.gmra.mxu0 %v915
        %v2531 = vpop.f32.mrf.mxu0
        %v2532 = vadd.f32 0.0, %v2531
        %v2533 = vpop.f32.mrf.mxu0
        %v2534 = vadd.f32 0.0, %v2533
        %2535 = vdwg.mxu0
        %v2536 = vmul.f32 %v2257, %v2231
        %v2537 = vmul.f32 %v2259, %v2232
        %v2538 = vmul.f32 %v2262, %v2233
        %v2539 = vmul.f32 %v2264, %v2234
        %v2540 = vmul.f32 %v2267, %v2235
        %v2541 = vmul.f32 %v2269, %v2236
        %v2542 = vmul.f32 %v2272, %v2237
        %v2543 = vmul.f32 %v2274, %v2238
        %v2544 = vmul.f32 %v2277, %v2239
        %v2545 = vmul.f32 %v2279, %v2240
        %v2546 = vmul.f32 %v2282, %v2241
        %v2547 = vmul.f32 %v2284, %v2242
        %v2548 = vmul.f32 %v2287, %v2243
        %v2549 = vmul.f32 %v2289, %v2244
        %v2550 = vmul.f32 %v2292, %v2245
        %v2551 = vmul.f32 %v2294, %v2246
        %v2552 = vadd.f32 %v2536, %v2537
        %v2553 = vadd.f32 %v2552, %v2538
        %v2554 = vadd.f32 %v2553, %v2539
        %v2555 = vadd.f32 %v2554, %v2540
        %v2556 = vadd.f32 %v2555, %v2541
        %v2557 = vadd.f32 %v2556, %v2542
        %v2558 = vadd.f32 %v2557, %v2543
        %v2559 = vadd.f32 %v2558, %v2544
        %v2560 = vadd.f32 %v2559, %v2545
        %v2561 = vadd.f32 %v2560, %v2546
        %v2562 = vadd.f32 %v2561, %v2547
        %v2563 = vadd.f32 %v2562, %v2548
        %v2564 = vadd.f32 %v2563, %v2549
        %v2565 = vadd.f32 %v2564, %v2550
        %v2566 = vadd.f32 %v2565, %v2551
        %v2567 = vrot.slane %v2566, 4
        %v2568 = vadd.f32 %v2566, %v2567
        %v2569 = vrot.slane %v2568, 2
        %v2570 = vadd.f32 %v2568, %v2569
        %v2571 = vrot.slane %v2570, 1
        %v2572 = vadd.f32 %v2570, %v2571
        %v2573 = vmul.f32 %v2297, %v2231
        %v2574 = vmul.f32 %v2299, %v2232
        %v2575 = vmul.f32 %v2302, %v2233
        %v2576 = vmul.f32 %v2304, %v2234
        %v2577 = vmul.f32 %v2307, %v2235
        %v2578 = vmul.f32 %v2309, %v2236
        %v2579 = vmul.f32 %v2312, %v2237
        %v2580 = vmul.f32 %v2314, %v2238
        %v2581 = vmul.f32 %v2317, %v2239
        %v2582 = vmul.f32 %v2319, %v2240
        %v2583 = vmul.f32 %v2322, %v2241
        %v2584 = vmul.f32 %v2324, %v2242
        %v2585 = vmul.f32 %v2327, %v2243
        %v2586 = vmul.f32 %v2329, %v2244
        %v2587 = vmul.f32 %v2332, %v2245
        %v2588 = vmul.f32 %v2334, %v2246
        %v2589 = vadd.f32 %v2573, %v2574
        %v2590 = vadd.f32 %v2589, %v2575
        %v2591 = vadd.f32 %v2590, %v2576
        %v2592 = vadd.f32 %v2591, %v2577
        %v2593 = vadd.f32 %v2592, %v2578
        %v2594 = vadd.f32 %v2593, %v2579
        %v2595 = vadd.f32 %v2594, %v2580
        %v2596 = vadd.f32 %v2595, %v2581
        %v2597 = vadd.f32 %v2596, %v2582
        %v2598 = vadd.f32 %v2597, %v2583
        %v2599 = vadd.f32 %v2598, %v2584
        %v2600 = vadd.f32 %v2599, %v2585
        %v2601 = vadd.f32 %v2600, %v2586
        %v2602 = vadd.f32 %v2601, %v2587
        %v2603 = vadd.f32 %v2602, %v2588
        %v2604 = vrot.slane %v2603, 4
        %v2605 = vadd.f32 %v2603, %v2604
        %v2606 = vrot.slane %v2605, 2
        %v2607 = vadd.f32 %v2605, %v2606
        %v2608 = vrot.slane %v2607, 1
        %v2609 = vadd.f32 %v2607, %v2608
        %v2610 = vmul.f32 %v2337, %v2231
        %v2611 = vmul.f32 %v2339, %v2232
        %v2612 = vmul.f32 %v2342, %v2233
        %v2613 = vmul.f32 %v2344, %v2234
        %v2614 = vmul.f32 %v2347, %v2235
        %v2615 = vmul.f32 %v2349, %v2236
        %v2616 = vmul.f32 %v2352, %v2237
        %v2617 = vmul.f32 %v2354, %v2238
        %v2618 = vmul.f32 %v2357, %v2239
        %v2619 = vmul.f32 %v2359, %v2240
        %v2620 = vmul.f32 %v2362, %v2241
        %v2621 = vmul.f32 %v2364, %v2242
        %v2622 = vmul.f32 %v2367, %v2243
        %v2623 = vmul.f32 %v2369, %v2244
        %v2624 = vmul.f32 %v2372, %v2245
        %v2625 = vmul.f32 %v2374, %v2246
        %v2626 = vadd.f32 %v2610, %v2611
        %v2627 = vadd.f32 %v2626, %v2612
        %v2628 = vadd.f32 %v2627, %v2613
        %v2629 = vadd.f32 %v2628, %v2614
        %v2630 = vadd.f32 %v2629, %v2615
        %v2631 = vadd.f32 %v2630, %v2616
        %v2632 = vadd.f32 %v2631, %v2617
        %v2633 = vadd.f32 %v2632, %v2618
        %v2634 = vadd.f32 %v2633, %v2619
        %v2635 = vadd.f32 %v2634, %v2620
        %v2636 = vadd.f32 %v2635, %v2621
        %v2637 = vadd.f32 %v2636, %v2622
        %v2638 = vadd.f32 %v2637, %v2623
        %v2639 = vadd.f32 %v2638, %v2624
        %v2640 = vadd.f32 %v2639, %v2625
        %v2641 = vrot.slane %v2640, 4
        %v2642 = vadd.f32 %v2640, %v2641
        %v2643 = vrot.slane %v2642, 2
        %v2644 = vadd.f32 %v2642, %v2643
        %v2645 = vrot.slane %v2644, 1
        %v2646 = vadd.f32 %v2644, %v2645
        %v2647 = vmul.f32 %v2377, %v2231
        %v2648 = vmul.f32 %v2379, %v2232
        %v2649 = vmul.f32 %v2382, %v2233
        %v2650 = vmul.f32 %v2384, %v2234
        %v2651 = vmul.f32 %v2387, %v2235
        %v2652 = vmul.f32 %v2389, %v2236
        %v2653 = vmul.f32 %v2392, %v2237
        %v2654 = vmul.f32 %v2394, %v2238
        %v2655 = vmul.f32 %v2397, %v2239
        %v2656 = vmul.f32 %v2399, %v2240
        %v2657 = vmul.f32 %v2402, %v2241
        %v2658 = vmul.f32 %v2404, %v2242
        %v2659 = vmul.f32 %v2407, %v2243
        %v2660 = vmul.f32 %v2409, %v2244
        %v2661 = vmul.f32 %v2412, %v2245
        %v2662 = vmul.f32 %v2414, %v2246
        %v2663 = vadd.f32 %v2647, %v2648
        %v2664 = vadd.f32 %v2663, %v2649
        %v2665 = vadd.f32 %v2664, %v2650
        %v2666 = vadd.f32 %v2665, %v2651
        %v2667 = vadd.f32 %v2666, %v2652
        %v2668 = vadd.f32 %v2667, %v2653
        %v2669 = vadd.f32 %v2668, %v2654
        %v2670 = vadd.f32 %v2669, %v2655
        %v2671 = vadd.f32 %v2670, %v2656
        %v2672 = vadd.f32 %v2671, %v2657
        %v2673 = vadd.f32 %v2672, %v2658
        %v2674 = vadd.f32 %v2673, %v2659
        %v2675 = vadd.f32 %v2674, %v2660
        %v2676 = vadd.f32 %v2675, %v2661
        %v2677 = vadd.f32 %v2676, %v2662
        %v2678 = vrot.slane %v2677, 4
        %v2679 = vadd.f32 %v2677, %v2678
        %v2680 = vrot.slane %v2679, 2
        %v2681 = vadd.f32 %v2679, %v2680
        %v2682 = vrot.slane %v2681, 1
        %v2683 = vadd.f32 %v2681, %v2682
        %v2684 = vmul.f32 %v2417, %v2231
        %v2685 = vmul.f32 %v2419, %v2232
        %v2686 = vmul.f32 %v2422, %v2233
        %v2687 = vmul.f32 %v2424, %v2234
        %v2688 = vmul.f32 %v2427, %v2235
        %v2689 = vmul.f32 %v2429, %v2236
        %v2690 = vmul.f32 %v2432, %v2237
        %v2691 = vmul.f32 %v2434, %v2238
        %v2692 = vmul.f32 %v2437, %v2239
        %v2693 = vmul.f32 %v2439, %v2240
        %v2694 = vmul.f32 %v2442, %v2241
        %v2695 = vmul.f32 %v2444, %v2242
        %v2696 = vmul.f32 %v2447, %v2243
        %v2697 = vmul.f32 %v2449, %v2244
        %v2698 = vmul.f32 %v2452, %v2245
        %v2699 = vmul.f32 %v2454, %v2246
        %v2700 = vadd.f32 %v2684, %v2685
        %v2701 = vadd.f32 %v2700, %v2686
        %v2702 = vadd.f32 %v2701, %v2687
        %v2703 = vadd.f32 %v2702, %v2688
        %v2704 = vadd.f32 %v2703, %v2689
        %v2705 = vadd.f32 %v2704, %v2690
        %v2706 = vadd.f32 %v2705, %v2691
        %v2707 = vadd.f32 %v2706, %v2692
        %v2708 = vadd.f32 %v2707, %v2693
        %v2709 = vadd.f32 %v2708, %v2694
        %v2710 = vadd.f32 %v2709, %v2695
        %v2711 = vadd.f32 %v2710, %v2696
        %v2712 = vadd.f32 %v2711, %v2697
        %v2713 = vadd.f32 %v2712, %v2698
        %v2714 = vadd.f32 %v2713, %v2699
        %v2715 = vrot.slane %v2714, 4
        %v2716 = vadd.f32 %v2714, %v2715
        %v2717 = vrot.slane %v2716, 2
        %v2718 = vadd.f32 %v2716, %v2717
        %v2719 = vrot.slane %v2718, 1
        %v2720 = vadd.f32 %v2718, %v2719
        %v2721 = vadd.f32 %v2609, %v2720
        %v2722 = vmul.f32 %v2457, %v2231
        %v2723 = vmul.f32 %v2459, %v2232
        %v2724 = vmul.f32 %v2462, %v2233
        %v2725 = vmul.f32 %v2464, %v2234
        %v2726 = vmul.f32 %v2467, %v2235
        %v2727 = vmul.f32 %v2469, %v2236
        %v2728 = vmul.f32 %v2472, %v2237
        %v2729 = vmul.f32 %v2474, %v2238
        %v2730 = vmul.f32 %v2477, %v2239
        %v2731 = vmul.f32 %v2479, %v2240
        %v2732 = vmul.f32 %v2482, %v2241
        %v2733 = vmul.f32 %v2484, %v2242
        %v2734 = vmul.f32 %v2487, %v2243
        %v2735 = vmul.f32 %v2489, %v2244
        %v2736 = vmul.f32 %v2492, %v2245
        %v2737 = vmul.f32 %v2494, %v2246
        %v2738 = vadd.f32 %v2722, %v2723
        %v2739 = vadd.f32 %v2738, %v2724
        %v2740 = vadd.f32 %v2739, %v2725
        %v2741 = vadd.f32 %v2740, %v2726
        %v2742 = vadd.f32 %v2741, %v2727
        %v2743 = vadd.f32 %v2742, %v2728
        %v2744 = vadd.f32 %v2743, %v2729
        %v2745 = vadd.f32 %v2744, %v2730
        %v2746 = vadd.f32 %v2745, %v2731
        %v2747 = vadd.f32 %v2746, %v2732
        %v2748 = vadd.f32 %v2747, %v2733
        %v2749 = vadd.f32 %v2748, %v2734
        %v2750 = vadd.f32 %v2749, %v2735
        %v2751 = vadd.f32 %v2750, %v2736
        %v2752 = vadd.f32 %v2751, %v2737
        %v2753 = vrot.slane %v2752, 4
        %v2754 = vadd.f32 %v2752, %v2753
        %v2755 = vrot.slane %v2754, 2
        %v2756 = vadd.f32 %v2754, %v2755
        %v2757 = vrot.slane %v2756, 1
        %v2758 = vadd.f32 %v2756, %v2757
        %v2759 = vadd.f32 %v2646, %v2758
        %v2760 = vmul.f32 %v2497, %v2231
        %v2761 = vmul.f32 %v2499, %v2232
        %v2762 = vmul.f32 %v2502, %v2233
        %v2763 = vmul.f32 %v2504, %v2234
        %v2764 = vmul.f32 %v2507, %v2235
        %v2765 = vmul.f32 %v2509, %v2236
        %v2766 = vmul.f32 %v2512, %v2237
        %v2767 = vmul.f32 %v2514, %v2238
        %v2768 = vmul.f32 %v2517, %v2239
        %v2769 = vmul.f32 %v2519, %v2240
        %v2770 = vmul.f32 %v2522, %v2241
        %v2771 = vmul.f32 %v2524, %v2242
        %v2772 = vmul.f32 %v2527, %v2243
        %v2773 = vmul.f32 %v2529, %v2244
        %v2774 = vmul.f32 %v2532, %v2245
        %v2775 = vmul.f32 %v2534, %v2246
        %v2776 = vadd.f32 %v2760, %v2761
        %v2777 = vadd.f32 %v2776, %v2762
        %v2778 = vadd.f32 %v2777, %v2763
        %v2779 = vadd.f32 %v2778, %v2764
        %v2780 = vadd.f32 %v2779, %v2765
        %v2781 = vadd.f32 %v2780, %v2766
        %v2782 = vadd.f32 %v2781, %v2767
        %v2783 = vadd.f32 %v2782, %v2768
        %v2784 = vadd.f32 %v2783, %v2769
        %v2785 = vadd.f32 %v2784, %v2770
        %v2786 = vadd.f32 %v2785, %v2771
        %v2787 = vadd.f32 %v2786, %v2772
        %v2788 = vadd.f32 %v2787, %v2773
        %v2789 = vadd.f32 %v2788, %v2774
        %v2790 = vadd.f32 %v2789, %v2775
        %v2791 = vrot.slane %v2790, 4
        %v2792 = vadd.f32 %v2790, %v2791
        %v2793 = vrot.slane %v2792, 2
        %v2794 = vadd.f32 %v2792, %v2793
        %v2795 = vrot.slane %v2794, 1
        %v2796 = vadd.f32 %v2794, %v2795
        %v2797 = vadd.f32 %v2683, %v2796
        %v2798 = vsub.f32 %v2167, %v2721
        %v2799 = vadd.f32 %v2798, 1e-06
        %v2800 = vsub.f32 %v2167, %v2759
        %v2801 = vadd.f32 %v2800, 1e-06
        %v2802 = vsub.f32 %v2167, %v2797
        %v2803 = vadd.f32 %v2802, 1e-06
        %v2804 = vmul.f32 %v2799, %v2799
        %v2805 = vmul.f32 %v2801, %v2801
        %v2807 = vrot.slane %v2805, 1
        %v2809 = vadd.f32 %v2804, %v2807
        %v2810 = vmul.f32 %v2803, %v2803
        %v2812 = vrot.slane %v2810, 2
        %v2814 = vadd.f32 %v2809, %v2812
        %v2815 = vrsqrt.pop %v2814
        %v2816 = vmul.f32 %v2815, %v2814
        %v2817 = vmul.f32 %v2816, %v2815
        %v2818 = vmul.f32 0.5, %v2817
        %v2819 = vsub.f32 1.5, %v2818
        %v2820 = vmul.f32 %v2815, %v2819
        %v2821 = vmul.f32 %v2814, %v2820
        %vm2822 = vcmp.eq.f32.partialorder %v2814, inf
        %v2823 = vsel %vm2822, %v2814, %v2821
        %vm2824 = vcmp.eq.f32.partialorder %v2814, 0.0
        %v2825 = vand.u32 %v2814, 2147483648
        %v2826 = vsel %vm2824, %v2825, %v2823
        %v2827 = vsub.f32 1.0, %v2572
        %v2828 = vmul.f32 %v2826, %v2827
        %v2829 = vadd.f32 %v2164, %v2828
        %v2830 = vlaneseq
        %v2831 = vand.u32 %v2830, 127
        %s2832 = smul.u32 %s22, 128
        %v2833 = vstv %s2832
        %v2834 = vadd.s32 %v2831, %v2833
        %vm2835 = vcmp.lt.s32.totalorder %v2834, 64
        %v2836 = vsel %vm2835, 1, 0
        %v2837 = vcvt.s32.f32 %v2836
        %v2838 = vmul.f32 %v2829, %v2837
        %vm2839 = vcmask 1040384
        %v2840 = vsel %vm2839, %v2838, 0.0
        %2841 = vadd.xlane.f32.xlu0 %v2840
        %v2842 = vpop.xlane.xlu0 %2841
        %v2843 = vrot.slane %v2842, 4
        %v2844 = vadd.f32 %v2842, %v2843
        %v2845 = vrot.slane %v2844, 2
        %v2846 = vadd.f32 %v2844, %v2845
        %v2847 = vrot.slane %v2846, 1
        %v2848 = vadd.f32 %v2846, %v2847
        %s2849 = vtos %v2848
        %v2850 = vstv %s2849
        %v2851 = vadd.f32 %v2850, 0.0
        %2852 = vst [vmem:[%s211] sm:$0xff] %v2851
        %s2853 = sand.u32 %s119, 1
        %s2854 = scalar_lea.sflag [#allocation3], %s2853
        %s2855 = sand.u32 %s119, 1
        %s2856 = smul.addr %s2855, 8
        %s2857 = scalar_lea.vmem [#allocation2], %s2856
        // Predicated region
        $region33: #{tpu_custom_call.1} parent=31 // pred_check
          %p2858 = pneg %p129
        $region34: #{tpu_custom_call.1} parent=31 // pred_check_branch
          %2860 = sbr.rel (%p2858) target = $region36
        $region35: #{tpu_custom_call.1} parent=31 // pred_region
          %2862 = vsyncadd %s2854, 0
          %s2863 = sadd.s32 %s22, %s21
          %s2864 = smul.addr %s2863, 8
          %s2865 = scalar_lea.hbm %s3, %s2864
          %s2867 = sshll.u32 %s2857, 4
          %s2868 = int_to_ptr.vmem [resolvable:$true] %s2867
          %s2869 = sshll.u32 %s2865, 4
          %s2870 = int_to_ptr.hbm [resolvable:$true] %s2869
          %2872 = dma.vmem_to_hbm [thread:$0]  %s2868, 128, %s2870, %s2854
        $region36: #{tpu_custom_call.1} parent=31 // pred_fallthru
          _
      $region32: #{tpu_custom_call.1} parent=5 // pred_fallthru
        _
      %p2873 = scmp.le.s32.totalorder 2, %s12
      // Predicated region
      $region37: #{tpu_custom_call.1} parent=5 // pred_check
        %p2874 = pneg %p2873
      $region38: #{tpu_custom_call.1} parent=5 // pred_check_branch
        %2876 = sbr.rel (%p2874) target = $region40
      $region39: #{tpu_custom_call.1} parent=5 // pred_region
        %s2877 = ssub.s32 %s12, 2
        // Predicated region
        $region41: #{tpu_custom_call.1} parent=39 // pred_check
          %p2878 = pneg %p135
        $region42: #{tpu_custom_call.1} parent=39 // pred_check_branch
          %2880 = sbr.rel (%p2878) target = $region44
        $region43: #{tpu_custom_call.1} parent=39 // pred_region
          %s2881 = sand.u32 %s120, 1
          %s2882 = scalar_lea.sflag [#allocation3], %s2881
          %s2883 = sand.u32 %s120, 1
          %s2884 = smul.addr %s2883, 8
          %s2885 = scalar_lea.vmem [#allocation2], %s2884
          %2887 = dma.done %s2882, 128
        $region44: #{tpu_custom_call.1} parent=39 // pred_fallthru
          _
      $region40: #{tpu_custom_call.1} parent=5 // pred_fallthru
        _
    $region6: #{tpu_custom_call.1} parent=1 // loop_footer
      %s16 = sadd.s32 1, %s12
    $region7: #{tpu_custom_call.1} parent=1 // loop_footer_branch
      %11 = sbr.rel target = $region3
    $region8: #{tpu_custom_call.1} parent=1 // loop_exit
      _
    %2888 = vsyncpa [#allocation3], 1
    %s2889 = scalar_lea.sflag [#allocation3], 1
    %2890 = vsyncpa %s2889, 1

</llo_original>
